<compile_context>
chip_gen: v6e
topology: v6e:2x2x1
jax: 0.10.0
libtpu: 0.0.40
codegen_flags: <defaults>
</compile_context>

<pallas_src>
import functools

import jax
import jax.numpy as jnp
from jax.experimental import pallas as pl
from jax.experimental.pallas import tpu as pltpu


def _pointer_decoder_kernel(
    q_ref, ctx_ref, msk_ref, wtop_ref, wbot_ref, wsin_ref, wsout_ref, bsw_ref,   # inputs
    out_ref, wgt_ref, sw_ref,                                                    # outputs
    m_sc, l_sc, acc_sc, mstep_sc,                                                # scratch
    *, ns, ts):
  s_idx = pl.program_id(2)
  neg = jnp.float32(-1e30)

  @pl.when(s_idx == 0)
  def _init():
    m_sc[...] = jnp.full_like(m_sc, -1e30)
    l_sc[...] = jnp.zeros_like(l_sc)
    acc_sc[...] = jnp.zeros_like(acc_sc)

  q = q_ref[0]                               # (tm, D)  bf16, resident across the S axis
  k = ctx_ref[0]                             # (ts, D)  bf16, streamed over S
  msk = msk_ref[0].astype(jnp.float32)       # (tm, ts) int8 -> f32, streamed over S

  # scores tile = q @ k^T on the MXU (bf16 operands, f32 accumulation), masked.
  scores = jax.lax.dot_general(q, k, (((1,), (1,)), ((), ())),
                               preferred_element_type=jnp.float32)      # (tm, ts) f32
  scores = jnp.where(msk != 0.0, scores, neg)

  # Online-softmax update.
  m_prev = m_sc[...]
  m_new = jnp.maximum(m_prev, jnp.max(scores, axis=-1, keepdims=True))
  alpha = jnp.exp(m_prev - m_new)
  p = jnp.exp(scores - m_new)                                           # (tm, ts) f32
  l_sc[...] = alpha * l_sc[...] + jnp.sum(p, axis=-1, keepdims=True)
  acc_sc[...] = alpha * acc_sc[...] + jnp.dot(
      p.astype(k.dtype), k, preferred_element_type=jnp.float32)
  m_sc[...] = m_new
  mstep_sc[s_idx] = m_new                    # per-step running max, needed for final rescale

  # Stream the un-normalized exp tile straight into the resident weight output block
  # (128-aligned dynamic lane offset) instead of a second full score panel in scratch.
  lane0 = pl.multiple_of(s_idx * ts, 128)
  wgt_ref[0, :, pl.ds(lane0, ts)] = p.astype(wgt_ref.dtype)

  @pl.when(s_idx == ns - 1)
  def _finalize():
    m_f = m_sc[...]
    inv_l = pl.reciprocal(l_sc[...], approx=False)   # (tm,1) once per tile; exact keeps rows ~sum to 1

    # Normalize weight chunks in place: w_n = p_n * exp(m_step_n - m_final) / l_final.
    # TODO(synk): switch this static unroll to lax.fori_loop + pl.ds once ns is large (S >= ~4K).
    for n in range(ns):
      scale = jnp.exp(mstep_sc[n] - m_f) * inv_l                        # (tm, 1)
      wgt_ref[0, :, n * ts:(n + 1) * ts] = (
          wgt_ref[0, :, n * ts:(n + 1) * ts] * scale).astype(wgt_ref.dtype)

    attn = acc_sc[...] * inv_l                                          # (tm, D) f32

    # tanh([q, attn] @ W_attn^T) == tanh(q @ W_top + attn @ W_bot)  (no concat, bf16 MXU).
    h = (jnp.dot(q, wtop_ref[...], preferred_element_type=jnp.float32) +
         jnp.dot(attn.astype(wbot_ref.dtype), wbot_ref[...],
                 preferred_element_type=jnp.float32))
    out = jnp.tanh(h)                                                   # (tm, D) f32
    out_ref[0] = out.astype(out_ref.dtype)

    # switch = sigmoid([q, out] @ W_sw^T + b)  -> tiny per-row reductions in f32, no concat.
    q32 = q.astype(jnp.float32)
    z = (jnp.sum(q32 * wsin_ref[...], axis=-1, keepdims=True) +
         jnp.sum(out * wsout_ref[...], axis=-1, keepdims=True) +
         bsw_ref[...])
    sw = jax.nn.sigmoid(z)                                              # (tm, 1)
    # Lane-dense writeback: broadcast across 128 lanes, wrapper keeps column 0.
    sw_ref[0] = jnp.broadcast_to(sw, sw_ref.shape[1:]).astype(sw_ref.dtype)


def _round_up(x, m):
  return ((x + m - 1) // m) * m


def pointer_decoder_forward(inp, context, atten_mask, w_attn, w_switch, b_switch,
                            *, tm=256, ts=512, vmem_limit_bytes=None):
  """Fused PointerDecoder forward.

  inp:        (B, T, D)   float   (decoder states)
  context:    (B, S, D)   float   (context_question / encoder_out)
  atten_mask: (B, T, S)   1 = attend, 0 = masked (any dtype)
  w_attn:     (D, 2*D)    nn.Linear(2D, D, bias=False).weight, applied to cat([inp, attn])
  w_switch:   (1, 2*D)    nn.Linear(2D, 1).weight,             applied to cat([inp, out])
  b_switch:   (1,)        nn.Linear(2D, 1).bias
  Returns (out (B,T,D), weight (B,T,S), switch (B,T,1)).
  """
  B, T, D = inp.shape
  Bc, S, Dc = context.shape
  assert B == Bc and D == Dc, "dot attention requires d_in == d_hid"
  assert atten_mask.shape == (B, T, S)
  assert w_attn.shape == (D, 2 * D) and w_switch.shape == (1, 2 * D)

  # Split the concat-Linear weights -> two summed matmuls (no in-kernel concatenate).
  # Matmul weights in bf16 (MXU operands); the tiny switch weights stay f32.
  w_top = jnp.asarray(w_attn[:, :D].T, jnp.bfloat16)      # (D, D) acts on inp
  w_bot = jnp.asarray(w_attn[:, D:].T, jnp.bfloat16)      # (D, D) acts on attn
  w_sw_in = jnp.asarray(w_switch[:, :D], jnp.float32)     # (1, D) acts on inp
  w_sw_out = jnp.asarray(w_switch[:, D:], jnp.float32)    # (1, D) acts on out
  b_sw = jnp.asarray(b_switch, jnp.float32).reshape(1, 1)

  # Tile sizes: tm multiple of 32 (int8 mask sublane tiling), ts multiple of 128 (lanes);
  # pad T / S up to whole tiles.
  tm = _round_up(max(32, min(tm, _round_up(T, 32))), 32)
  ts = _round_up(max(128, min(ts, _round_up(S, 128))), 128)
  t_pad, s_pad = _round_up(T, tm), _round_up(S, ts)
  nt, ns = t_pad // tm, s_pad // ts

  # bf16 activations (half the HBM traffic of f32, full-rate MXU); int8 mask (1 byte/elem).
  q = jnp.pad(jnp.asarray(inp, jnp.bfloat16), ((0, 0), (0, t_pad - T), (0, 0)))
  ctx = jnp.pad(jnp.asarray(context, jnp.bfloat16), ((0, 0), (0, s_pad - S), (0, 0)))
  msk = jnp.pad((atten_mask != 0).astype(jnp.int8),
                ((0, 0), (0, t_pad - T), (0, s_pad - S)))

  if vmem_limit_bytes is None:
    est = (2 * (tm * D * 2 + ts * D * 2 + tm * ts * 1)           # streamed inputs, double-buffered
           + 2 * 2 * D * D * 2                                   # W_top / W_bot (bf16)
           + 2 * 3 * 8 * 128 * 4                                 # small padded f32 inputs
           + 2 * (tm * D * 4 + tm * s_pad * 4 + tm * 128 * 4)    # outputs, double-buffered
           + 2 * tm * 128 * 4 + tm * D * 4 + ns * tm * 128 * 4)  # scratch: m, l, acc, m_steps
    # Never go below the default scoped limit; cap well under physical VMEM.
    vmem_limit_bytes = min(max(int(est * 1.5) + (8 << 20), 32 << 20), 100 << 20)

  kernel = functools.partial(_pointer_decoder_kernel, ns=ns, ts=ts)

  out_shapes = (
      jax.ShapeDtypeStruct((B, t_pad, D), jnp.float32),      # context_question_outputs
      jax.ShapeDtypeStruct((B, t_pad, s_pad), jnp.float32),  # context_question_weight
      jax.ShapeDtypeStruct((B, t_pad, 128), jnp.float32),    # switch (lane-dense, col 0 used)
  )

  out, weight, switch = pl.pallas_call(
      kernel,
      out_shape=out_shapes,
      grid=(B, nt, ns),
      in_specs=[
          pl.BlockSpec((1, tm, D), lambda b, i, s: (b, i, 0)),      # inp tile (resident over S)
          pl.BlockSpec((1, ts, D), lambda b, i, s: (b, s, 0)),      # context, streamed over S
          pl.BlockSpec((1, tm, ts), lambda b, i, s: (b, i, s)),     # mask (int8), streamed over S
          pl.BlockSpec((D, D), lambda b, i, s: (0, 0)),             # W_top (bf16)
          pl.BlockSpec((D, D), lambda b, i, s: (0, 0)),             # W_bot (bf16)
          pl.BlockSpec((1, D), lambda b, i, s: (0, 0)),             # switch weight (inp half)
          pl.BlockSpec((1, D), lambda b, i, s: (0, 0)),             # switch weight (out half)
          pl.BlockSpec((1, 1), lambda b, i, s: (0, 0)),             # switch bias
      ],
      out_specs=[
          pl.BlockSpec((1, tm, D), lambda b, i, s: (b, i, 0)),      # out (written at last S step)
          pl.BlockSpec((1, tm, s_pad), lambda b, i, s: (b, i, 0)),  # weights (resident over S)
          pl.BlockSpec((1, tm, 128), lambda b, i, s: (b, i, 0)),    # switch
      ],
      scratch_shapes=[
          pltpu.VMEM((tm, 1), jnp.float32),        # running max m
          pltpu.VMEM((tm, 1), jnp.float32),        # running denom l
          pltpu.VMEM((tm, D), jnp.float32),        # attention accumulator (f32)
          pltpu.VMEM((ns, tm, 1), jnp.float32),    # per-S-step running max (for final rescale)
      ],
      compiler_params=pltpu.CompilerParams(
          dimension_semantics=("parallel", "parallel", "arbitrary"),
          vmem_limit_bytes=vmem_limit_bytes),
  )(q, ctx, msk, w_top, w_bot, w_sw_in, w_sw_out, b_sw)

  return out[:, :T, :], weight[:, :T, :S], switch[:, :T, :1]


def pointer_decoder_reference(inp, context, atten_mask, w_attn, w_switch, b_switch):
  """Pure-JAX f32 reference (same finite -1e30 masking as the kernel)."""
  scores = jnp.einsum("btd,bsd->bts", inp, context)
  scores = jnp.where(atten_mask != 0, scores, -1e30)
  weight = jax.nn.softmax(scores, axis=-1)
  attn = jnp.einsum("bts,bsd->btd", weight, context)
  out = jnp.tanh(jnp.concatenate([inp, attn], axis=-1) @ w_attn.T)
  switch = jax.nn.sigmoid(jnp.concatenate([inp, out], axis=-1) @ w_switch.T + b_switch)
  return out, weight, switch


if __name__ == "__main__":
  key = jax.random.PRNGKey(0)
  B, T, S, D = 2, 128, 320, 128     # exercises S-streaming and S padding (320 -> 384)
  k0, k1, k2, k3 = jax.random.split(key, 4)

  inp = 0.3 * jax.random.normal(k0, (B, T, D), jnp.float32)
  ctx = 0.3 * jax.random.normal(k1, (B, S, D), jnp.float32)
  # Padding-style attention mask: batch 0 attends to all S columns, batch 1 only the first 200.
  lens = jnp.array([S, 200])
  mask = (jnp.arange(S)[None, None, :] < lens[:, None, None]).astype(jnp.float32)
  mask = jnp.broadcast_to(mask, (B, T, S))

  w_attn = jax.random.normal(k2, (D, 2 * D), jnp.float32) / jnp.sqrt(2.0 * D)
  w_switch = jax.random.normal(k3, (1, 2 * D), jnp.float32) / jnp.sqrt(2.0 * D)
  b_switch = jnp.zeros((1,), jnp.float32)

  ref_out, ref_w, ref_sw = pointer_decoder_reference(
      inp, ctx, mask, w_attn, w_switch, b_switch)

  def check(out, weight, switch):
    assert out.shape == (B, T, D) and weight.shape == (B, T, S) and switch.shape == (B, T, 1)
    assert bool(jnp.allclose(out, ref_out, atol=2e-2, rtol=2e-2))
    assert bool(jnp.allclose(weight, ref_w, atol=2e-2, rtol=2e-2))
    assert bool(jnp.allclose(switch, ref_sw, atol=2e-2, rtol=2e-2))

  # Config 1: small tiles -> exercises multi-tile S streaming (3 S tiles) + padding.
  out, weight, switch = pointer_decoder_forward(
      inp, ctx, mask, w_attn, w_switch, b_switch, tm=128, ts=128)
  jax.block_until_ready((out, weight, switch))
  check(out, weight, switch)

  # Config 2: default (large) tiles -> single S tile path (tm/ts clamp to the padded problem).
  out2, weight2, switch2 = pointer_decoder_forward(
      inp, ctx, mask, w_attn, w_switch, b_switch)
  jax.block_until_ready((out2, weight2, switch2))
  check(out2, weight2, switch2)

  print("KERNEL_OK")
</pallas_src>

<mosaic_0001>
module attributes {stable_mosaic.version = 11 : i64} {
  func.func @_pointer_decoder_kernel(%arg0: i32, %arg1: i32, %arg2: i32, %arg3: memref<1x128x128xbf16, #tpu.memory_space<vmem>>, %arg4: memref<1x128x128xbf16, #tpu.memory_space<vmem>>, %arg5: memref<1x128x128xi8, #tpu.memory_space<vmem>>, %arg6: memref<128x128xbf16, #tpu.memory_space<vmem>>, %arg7: memref<128x128xbf16, #tpu.memory_space<vmem>>, %arg8: memref<1x128xf32, #tpu.memory_space<vmem>>, %arg9: memref<1x128xf32, #tpu.memory_space<vmem>>, %arg10: memref<1x1xf32, #tpu.memory_space<vmem>>, %arg11: memref<1x128x128xf32, #tpu.memory_space<vmem>>, %arg12: memref<1x128x384xf32, #tpu.memory_space<vmem>>, %arg13: memref<1x128x128xf32, #tpu.memory_space<vmem>>, %arg14: memref<128x1xf32, #tpu.memory_space<vmem>>, %arg15: memref<128x1xf32, #tpu.memory_space<vmem>>, %arg16: memref<128x128xf32, #tpu.memory_space<vmem>>, %arg17: memref<3x128x1xf32, #tpu.memory_space<vmem>>) attributes {dimension_semantics = [#tpu.dimension_semantics<parallel>, #tpu.dimension_semantics<parallel>, #tpu.dimension_semantics<arbitrary>], iteration_bounds = array<i64: 2, 1, 3>, scalar_prefetch = 0 : i64, scratch_operands = 4 : i64, tpu.core_type = #tpu.core_type<tc>, window_params = [{transform_indices = @transform_0, window_bounds = array<i64: 1, 128, 128>}, {transform_indices = @transform_1, window_bounds = array<i64: 1, 128, 128>}, {transform_indices = @transform_2, window_bounds = array<i64: 1, 128, 128>}, {pipeline_mode = #tpu.pipeline_mode<synchronous>, transform_indices = @transform_3, window_bounds = array<i64: 128, 128>}, {pipeline_mode = #tpu.pipeline_mode<synchronous>, transform_indices = @transform_4, window_bounds = array<i64: 128, 128>}, {pipeline_mode = #tpu.pipeline_mode<synchronous>, transform_indices = @transform_5, window_bounds = array<i64: 1, 128>}, {pipeline_mode = #tpu.pipeline_mode<synchronous>, transform_indices = @transform_6, window_bounds = array<i64: 1, 128>}, {pipeline_mode = #tpu.pipeline_mode<synchronous>, transform_indices = @transform_7, window_bounds = array<i64: 1, 1>}, {transform_indices = @transform_8, window_bounds = array<i64: 1, 128, 128>}, {transform_indices = @transform_9, window_bounds = array<i64: 1, 128, 384>}, {transform_indices = @transform_10, window_bounds = array<i64: 1, 128, 128>}]} {
    %c0_i32 = arith.constant 0 : i32
    %0 = arith.cmpi eq, %arg2, %c0_i32 : i32
    %1 = arith.extui %0 : i1 to i32
    %c0_i32_0 = arith.constant 0 : i32
    %2 = arith.cmpi ne, %1, %c0_i32_0 : i32
    scf.if %2 {
      %cst_31 = arith.constant -1.000000e+30 : f32
      %51 = vector.broadcast %cst_31 : f32 to vector<128x1xf32>
      %c0_32 = arith.constant 0 : index
      %c0_33 = arith.constant 0 : index
      %52 = vector.load %arg14[%c0_32, %c0_33] : memref<128x1xf32, #tpu.memory_space<vmem>>, vector<128x1xf32>
      tpu.vector_store %arg14[%c0_32, %c0_33], %51 {strides = array<i32>} : memref<128x1xf32, #tpu.memory_space<vmem>>, vector<128x1xf32>,
      %cst_34 = arith.constant 0.000000e+00 : f32
      %53 = vector.broadcast %cst_34 : f32 to vector<128x1xf32>
      %c0_35 = arith.constant 0 : index
      %c0_36 = arith.constant 0 : index
      %54 = vector.load %arg15[%c0_35, %c0_36] : memref<128x1xf32, #tpu.memory_space<vmem>>, vector<128x1xf32>
      tpu.vector_store %arg15[%c0_35, %c0_36], %53 {strides = array<i32>} : memref<128x1xf32, #tpu.memory_space<vmem>>, vector<128x1xf32>,
      %cst_37 = arith.constant 0.000000e+00 : f32
      %55 = vector.broadcast %cst_37 : f32 to vector<128x128xf32>
      %c0_38 = arith.constant 0 : index
      %c0_39 = arith.constant 0 : index
      %56 = vector.load %arg16[%c0_38, %c0_39] : memref<128x128xf32, #tpu.memory_space<vmem>>, vector<128x128xf32>
      tpu.vector_store %arg16[%c0_38, %c0_39], %55 {strides = array<i32>} : memref<128x128xf32, #tpu.memory_space<vmem>>, vector<128x128xf32>,
    } else {
    }
    %c0 = arith.constant 0 : index
    %c0_1 = arith.constant 0 : index
    %c0_2 = arith.constant 0 : index
    %3 = vector.load %arg3[%c0, %c0_1, %c0_2] : memref<1x128x128xbf16, #tpu.memory_space<vmem>>, vector<1x128x128xbf16>
    %4 = vector.shape_cast %3 : vector<1x128x128xbf16> to vector<128x128xbf16>
    %c0_3 = arith.constant 0 : index
    %c0_4 = arith.constant 0 : index
    %c0_5 = arith.constant 0 : index
    %5 = vector.load %arg4[%c0_3, %c0_4, %c0_5] : memref<1x128x128xbf16, #tpu.memory_space<vmem>>, vector<1x128x128xbf16>
    %6 = vector.shape_cast %5 : vector<1x128x128xbf16> to vector<128x128xbf16>
    %c0_6 = arith.constant 0 : index
    %c0_7 = arith.constant 0 : index
    %c0_8 = arith.constant 0 : index
    %7 = vector.load %arg5[%c0_6, %c0_7, %c0_8] : memref<1x128x128xi8, #tpu.memory_space<vmem>>, vector<1x128x128xi8>
    %8 = vector.shape_cast %7 : vector<1x128x128xi8> to vector<128x128xi8>
    %9 = arith.sitofp %8 : vector<128x128xi8> to vector<128x128xf32>
    %cst = arith.constant dense<0.000000e+00> : vector<128x128xf32>
    %10 = tpu.matmul %4, %6, %cst {dimension_numbers = #tpu.dot_dimension_numbers<[1], [1], [0], [0], [0, 0, 1, 0], [], []>} : vector<128x128xbf16>, vector<128x128xbf16>, vector<128x128xf32> -> vector<128x128xf32>
    %cst_9 = arith.constant 0.000000e+00 : f32
    %11 = vector.broadcast %cst_9 : f32 to vector<128x128xf32>
    %12 = arith.cmpf one, %9, %11 : vector<128x128xf32>
    %cst_10 = arith.constant -1.000000e+30 : f32
    %13 = vector.broadcast %cst_10 : f32 to vector<128x128xf32>
    %14 = arith.select %12, %10, %13 : vector<128x128xi1>, vector<128x128xf32>
    %c0_11 = arith.constant 0 : index
    %c0_12 = arith.constant 0 : index
    %15 = vector.load %arg14[%c0_11, %c0_12] : memref<128x1xf32, #tpu.memory_space<vmem>>, vector<128x1xf32>
    %cst_13 = arith.constant dense<0xFF800000> : vector<128xf32>
    %16 = vector.multi_reduction <maximumf>, %14, %cst_13 [1] : vector<128x128xf32> to vector<128xf32>
    %17 = vector.shape_cast %16 : vector<128xf32> to vector<128x1xf32>
    %18 = arith.maximumf %15, %17 : vector<128x1xf32>
    %19 = arith.subf %15, %18 : vector<128x1xf32>
    %20 = math.exp %19 : vector<128x1xf32>
    %21 = vector.broadcast %18 : vector<128x1xf32> to vector<128x128xf32>
    %22 = arith.subf %14, %21 : vector<128x128xf32>
    %23 = math.exp %22 : vector<128x128xf32>
    %c0_14 = arith.constant 0 : index
    %c0_15 = arith.constant 0 : index
    %24 = vector.load %arg15[%c0_14, %c0_15] : memref<128x1xf32, #tpu.memory_space<vmem>>, vector<128x1xf32>
    %25 = arith.mulf %20, %24 : vector<128x1xf32>
    %cst_16 = arith.constant dense<0.000000e+00> : vector<128xf32>
    %26 = vector.multi_reduction <add>, %23, %cst_16 [1] : vector<128x128xf32> to vector<128xf32>
    %27 = vector.shape_cast %26 : vector<128xf32> to vector<128x1xf32>
    %28 = arith.addf %25, %27 : vector<128x1xf32>
    %c0_17 = arith.constant 0 : index
    %c0_18 = arith.constant 0 : index
    %29 = vector.load %arg15[%c0_17, %c0_18] : memref<128x1xf32, #tpu.memory_space<vmem>>, vector<128x1xf32>
    tpu.vector_store %arg15[%c0_17, %c0_18], %28 {strides = array<i32>} : memref<128x1xf32, #tpu.memory_space<vmem>>, vector<128x1xf32>,
    %c0_19 = arith.constant 0 : index
    %c0_20 = arith.constant 0 : index
    %30 = vector.load %arg16[%c0_19, %c0_20] : memref<128x128xf32, #tpu.memory_space<vmem>>, vector<128x128xf32>
    %31 = vector.broadcast %20 : vector<128x1xf32> to vector<128x128xf32>
    %32 = arith.mulf %31, %30 : vector<128x128xf32>
    %33 = arith.truncf %23 : vector<128x128xf32> to vector<128x128xbf16>
    %cst_21 = arith.constant dense<0.000000e+00> : vector<128x128xf32>
    %34 = tpu.matmul %33, %6, %cst_21 {dimension_numbers = #tpu.dot_dimension_numbers<[1], [0], [0], [1], [0, 0, 1, 1], [], []>} : vector<128x128xbf16>, vector<128x128xbf16>, vector<128x128xf32> -> vector<128x128xf32>
    %35 = arith.addf %32, %34 : vector<128x128xf32>
    %c0_22 = arith.constant 0 : index
    %c0_23 = arith.constant 0 : index
    %36 = vector.load %arg16[%c0_22, %c0_23] : memref<128x128xf32, #tpu.memory_space<vmem>>, vector<128x128xf32>
    tpu.vector_store %arg16[%c0_22, %c0_23], %35 {strides = array<i32>} : memref<128x128xf32, #tpu.memory_space<vmem>>, vector<128x128xf32>,
    %c0_24 = arith.constant 0 : index
    %c0_25 = arith.constant 0 : index
    %37 = vector.load %arg14[%c0_24, %c0_25] : memref<128x1xf32, #tpu.memory_space<vmem>>, vector<128x1xf32>
    tpu.vector_store %arg14[%c0_24, %c0_25], %18 {strides = array<i32>} : memref<128x1xf32, #tpu.memory_space<vmem>>, vector<128x1xf32>,
    %38 = arith.index_cast %arg2 : i32 to index
    %c0_26 = arith.constant 0 : index
    %c0_27 = arith.constant 0 : index
    %39 = vector.load %arg17[%38, %c0_26, %c0_27] : memref<3x128x1xf32, #tpu.memory_space<vmem>>, vector<1x128x1xf32>
    %40 = vector.shape_cast %39 : vector<1x128x1xf32> to vector<128x1xf32>
    %41 = vector.shape_cast %18 : vector<128x1xf32> to vector<1x128x1xf32>
    tpu.vector_store %arg17[%38, %c0_26, %c0_27], %41 {strides = array<i32>} : memref<3x128x1xf32, #tpu.memory_space<vmem>>, vector<1x128x1xf32>,
    %c128_i32 = arith.constant 128 : i32
    %42 = arith.muli %arg2, %c128_i32 : i32
    %43 = tpu.assume_multiple %42, 128 : i32
    %c0_28 = arith.constant 0 : index
    %c0_29 = arith.constant 0 : index
    %44 = arith.index_cast %43 : i32 to index
    %45 = vector.load %arg12[%c0_28, %c0_29, %44] : memref<1x128x384xf32, #tpu.memory_space<vmem>>, vector<1x128x128xf32>
    %46 = vector.shape_cast %45 : vector<1x128x128xf32> to vector<128x128xf32>
    %47 = vector.shape_cast %23 : vector<128x128xf32> to vector<1x128x128xf32>
    tpu.vector_store %arg12[%c0_28, %c0_29, %44], %47 {strides = array<i32>} : memref<1x128x384xf32, #tpu.memory_space<vmem>>, vector<1x128x128xf32>,
    %c2_i32 = arith.constant 2 : i32
    %48 = arith.cmpi eq, %arg2, %c2_i32 : i32
    %49 = arith.extui %48 : i1 to i32
    %c0_i32_30 = arith.constant 0 : i32
    %50 = arith.cmpi ne, %49, %c0_i32_30 : i32
    scf.if %50 {
      %c0_31 = arith.constant 0 : index
      %c0_32 = arith.constant 0 : index
      %51 = vector.load %arg14[%c0_31, %c0_32] : memref<128x1xf32, #tpu.memory_space<vmem>>, vector<128x1xf32>
      %c0_33 = arith.constant 0 : index
      %c0_34 = arith.constant 0 : index
      %52 = vector.load %arg15[%c0_33, %c0_34] : memref<128x1xf32, #tpu.memory_space<vmem>>, vector<128x1xf32>
      %53 = tpu.reciprocal %52 : vector<128x1xf32> -> vector<128x1xf32>
      %c0_35 = arith.constant 0 : index
      %c0_36 = arith.constant 0 : index
      %c0_37 = arith.constant 0 : index
      %54 = vector.load %arg17[%c0_35, %c0_36, %c0_37] : memref<3x128x1xf32, #tpu.memory_space<vmem>>, vector<1x128x1xf32>
      %55 = vector.shape_cast %54 : vector<1x128x1xf32> to vector<128x1xf32>
      %56 = arith.subf %55, %51 : vector<128x1xf32>
      %57 = math.exp %56 : vector<128x1xf32>
      %58 = arith.mulf %57, %53 : vector<128x1xf32>
      %c0_38 = arith.constant 0 : index
      %c0_39 = arith.constant 0 : index
      %c0_40 = arith.constant 0 : index
      %59 = vector.load %arg12[%c0_38, %c0_39, %c0_40] : memref<1x128x384xf32, #tpu.memory_space<vmem>>, vector<1x128x128xf32>
      %60 = vector.shape_cast %59 : vector<1x128x128xf32> to vector<128x128xf32>
      %61 = vector.broadcast %58 : vector<128x1xf32> to vector<128x128xf32>
      %62 = arith.mulf %60, %61 : vector<128x128xf32>
      %c0_41 = arith.constant 0 : index
      %c0_42 = arith.constant 0 : index
      %c0_43 = arith.constant 0 : index
      %63 = vector.load %arg12[%c0_41, %c0_42, %c0_43] : memref<1x128x384xf32, #tpu.memory_space<vmem>>, vector<1x128x128xf32>
      %64 = vector.shape_cast %63 : vector<1x128x128xf32> to vector<128x128xf32>
      %65 = vector.shape_cast %62 : vector<128x128xf32> to vector<1x128x128xf32>
      tpu.vector_store %arg12[%c0_41, %c0_42, %c0_43], %65 {strides = array<i32>} : memref<1x128x384xf32, #tpu.memory_space<vmem>>, vector<1x128x128xf32>,
      %c1 = arith.constant 1 : index
      %c0_44 = arith.constant 0 : index
      %c0_45 = arith.constant 0 : index
      %66 = vector.load %arg17[%c1, %c0_44, %c0_45] : memref<3x128x1xf32, #tpu.memory_space<vmem>>, vector<1x128x1xf32>
      %67 = vector.shape_cast %66 : vector<1x128x1xf32> to vector<128x1xf32>
      %68 = arith.subf %67, %51 : vector<128x1xf32>
      %69 = math.exp %68 : vector<128x1xf32>
      %70 = arith.mulf %69, %53 : vector<128x1xf32>
      %c0_46 = arith.constant 0 : index
      %c0_47 = arith.constant 0 : index
      %c128 = arith.constant 128 : index
      %71 = vector.load %arg12[%c0_46, %c0_47, %c128] : memref<1x128x384xf32, #tpu.memory_space<vmem>>, vector<1x128x128xf32>
      %72 = vector.shape_cast %71 : vector<1x128x128xf32> to vector<128x128xf32>
      %73 = vector.broadcast %70 : vector<128x1xf32> to vector<128x128xf32>
      %74 = arith.mulf %72, %73 : vector<128x128xf32>
      %c0_48 = arith.constant 0 : index
      %c0_49 = arith.constant 0 : index
      %c128_50 = arith.constant 128 : index
      %75 = vector.load %arg12[%c0_48, %c0_49, %c128_50] : memref<1x128x384xf32, #tpu.memory_space<vmem>>, vector<1x128x128xf32>
      %76 = vector.shape_cast %75 : vector<1x128x128xf32> to vector<128x128xf32>
      %77 = vector.shape_cast %74 : vector<128x128xf32> to vector<1x128x128xf32>
      tpu.vector_store %arg12[%c0_48, %c0_49, %c128_50], %77 {strides = array<i32>} : memref<1x128x384xf32, #tpu.memory_space<vmem>>, vector<1x128x128xf32>,
      %c2 = arith.constant 2 : index
      %c0_51 = arith.constant 0 : index
      %c0_52 = arith.constant 0 : index
      %78 = vector.load %arg17[%c2, %c0_51, %c0_52] : memref<3x128x1xf32, #tpu.memory_space<vmem>>, vector<1x128x1xf32>
      %79 = vector.shape_cast %78 : vector<1x128x1xf32> to vector<128x1xf32>
      %80 = arith.subf %79, %51 : vector<128x1xf32>
      %81 = math.exp %80 : vector<128x1xf32>
      %82 = arith.mulf %81, %53 : vector<128x1xf32>
      %c0_53 = arith.constant 0 : index
      %c0_54 = arith.constant 0 : index
      %c256 = arith.constant 256 : index
      %83 = vector.load %arg12[%c0_53, %c0_54, %c256] : memref<1x128x384xf32, #tpu.memory_space<vmem>>, vector<1x128x128xf32>
      %84 = vector.shape_cast %83 : vector<1x128x128xf32> to vector<128x128xf32>
      %85 = vector.broadcast %82 : vector<128x1xf32> to vector<128x128xf32>
      %86 = arith.mulf %84, %85 : vector<128x128xf32>
      %c0_55 = arith.constant 0 : index
      %c0_56 = arith.constant 0 : index
      %c256_57 = arith.constant 256 : index
      %87 = vector.load %arg12[%c0_55, %c0_56, %c256_57] : memref<1x128x384xf32, #tpu.memory_space<vmem>>, vector<1x128x128xf32>
      %88 = vector.shape_cast %87 : vector<1x128x128xf32> to vector<128x128xf32>
      %89 = vector.shape_cast %86 : vector<128x128xf32> to vector<1x128x128xf32>
      tpu.vector_store %arg12[%c0_55, %c0_56, %c256_57], %89 {strides = array<i32>} : memref<1x128x384xf32, #tpu.memory_space<vmem>>, vector<1x128x128xf32>,
      %c0_58 = arith.constant 0 : index
      %c0_59 = arith.constant 0 : index
      %90 = vector.load %arg16[%c0_58, %c0_59] : memref<128x128xf32, #tpu.memory_space<vmem>>, vector<128x128xf32>
      %91 = vector.broadcast %53 : vector<128x1xf32> to vector<128x128xf32>
      %92 = arith.mulf %90, %91 : vector<128x128xf32>
      %c0_60 = arith.constant 0 : index
      %c0_61 = arith.constant 0 : index
      %93 = vector.load %arg6[%c0_60, %c0_61] : memref<128x128xbf16, #tpu.memory_space<vmem>>, vector<128x128xbf16>
      %cst_62 = arith.constant dense<0.000000e+00> : vector<128x128xf32>
      %94 = tpu.matmul %4, %93, %cst_62 {dimension_numbers = #tpu.dot_dimension_numbers<[1], [0], [0], [1], [0, 0, 1, 1], [], []>} : vector<128x128xbf16>, vector<128x128xbf16>, vector<128x128xf32> -> vector<128x128xf32>
      %95 = arith.truncf %92 : vector<128x128xf32> to vector<128x128xbf16>
      %c0_63 = arith.constant 0 : index
      %c0_64 = arith.constant 0 : index
      %96 = vector.load %arg7[%c0_63, %c0_64] : memref<128x128xbf16, #tpu.memory_space<vmem>>, vector<128x128xbf16>
      %cst_65 = arith.constant dense<0.000000e+00> : vector<128x128xf32>
      %97 = tpu.matmul %95, %96, %cst_65 {dimension_numbers = #tpu.dot_dimension_numbers<[1], [0], [0], [1], [0, 0, 1, 1], [], []>} : vector<128x128xbf16>, vector<128x128xbf16>, vector<128x128xf32> -> vector<128x128xf32>
      %98 = arith.addf %94, %97 : vector<128x128xf32>
      %99 = math.tanh %98 : vector<128x128xf32>
      %c0_66 = arith.constant 0 : index
      %c0_67 = arith.constant 0 : index
      %c0_68 = arith.constant 0 : index
      %100 = vector.load %arg11[%c0_66, %c0_67, %c0_68] : memref<1x128x128xf32, #tpu.memory_space<vmem>>, vector<1x128x128xf32>
      %101 = vector.shape_cast %100 : vector<1x128x128xf32> to vector<128x128xf32>
      %102 = vector.shape_cast %99 : vector<128x128xf32> to vector<1x128x128xf32>
      tpu.vector_store %arg11[%c0_66, %c0_67, %c0_68], %102 {strides = array<i32>} : memref<1x128x128xf32, #tpu.memory_space<vmem>>, vector<1x128x128xf32>,
      %103 = arith.extf %4 : vector<128x128xbf16> to vector<128x128xf32>
      %c0_69 = arith.constant 0 : index
      %c0_70 = arith.constant 0 : index
      %104 = vector.load %arg8[%c0_69, %c0_70] : memref<1x128xf32, #tpu.memory_space<vmem>>, vector<1x128xf32>
      %105 = vector.broadcast %104 : vector<1x128xf32> to vector<128x128xf32>
      %106 = arith.mulf %103, %105 : vector<128x128xf32>
      %cst_71 = arith.constant dense<0.000000e+00> : vector<128xf32>
      %107 = vector.multi_reduction <add>, %106, %cst_71 [1] : vector<128x128xf32> to vector<128xf32>
      %108 = vector.shape_cast %107 : vector<128xf32> to vector<128x1xf32>
      %c0_72 = arith.constant 0 : index
      %c0_73 = arith.constant 0 : index
      %109 = vector.load %arg9[%c0_72, %c0_73] : memref<1x128xf32, #tpu.memory_space<vmem>>, vector<1x128xf32>
      %110 = vector.broadcast %109 : vector<1x128xf32> to vector<128x128xf32>
      %111 = arith.mulf %99, %110 : vector<128x128xf32>
      %cst_74 = arith.constant dense<0.000000e+00> : vector<128xf32>
      %112 = vector.multi_reduction <add>, %111, %cst_74 [1] : vector<128x128xf32> to vector<128xf32>
      %113 = vector.shape_cast %112 : vector<128xf32> to vector<128x1xf32>
      %114 = arith.addf %108, %113 : vector<128x1xf32>
      %c0_75 = arith.constant 0 : index
      %c0_76 = arith.constant 0 : index
      %115 = vector.load %arg10[%c0_75, %c0_76] : memref<1x1xf32, #tpu.memory_space<vmem>>, vector<1x1xf32>
      %116 = vector.broadcast %115 : vector<1x1xf32> to vector<128x1xf32>
      %117 = arith.addf %114, %116 : vector<128x1xf32>
      %118 = arith.negf %117 : vector<128x1xf32>
      %119 = math.exp %118 : vector<128x1xf32>
      %cst_77 = arith.constant 1.000000e+00 : f32
      %120 = vector.broadcast %cst_77 : f32 to vector<128x1xf32>
      %121 = arith.addf %120, %119 : vector<128x1xf32>
      %122 = arith.divf %120, %121 : vector<128x1xf32>
      %123 = vector.shape_cast %122 : vector<128x1xf32> to vector<128x1xf32>
      %124 = vector.broadcast %123 : vector<128x1xf32> to vector<128x128xf32>
      %c0_78 = arith.constant 0 : index
      %c0_79 = arith.constant 0 : index
      %c0_80 = arith.constant 0 : index
      %125 = vector.load %arg13[%c0_78, %c0_79, %c0_80] : memref<1x128x128xf32, #tpu.memory_space<vmem>>, vector<1x128x128xf32>
      %126 = vector.shape_cast %125 : vector<1x128x128xf32> to vector<128x128xf32>
      %127 = vector.shape_cast %124 : vector<128x128xf32> to vector<1x128x128xf32>
      tpu.vector_store %arg13[%c0_78, %c0_79, %c0_80], %127 {strides = array<i32>} : memref<1x128x128xf32, #tpu.memory_space<vmem>>, vector<1x128x128xf32>,
    } else {
    }
    return
  }
  func.func @transform_0(%arg0: i32, %arg1: i32, %arg2: i32) -> (i32, i32, i32) {
    %c0_i32 = arith.constant 0 : i32
    %c0_i32_0 = arith.constant 0 : i32
    return %arg0, %arg1, %c0_i32 : i32, i32, i32
  }
  func.func @transform_1(%arg0: i32, %arg1: i32, %arg2: i32) -> (i32, i32, i32) {
    %c0_i32 = arith.constant 0 : i32
    %c0_i32_0 = arith.constant 0 : i32
    return %arg0, %arg2, %c0_i32 : i32, i32, i32
  }
  func.func @transform_2(%arg0: i32, %arg1: i32, %arg2: i32) -> (i32, i32, i32) {
    %c0_i32 = arith.constant 0 : i32
    return %arg0, %arg1, %arg2 : i32, i32, i32
  }
  func.func @transform_3(%arg0: i32, %arg1: i32, %arg2: i32) -> (i32, i32) {
    %c0_i32 = arith.constant 0 : i32
    %c0_i32_0 = arith.constant 0 : i32
    %c0_i32_1 = arith.constant 0 : i32
    return %c0_i32, %c0_i32_0 : i32, i32
  }
  func.func @transform_4(%arg0: i32, %arg1: i32, %arg2: i32) -> (i32, i32) {
    %c0_i32 = arith.constant 0 : i32
    %c0_i32_0 = arith.constant 0 : i32
    %c0_i32_1 = arith.constant 0 : i32
    return %c0_i32, %c0_i32_0 : i32, i32
  }
  func.func @transform_5(%arg0: i32, %arg1: i32, %arg2: i32) -> (i32, i32) {
    %c0_i32 = arith.constant 0 : i32
    %c0_i32_0 = arith.constant 0 : i32
    %c0_i32_1 = arith.constant 0 : i32
    return %c0_i32, %c0_i32_0 : i32, i32
  }
  func.func @transform_6(%arg0: i32, %arg1: i32, %arg2: i32) -> (i32, i32) {
    %c0_i32 = arith.constant 0 : i32
    %c0_i32_0 = arith.constant 0 : i32
    %c0_i32_1 = arith.constant 0 : i32
    return %c0_i32, %c0_i32_0 : i32, i32
  }
  func.func @transform_7(%arg0: i32, %arg1: i32, %arg2: i32) -> (i32, i32) {
    %c0_i32 = arith.constant 0 : i32
    %c0_i32_0 = arith.constant 0 : i32
    %c0_i32_1 = arith.constant 0 : i32
    return %c0_i32, %c0_i32_0 : i32, i32
  }
  func.func @transform_8(%arg0: i32, %arg1: i32, %arg2: i32) -> (i32, i32, i32) {
    %c0_i32 = arith.constant 0 : i32
    %c0_i32_0 = arith.constant 0 : i32
    return %arg0, %arg1, %c0_i32 : i32, i32, i32
  }
  func.func @transform_9(%arg0: i32, %arg1: i32, %arg2: i32) -> (i32, i32, i32) {
    %c0_i32 = arith.constant 0 : i32
    %c0_i32_0 = arith.constant 0 : i32
    return %arg0, %arg1, %c0_i32 : i32, i32, i32
  }
  func.func @transform_10(%arg0: i32, %arg1: i32, %arg2: i32) -> (i32, i32, i32) {
    %c0_i32 = arith.constant 0 : i32
    %c0_i32_0 = arith.constant 0 : i32
    return %arg0, %arg1, %c0_i32 : i32, i32, i32
  }
}

</mosaic_0001>

<llo_original>
// kernel: tpu_custom_call.1
$region0: #{tpu_custom_call.1}
  #allocation0 [shape = 'u32[]', space=smem, size = 0x4, offset = 0x4, fixed_abs, tag = 'smem constant byte address 0x4 - core index']
  #allocation1 [shape = 'u32[144,128]{1,0:T(1,128)}', space=vmem, size = 0x12000, scoped, tag = 'internal scratch']
  #allocation2 [shape = 'f32[128,1]{1,0:T(8,128)}', space=vmem, size = 0x10000, scoped, tag = 'scratch operand']
  #allocation3 [shape = 'f32[128,1]{1,0:T(8,128)}', space=vmem, size = 0x10000, scoped, tag = 'scratch operand']
  #allocation4 [shape = 'f32[128,128]{1,0:T(8,128)}', space=vmem, size = 0x10000, scoped, tag = 'scratch operand']
  #allocation5 [shape = 'f32[3,128,1]{2,1,0:T(8,128)}', space=vmem, size = 0x30000, scoped, tag = 'scratch operand']
  #allocation6 [shape = 'f32[1,1]{1,0:T(1,128)S(1)}', space=vmem, size = 0x200, scoped, tag = 'scoped memory for tpu_custom_call.1']
  %s0 = inlined_call_operand.hbm [shape: bf16[2,128,128], index: 0, kind: input, shape index: {}]
  %s1 = inlined_call_operand.hbm [shape: bf16[2,384,128], index: 1, kind: input, shape index: {}]
  %s2 = inlined_call_operand.hbm [shape: s8[2,128,384], index: 2, kind: input, shape index: {}]
  %s3 = inlined_call_operand.hbm [shape: bf16[128,128], index: 3, kind: input, shape index: {}]
  %s4 = inlined_call_operand.hbm [shape: bf16[128,128], index: 4, kind: input, shape index: {}]
  %s5 = inlined_call_operand.vmem [shape: f32[1,128], index: 5, kind: input, shape index: {}]
  %s6 = inlined_call_operand.vmem [shape: f32[1,128], index: 6, kind: input, shape index: {}]
  %s7 = inlined_call_operand.<no memory space> [shape: f32[1,1], index: 7, kind: input, shape index: {}]
  %s8 = inlined_call_operand.hbm [shape: f32[2,128,128], index: 8, kind: output, shape index: {0}]
  %s9 = inlined_call_operand.hbm [shape: f32[2,128,384], index: 9, kind: output, shape index: {1}]
  %s10 = inlined_call_operand.hbm [shape: f32[2,128,128], index: 10, kind: output, shape index: {2}]
  %11 = xla_tuple %s8, %s9, %s10
  %s12 = sld [smem:[#allocation0]]
  $region109: #{tpu_custom_call.1} parent=0
    _
  %s14 = ssub.s32 1, %s12
  %s15 = scalar_select 0, %s14, %s12
  %v16 = vstv %s7
  %17 = vst [vmem:[#allocation6] sm:$0x1] %v16
  $region1: #{tpu_custom_call.1} parent=0
    #allocation7 [shape = 'u8[65536]{0}', space=vmem, size = 0x10000, scoped, tag = 'input window, operand 0']
    #allocation8 [shape = 's32[2]{0}', space=sflag, size = 0x8, scoped, tag = 'scoped memory for tpu_custom_call.1']
    #allocation9 [shape = 's32[2]{0}', space=sflag, size = 0x8, scoped, tag = 'scoped memory for tpu_custom_call.1']
    #allocation10 [shape = 'u8[65536]{0}', space=vmem, size = 0x10000, scoped, tag = 'input window, operand 1']
    #allocation11 [shape = 's32[2]{0}', space=sflag, size = 0x8, scoped, tag = 'scoped memory for tpu_custom_call.1']
    #allocation12 [shape = 'u8[32768]{0}', space=vmem, size = 0x8000, scoped, tag = 'input window, operand 2']
    #allocation13 [shape = 'u8[32768]{0}', space=vmem, size = 0x8000, scoped, tag = 'input window, operand 3, single buffered']
    #allocation14 [shape = 's32[1]{0}', space=sflag, size = 0x4, scoped, tag = 'scoped memory for tpu_custom_call.1']
    #allocation15 [shape = 'u8[32768]{0}', space=vmem, size = 0x8000, scoped, tag = 'input window, operand 4, single buffered']
    #allocation16 [shape = 'u8[131072]{0}', space=vmem, size = 0x20000, scoped, tag = 'output window, operand 0']
    #allocation17 [shape = 'u8[393216]{0}', space=vmem, size = 0x60000, scoped, tag = 'output window, operand 1']
    #allocation18 [shape = 's32[2]{0}', space=sflag, size = 0x8, scoped, tag = 'scoped memory for tpu_custom_call.1']
    #allocation19 [shape = 'u8[131072]{0}', space=vmem, size = 0x20000, scoped, tag = 'output window, operand 2']
    %18 = vsyncpa [#allocation8], 0
    %s19 = scalar_lea.sflag [#allocation8], 1
    %20 = vsyncpa %s19, 0
    %21 = vsyncpa [#allocation11], 0
    %s22 = scalar_lea.sflag [#allocation11], 1
    %23 = vsyncpa %s22, 0
    %24 = vsyncpa [#allocation14], 0
    %25 = vsyncpa [#allocation9], 0
    %s26 = scalar_lea.sflag [#allocation9], 1
    %27 = vsyncpa %s26, 0
    %28 = vsyncpa [#allocation18], 0
    %s29 = scalar_lea.sflag [#allocation18], 1
    %30 = vsyncpa %s29, 0
    loop: start=0, step=1, limit=8
    $region2: #{tpu_custom_call.1} parent=1 // loop_pre_header
      _
    $region3: #{tpu_custom_call.1} parent=1 // loop_header
      %s32 = sphi 0, %s36
      %p33 = scmp.ge.s32.totalorder %s32, 8
      %s39 = sphi 0, %s58
      %s40 = sphi 0, %s54
      %s41 = sphi 0, %s50
      %s42 = sphi 0, %s39
      %s43 = sphi 0, %s40
      %s44 = sphi 0, %s41
      %s45 = sphi 0, %s42
      %s46 = sphi 0, %s43
      %s47 = sphi 0, %s44
      %s63 = sphi 0, %s65
      %s66 = sphi 0, %s63
      %s67 = sphi 0, %s66
      %s83 = sphi 0, %s67
      %s91 = sphi 0, %s93
      %s94 = sphi 0, %s91
      %s95 = sphi 0, %s94
      %s111 = sphi 0, %s95
      %s121 = sphi 0, %s123
      %s124 = sphi 0, %s121
      %s125 = sphi 0, %s124
      %s141 = sphi 0, %s125
      %s145 = sphi 0, %s145
      %s147 = sphi 0, %s145
      %s148 = sphi 0, %s147
      %s162 = sphi 0, %s148
      %s166 = sphi 0, %s166
      %s168 = sphi 0, %s166
      %s169 = sphi 0, %s168
      %s183 = sphi 0, %s169
      %s187 = sphi 0, %s187
      %s189 = sphi 0, %s187
      %s190 = sphi 0, %s189
      %s204 = sphi 0, %s190
      %s208 = sphi 0, %s208
      %s210 = sphi 0, %s208
      %s211 = sphi 0, %s210
      %s225 = sphi 0, %s211
      %s229 = sphi 0, %s229
      %s231 = sphi 0, %s229
      %s232 = sphi 0, %s231
      %s246 = sphi 0, %s232
      %s254 = sphi 0, %s256
      %s257 = sphi 0, %s254
      %s258 = sphi 0, %s257
      %s274 = sphi 0, %s258
      %s282 = sphi 0, %s284
      %s285 = sphi 0, %s282
      %s286 = sphi 0, %s285
      %s302 = sphi 0, %s286
      %s310 = sphi 0, %s312
      %s313 = sphi 0, %s310
      %s314 = sphi 0, %s313
      %s330 = sphi 0, %s314
    $region4: #{tpu_custom_call.1} parent=1 // loop_header_branch
      %35 = sbr.rel (%p33) target = $region8
    $region5: #{tpu_custom_call.1} parent=1 // loop_body
      %s37 = ssub.s32 %s32, 1
      %s38 = ssub.s32 %s32, 2
      %s48 = sadd.s32 1, %s41
      %p49 = scmp.ge.s32.totalorder %s48, 3
      %s50 = scalar_select %p49, 0, %s48
      %s51 = sadd.s32 1, %s40
      %s52 = scalar_select %p49, %s51, %s40
      %p53 = scmp.ge.s32.totalorder %s52, 1
      %s54 = scalar_select %p53, 0, %s52
      %s55 = sadd.s32 1, %s39
      %s56 = scalar_select %p53, %s55, %s39
      %p57 = scmp.ge.s32.totalorder %s56, 2
      %s58 = scalar_select %p57, 0, %s56
      %s59 = ssub.s32 %s39, %s58
      %s60 = ssub.s32 %s40, %s54
      %s61 = sor.u32 %s59, %s60
      %p62 = scmp.eq.s32.totalorder %s61, 0
      %s64 = sadd.s32 %s63, 1
      %s65 = scalar_select %p62, %s63, %s64
      %p68 = pneg %p62
      %p69 = scmp.eq.s32.totalorder %s32, 5
      %p70 = por %p68, %p69
      %p71 = scmp.ne.s32.totalorder %s63, %s66
      %p72 = scmp.eq.s32.totalorder %s32, 0
      %p73 = por %p71, %p72
      %p74 = scmp.ne.s32.totalorder %s63, %s66
      %p75 = scmp.eq.s32.totalorder %s37, 5
      %p76 = por %p74, %p75
      %p77 = scmp.ne.s32.totalorder %s66, %s67
      %p78 = scmp.eq.s32.totalorder %s37, 0
      %p79 = por %p77, %p78
      %p80 = scmp.ne.s32.totalorder %s66, %s67
      %p81 = scmp.eq.s32.totalorder %s38, 5
      %p82 = por %p80, %p81
      %p84 = scmp.ne.s32.totalorder %s67, %s83
      %p85 = scmp.eq.s32.totalorder %s38, 0
      %p86 = por %p84, %p85
      %s87 = ssub.s32 %s39, %s58
      %s88 = ssub.s32 %s41, %s50
      %s89 = sor.u32 %s87, %s88
      %p90 = scmp.eq.s32.totalorder %s89, 0
      %s92 = sadd.s32 %s91, 1
      %s93 = scalar_select %p90, %s91, %s92
      %p96 = pneg %p90
      %p97 = scmp.eq.s32.totalorder %s32, 5
      %p98 = por %p96, %p97
      %p99 = scmp.ne.s32.totalorder %s91, %s94
      %p100 = scmp.eq.s32.totalorder %s32, 0
      %p101 = por %p99, %p100
      %p102 = scmp.ne.s32.totalorder %s91, %s94
      %p103 = scmp.eq.s32.totalorder %s37, 5
      %p104 = por %p102, %p103
      %p105 = scmp.ne.s32.totalorder %s94, %s95
      %p106 = scmp.eq.s32.totalorder %s37, 0
      %p107 = por %p105, %p106
      %p108 = scmp.ne.s32.totalorder %s94, %s95
      %p109 = scmp.eq.s32.totalorder %s38, 5
      %p110 = por %p108, %p109
      %p112 = scmp.ne.s32.totalorder %s95, %s111
      %p113 = scmp.eq.s32.totalorder %s38, 0
      %p114 = por %p112, %p113
      %s115 = ssub.s32 %s39, %s58
      %s116 = ssub.s32 %s40, %s54
      %s117 = sor.u32 %s115, %s116
      %s118 = ssub.s32 %s41, %s50
      %s119 = sor.u32 %s117, %s118
      %p120 = scmp.eq.s32.totalorder %s119, 0
      %s122 = sadd.s32 %s121, 1
      %s123 = scalar_select %p120, %s121, %s122
      %p126 = pneg %p120
      %p127 = scmp.eq.s32.totalorder %s32, 5
      %p128 = por %p126, %p127
      %p129 = scmp.ne.s32.totalorder %s121, %s124
      %p130 = scmp.eq.s32.totalorder %s32, 0
      %p131 = por %p129, %p130
      %p132 = scmp.ne.s32.totalorder %s121, %s124
      %p133 = scmp.eq.s32.totalorder %s37, 5
      %p134 = por %p132, %p133
      %p135 = scmp.ne.s32.totalorder %s124, %s125
      %p136 = scmp.eq.s32.totalorder %s37, 0
      %p137 = por %p135, %p136
      %p138 = scmp.ne.s32.totalorder %s124, %s125
      %p139 = scmp.eq.s32.totalorder %s38, 5
      %p140 = por %p138, %p139
      %p142 = scmp.ne.s32.totalorder %s125, %s141
      %p143 = scmp.eq.s32.totalorder %s38, 0
      %p144 = por %p142, %p143
      %s146 = sadd.s32 %s145, 1
      %p149 = scmp.eq.s32.totalorder %s32, 5
      %p150 = scmp.ne.s32.totalorder %s145, %s147
      %p151 = scmp.eq.s32.totalorder %s32, 0
      %p152 = por %p150, %p151
      %p153 = scmp.ne.s32.totalorder %s145, %s147
      %p154 = scmp.eq.s32.totalorder %s37, 5
      %p155 = por %p153, %p154
      %p156 = scmp.ne.s32.totalorder %s147, %s148
      %p157 = scmp.eq.s32.totalorder %s37, 0
      %p158 = por %p156, %p157
      %p159 = scmp.ne.s32.totalorder %s147, %s148
      %p160 = scmp.eq.s32.totalorder %s38, 5
      %p161 = por %p159, %p160
      %p163 = scmp.ne.s32.totalorder %s148, %s162
      %p164 = scmp.eq.s32.totalorder %s38, 0
      %p165 = por %p163, %p164
      %s167 = sadd.s32 %s166, 1
      %p170 = scmp.eq.s32.totalorder %s32, 5
      %p171 = scmp.ne.s32.totalorder %s166, %s168
      %p172 = scmp.eq.s32.totalorder %s32, 0
      %p173 = por %p171, %p172
      %p174 = scmp.ne.s32.totalorder %s166, %s168
      %p175 = scmp.eq.s32.totalorder %s37, 5
      %p176 = por %p174, %p175
      %p177 = scmp.ne.s32.totalorder %s168, %s169
      %p178 = scmp.eq.s32.totalorder %s37, 0
      %p179 = por %p177, %p178
      %p180 = scmp.ne.s32.totalorder %s168, %s169
      %p181 = scmp.eq.s32.totalorder %s38, 5
      %p182 = por %p180, %p181
      %p184 = scmp.ne.s32.totalorder %s169, %s183
      %p185 = scmp.eq.s32.totalorder %s38, 0
      %p186 = por %p184, %p185
      %s188 = sadd.s32 %s187, 1
      %p191 = scmp.eq.s32.totalorder %s32, 5
      %p192 = scmp.ne.s32.totalorder %s187, %s189
      %p193 = scmp.eq.s32.totalorder %s32, 0
      %p194 = por %p192, %p193
      %p195 = scmp.ne.s32.totalorder %s187, %s189
      %p196 = scmp.eq.s32.totalorder %s37, 5
      %p197 = por %p195, %p196
      %p198 = scmp.ne.s32.totalorder %s189, %s190
      %p199 = scmp.eq.s32.totalorder %s37, 0
      %p200 = por %p198, %p199
      %p201 = scmp.ne.s32.totalorder %s189, %s190
      %p202 = scmp.eq.s32.totalorder %s38, 5
      %p203 = por %p201, %p202
      %p205 = scmp.ne.s32.totalorder %s190, %s204
      %p206 = scmp.eq.s32.totalorder %s38, 0
      %p207 = por %p205, %p206
      %s209 = sadd.s32 %s208, 1
      %p212 = scmp.eq.s32.totalorder %s32, 5
      %p213 = scmp.ne.s32.totalorder %s208, %s210
      %p214 = scmp.eq.s32.totalorder %s32, 0
      %p215 = por %p213, %p214
      %p216 = scmp.ne.s32.totalorder %s208, %s210
      %p217 = scmp.eq.s32.totalorder %s37, 5
      %p218 = por %p216, %p217
      %p219 = scmp.ne.s32.totalorder %s210, %s211
      %p220 = scmp.eq.s32.totalorder %s37, 0
      %p221 = por %p219, %p220
      %p222 = scmp.ne.s32.totalorder %s210, %s211
      %p223 = scmp.eq.s32.totalorder %s38, 5
      %p224 = por %p222, %p223
      %p226 = scmp.ne.s32.totalorder %s211, %s225
      %p227 = scmp.eq.s32.totalorder %s38, 0
      %p228 = por %p226, %p227
      %s230 = sadd.s32 %s229, 1
      %p233 = scmp.eq.s32.totalorder %s32, 5
      %p234 = scmp.ne.s32.totalorder %s229, %s231
      %p235 = scmp.eq.s32.totalorder %s32, 0
      %p236 = por %p234, %p235
      %p237 = scmp.ne.s32.totalorder %s229, %s231
      %p238 = scmp.eq.s32.totalorder %s37, 5
      %p239 = por %p237, %p238
      %p240 = scmp.ne.s32.totalorder %s231, %s232
      %p241 = scmp.eq.s32.totalorder %s37, 0
      %p242 = por %p240, %p241
      %p243 = scmp.ne.s32.totalorder %s231, %s232
      %p244 = scmp.eq.s32.totalorder %s38, 5
      %p245 = por %p243, %p244
      %p247 = scmp.ne.s32.totalorder %s232, %s246
      %p248 = scmp.eq.s32.totalorder %s38, 0
      %p249 = por %p247, %p248
      %s250 = ssub.s32 %s39, %s58
      %s251 = ssub.s32 %s40, %s54
      %s252 = sor.u32 %s250, %s251
      %p253 = scmp.eq.s32.totalorder %s252, 0
      %s255 = sadd.s32 %s254, 1
      %s256 = scalar_select %p253, %s254, %s255
      %p259 = pneg %p253
      %p260 = scmp.eq.s32.totalorder %s32, 5
      %p261 = por %p259, %p260
      %p262 = scmp.ne.s32.totalorder %s254, %s257
      %p263 = scmp.eq.s32.totalorder %s32, 0
      %p264 = por %p262, %p263
      %p265 = scmp.ne.s32.totalorder %s254, %s257
      %p266 = scmp.eq.s32.totalorder %s37, 5
      %p267 = por %p265, %p266
      %p268 = scmp.ne.s32.totalorder %s257, %s258
      %p269 = scmp.eq.s32.totalorder %s37, 0
      %p270 = por %p268, %p269
      %p271 = scmp.ne.s32.totalorder %s257, %s258
      %p272 = scmp.eq.s32.totalorder %s38, 5
      %p273 = por %p271, %p272
      %p275 = scmp.ne.s32.totalorder %s258, %s274
      %p276 = scmp.eq.s32.totalorder %s38, 0
      %p277 = por %p275, %p276
      %s278 = ssub.s32 %s39, %s58
      %s279 = ssub.s32 %s40, %s54
      %s280 = sor.u32 %s278, %s279
      %p281 = scmp.eq.s32.totalorder %s280, 0
      %s283 = sadd.s32 %s282, 1
      %s284 = scalar_select %p281, %s282, %s283
      %p287 = pneg %p281
      %p288 = scmp.eq.s32.totalorder %s32, 5
      %p289 = por %p287, %p288
      %p290 = scmp.ne.s32.totalorder %s282, %s285
      %p291 = scmp.eq.s32.totalorder %s32, 0
      %p292 = por %p290, %p291
      %p293 = scmp.ne.s32.totalorder %s282, %s285
      %p294 = scmp.eq.s32.totalorder %s37, 5
      %p295 = por %p293, %p294
      %p296 = scmp.ne.s32.totalorder %s285, %s286
      %p297 = scmp.eq.s32.totalorder %s37, 0
      %p298 = por %p296, %p297
      %p299 = scmp.ne.s32.totalorder %s285, %s286
      %p300 = scmp.eq.s32.totalorder %s38, 5
      %p301 = por %p299, %p300
      %p303 = scmp.ne.s32.totalorder %s286, %s302
      %p304 = scmp.eq.s32.totalorder %s38, 0
      %p305 = por %p303, %p304
      %s306 = ssub.s32 %s39, %s58
      %s307 = ssub.s32 %s40, %s54
      %s308 = sor.u32 %s306, %s307
      %p309 = scmp.eq.s32.totalorder %s308, 0
      %s311 = sadd.s32 %s310, 1
      %s312 = scalar_select %p309, %s310, %s311
      %p315 = pneg %p309
      %p316 = scmp.eq.s32.totalorder %s32, 5
      %p317 = por %p315, %p316
      %p318 = scmp.ne.s32.totalorder %s310, %s313
      %p319 = scmp.eq.s32.totalorder %s32, 0
      %p320 = por %p318, %p319
      %p321 = scmp.ne.s32.totalorder %s310, %s313
      %p322 = scmp.eq.s32.totalorder %s37, 5
      %p323 = por %p321, %p322
      %p324 = scmp.ne.s32.totalorder %s313, %s314
      %p325 = scmp.eq.s32.totalorder %s37, 0
      %p326 = por %p324, %p325
      %p327 = scmp.ne.s32.totalorder %s313, %s314
      %p328 = scmp.eq.s32.totalorder %s38, 5
      %p329 = por %p327, %p328
      %p331 = scmp.ne.s32.totalorder %s314, %s330
      %p332 = scmp.eq.s32.totalorder %s38, 0
      %p333 = por %p331, %p332
      %p334 = scmp.le.s32.totalorder 1, %s32
      %p335 = scmp.lt.s32.totalorder %s32, 7
      %p336 = pnand %p334, %p335
      %p337 = pneg %p336
      // Predicated region
      $region9: #{tpu_custom_call.1} parent=5 // pred_check
        _
      $region10: #{tpu_custom_call.1} parent=5 // pred_check_branch
        %339 = sbr.rel (%p336) target = $region12
      $region11: #{tpu_custom_call.1} parent=5 // pred_region
        %s340 = ssub.s32 %s32, 1
        // Predicated region
        $region13: #{tpu_custom_call.1} parent=11 // pred_check
          %p341 = pneg %p158
        $region14: #{tpu_custom_call.1} parent=11 // pred_check_branch
          %343 = sbr.rel (%p341) target = $region16
        $region15: #{tpu_custom_call.1} parent=11 // pred_region
          %s345 = ssub.s32 1024, 1024
          %346 = vsyncadd [#allocation14], %s345
          %s347 = sshll.u32 [#allocation13], 4
          %s348 = int_to_ptr.vmem [resolvable:$true] %s347
          %353 = dma.hbm_to_vmem [thread:$0]  %s3, 1024, %s348, [#allocation14], 64, 64, 4
        $region16: #{tpu_custom_call.1} parent=11 // pred_fallthru
          _
        // Predicated region
        $region17: #{tpu_custom_call.1} parent=11 // pred_check
          %p354 = pneg %p179
        $region18: #{tpu_custom_call.1} parent=11 // pred_check_branch
          %356 = sbr.rel (%p354) target = $region20
        $region19: #{tpu_custom_call.1} parent=11 // pred_region
          %s358 = ssub.s32 1024, 1024
          %359 = vsyncadd [#allocation14], %s358
          %s360 = sshll.u32 [#allocation15], 4
          %s361 = int_to_ptr.vmem [resolvable:$true] %s360
          %366 = dma.hbm_to_vmem [thread:$0]  %s4, 1024, %s361, [#allocation14], 64, 64, 4
        $region20: #{tpu_custom_call.1} parent=11 // pred_fallthru
          _
        // Predicated region
        $region21: #{tpu_custom_call.1} parent=11 // pred_check
          %p367 = pneg %p200
        $region22: #{tpu_custom_call.1} parent=11 // pred_check_branch
          %369 = sbr.rel (%p367) target = $region24
        $region23: #{tpu_custom_call.1} parent=11 // pred_region
          _
        $region24: #{tpu_custom_call.1} parent=11 // pred_fallthru
          _
        // Predicated region
        $region25: #{tpu_custom_call.1} parent=11 // pred_check
          %p370 = pneg %p221
        $region26: #{tpu_custom_call.1} parent=11 // pred_check_branch
          %372 = sbr.rel (%p370) target = $region28
        $region27: #{tpu_custom_call.1} parent=11 // pred_region
          _
        $region28: #{tpu_custom_call.1} parent=11 // pred_fallthru
          _
        // Predicated region
        $region29: #{tpu_custom_call.1} parent=11 // pred_check
          %p373 = pneg %p242
        $region30: #{tpu_custom_call.1} parent=11 // pred_check_branch
          %375 = sbr.rel (%p373) target = $region32
        $region31: #{tpu_custom_call.1} parent=11 // pred_region
          _
        $region32: #{tpu_custom_call.1} parent=11 // pred_fallthru
          _
      $region12: #{tpu_custom_call.1} parent=5 // pred_fallthru
        _
      %p376 = scmp.lt.s32.totalorder %s32, 6
      // Predicated region
      $region33: #{tpu_custom_call.1} parent=5 // pred_check
        %p377 = pneg %p376
      $region34: #{tpu_custom_call.1} parent=5 // pred_check_branch
        %379 = sbr.rel (%p377) target = $region36
      $region35: #{tpu_custom_call.1} parent=5 // pred_region
        // Predicated region
        $region37: #{tpu_custom_call.1} parent=35 // pred_check
          %p380 = pneg %p73
        $region38: #{tpu_custom_call.1} parent=35 // pred_check_branch
          %382 = sbr.rel (%p380) target = $region40
        $region39: #{tpu_custom_call.1} parent=35 // pred_region
          %s383 = sand.u32 %s63, 1
          %s384 = scalar_lea.sflag [#allocation8], %s383
          %s385 = sand.u32 %s63, 1
          %s386 = smul.addr %s385, 64
          %s387 = scalar_lea.vmem [#allocation7], %s386
          %s388 = smul.u32 16, %s40
          %s390 = ssub.s32 1024, 1024
          %391 = vsyncadd %s384, %s390
          %s392 = smul.addr %s39, 16
          %s393 = sadd.s32 %s388, %s392
          %s394 = smul.addr %s393, 64
          %s395 = scalar_lea.hbm %s0, %s394
          %s396 = sshll.u32 %s387, 4
          %s397 = int_to_ptr.vmem [resolvable:$true] %s396
          %402 = dma.hbm_to_vmem [thread:$0]  %s395, 1024, %s397, %s384, 64, 64, 4
        $region40: #{tpu_custom_call.1} parent=35 // pred_fallthru
          _
        // Predicated region
        $region41: #{tpu_custom_call.1} parent=35 // pred_check
          %p403 = pneg %p101
        $region42: #{tpu_custom_call.1} parent=35 // pred_check_branch
          %405 = sbr.rel (%p403) target = $region44
        $region43: #{tpu_custom_call.1} parent=35 // pred_region
          %s406 = sand.u32 %s32, 1
          %s407 = scalar_lea.sflag [#allocation11], %s406
          %s408 = sand.u32 %s91, 1
          %s409 = smul.addr %s408, 64
          %s410 = scalar_lea.vmem [#allocation10], %s409
          %s411 = smul.u32 16, %s41
          %s413 = ssub.s32 1024, 1024
          %414 = vsyncadd %s407, %s413
          %s415 = smul.addr %s39, 48
          %s416 = sadd.s32 %s411, %s415
          %s417 = smul.addr %s416, 64
          %s418 = scalar_lea.hbm %s1, %s417
          %s419 = sshll.u32 %s410, 4
          %s420 = int_to_ptr.vmem [resolvable:$true] %s419
          %425 = dma.hbm_to_vmem [thread:$0]  %s418, 1024, %s420, %s407, 64, 64, 4
        $region44: #{tpu_custom_call.1} parent=35 // pred_fallthru
          _
        // Predicated region
        $region45: #{tpu_custom_call.1} parent=35 // pred_check
          %p426 = pneg %p131
        $region46: #{tpu_custom_call.1} parent=35 // pred_check_branch
          %428 = sbr.rel (%p426) target = $region48
        $region47: #{tpu_custom_call.1} parent=35 // pred_region
          %s429 = sand.u32 %s32, 1
          %s430 = scalar_lea.sflag [#allocation11], %s429
          %s431 = sand.u32 %s121, 1
          %s432 = smul.addr %s431, 32
          %s433 = scalar_lea.vmem [#allocation12], %s432
          %s434 = smul.u32 4, %s40
          %s436 = ssub.s32 512, 512
          %437 = vsyncadd %s430, %s436
          %s438 = smul.addr %s434, 3
          %s439 = sadd.s32 %s41, %s438
          %s440 = smul.addr %s39, 12
          %s441 = sadd.s32 %s439, %s440
          %s442 = smul.addr %s441, 128
          %s443 = scalar_lea.hbm %s2, %s442
          %s444 = sshll.u32 %s433, 4
          %s445 = int_to_ptr.vmem [resolvable:$true] %s444
          %450 = dma.hbm_to_vmem [thread:$0]  %s443, 512, %s445, %s430, 384, 128, 8
        $region48: #{tpu_custom_call.1} parent=35 // pred_fallthru
          _
      $region36: #{tpu_custom_call.1} parent=5 // pred_fallthru
        _
      %p451 = scmp.le.s32.totalorder 1, %s32
      %p452 = scmp.lt.s32.totalorder %s32, 7
      %p453 = pnand %p451, %p452
      %p454 = pneg %p453
      // Predicated region
      $region49: #{tpu_custom_call.1} parent=5 // pred_check
        _
      $region50: #{tpu_custom_call.1} parent=5 // pred_check_branch
        %456 = sbr.rel (%p453) target = $region52
      $region51: #{tpu_custom_call.1} parent=5 // pred_region
        %s457 = ssub.s32 %s32, 1
        %s458 = sand.u32 %s66, 1
        %s459 = scalar_lea.sflag [#allocation8], %s458
        %s460 = sand.u32 %s66, 1
        %s461 = smul.addr %s460, 64
        %s462 = scalar_lea.vmem [#allocation7], %s461
        // Predicated region
        $region53: #{tpu_custom_call.1} parent=51 // pred_check
          %p463 = pneg %p79
        $region54: #{tpu_custom_call.1} parent=51 // pred_check_branch
          %465 = sbr.rel (%p463) target = $region56
        $region55: #{tpu_custom_call.1} parent=51 // pred_region
          %466 = dma.done %s459, 1024
        $region56: #{tpu_custom_call.1} parent=51 // pred_fallthru
          _
        %s467 = sand.u32 %s37, 1
        %s468 = scalar_lea.sflag [#allocation11], %s467
        %s469 = sand.u32 %s94, 1
        %s470 = smul.addr %s469, 64
        %s471 = scalar_lea.vmem [#allocation10], %s470
        // Predicated region
        $region57: #{tpu_custom_call.1} parent=51 // pred_check
          %p472 = pneg %p107
        $region58: #{tpu_custom_call.1} parent=51 // pred_check_branch
          %474 = sbr.rel (%p472) target = $region60
        $region59: #{tpu_custom_call.1} parent=51 // pred_region
          %475 = dma.done %s468, 1024
        $region60: #{tpu_custom_call.1} parent=51 // pred_fallthru
          _
        %s476 = sand.u32 %s37, 1
        %s477 = scalar_lea.sflag [#allocation11], %s476
        %s478 = sand.u32 %s124, 1
        %s479 = smul.addr %s478, 32
        %s480 = scalar_lea.vmem [#allocation12], %s479
        // Predicated region
        $region61: #{tpu_custom_call.1} parent=51 // pred_check
          %p481 = pneg %p137
        $region62: #{tpu_custom_call.1} parent=51 // pred_check_branch
          %483 = sbr.rel (%p481) target = $region64
        $region63: #{tpu_custom_call.1} parent=51 // pred_region
          %484 = dma.done %s477, 512
        $region64: #{tpu_custom_call.1} parent=51 // pred_fallthru
          _
        // Predicated region
        $region65: #{tpu_custom_call.1} parent=51 // pred_check
          %p485 = pneg %p158
        $region66: #{tpu_custom_call.1} parent=51 // pred_check_branch
          %487 = sbr.rel (%p485) target = $region68
        $region67: #{tpu_custom_call.1} parent=51 // pred_region
          %488 = dma.done [#allocation14], 1024
        $region68: #{tpu_custom_call.1} parent=51 // pred_fallthru
          _
        // Predicated region
        $region69: #{tpu_custom_call.1} parent=51 // pred_check
          %p489 = pneg %p179
        $region70: #{tpu_custom_call.1} parent=51 // pred_check_branch
          %491 = sbr.rel (%p489) target = $region72
        $region71: #{tpu_custom_call.1} parent=51 // pred_region
          %492 = dma.done [#allocation14], 1024
        $region72: #{tpu_custom_call.1} parent=51 // pred_fallthru
          _
        %s493 = sand.u32 %s66, 1
        %s494 = scalar_lea.sflag [#allocation8], %s493
        %s495 = sand.u32 %s66, 1
        %s496 = smul.addr %s495, 64
        %s497 = scalar_lea.vmem [#allocation7], %s496
        %p498 = pneg %p79
        %p499 = pneg %p76
        %s500 = sand.u32 %s37, 1
        %s501 = scalar_lea.sflag [#allocation11], %s500
        %s502 = sand.u32 %s94, 1
        %s503 = smul.addr %s502, 64
        %s504 = scalar_lea.vmem [#allocation10], %s503
        %p505 = pneg %p107
        %p506 = pneg %p104
        %s507 = sand.u32 %s37, 1
        %s508 = scalar_lea.sflag [#allocation11], %s507
        %s509 = sand.u32 %s124, 1
        %s510 = smul.addr %s509, 32
        %s511 = scalar_lea.vmem [#allocation12], %s510
        %p512 = pneg %p137
        %p513 = pneg %p134
        %p514 = pneg %p158
        %p515 = pneg %p155
        %p516 = pneg %p179
        %p517 = pneg %p176
        %p518 = pneg %p200
        %p519 = pneg %p197
        %p520 = pneg %p221
        %p521 = pneg %p218
        %p522 = pneg %p242
        %p523 = pneg %p239
        %p524 = pneg %p270
        %p525 = pneg %p267
        %s526 = sand.u32 %s257, 1
        %s527 = scalar_lea.sflag [#allocation9], %s526
        %s528 = sand.u32 %s257, 1
        %s529 = smul.addr %s528, 128
        %s530 = scalar_lea.vmem [#allocation16], %s529
        %p531 = pneg %p298
        %p532 = pneg %p295
        %s533 = sand.u32 %s37, 1
        %s534 = scalar_lea.sflag [#allocation18], %s533
        %s535 = sand.u32 %s285, 1
        %s536 = smul.addr %s535, 384
        %s537 = scalar_lea.vmem [#allocation17], %s536
        %p538 = pneg %p326
        %p539 = pneg %p323
        %s540 = sand.u32 %s37, 1
        %s541 = scalar_lea.sflag [#allocation18], %s540
        %s542 = sand.u32 %s313, 1
        %s543 = smul.addr %s542, 128
        %s544 = scalar_lea.vmem [#allocation19], %s543
        %s545 = smul.u32 16, %s43
        %s546 = smul.u32 16, %s44
        %s547 = smul.u32 4, %s43
        %s548 = smul.u32 16, %s43
        %s549 = smul.u32 16, %s43
        %s550 = smul.u32 16, %s43
        %p552 = scmp.eq.s32.totalorder %s44, 0
        // Predicated region
        $region73: #{tpu_custom_call.1} parent=51 // pred_check
          %p553 = pneg %p552
        $region74: #{tpu_custom_call.1} parent=51 // pred_check_branch
          %555 = sbr.rel (%p553) target = $region76
        $region75: #{tpu_custom_call.1} parent=51 // pred_region
          %vm556 = vcmask 7168
          %557 = vst.msk [vmem:[#allocation2] sm:$0xff] %vm556, -1e+30
          %558 = vst.msk [vmem:[#allocation2 + $0x8] sm:$0xff] %vm556, -1e+30
          %559 = vst.msk [vmem:[#allocation2 + $0x10] sm:$0xff] %vm556, -1e+30
          %560 = vst.msk [vmem:[#allocation2 + $0x18] sm:$0xff] %vm556, -1e+30
          %561 = vst.msk [vmem:[#allocation2 + $0x20] sm:$0xff] %vm556, -1e+30
          %562 = vst.msk [vmem:[#allocation2 + $0x28] sm:$0xff] %vm556, -1e+30
          %563 = vst.msk [vmem:[#allocation2 + $0x30] sm:$0xff] %vm556, -1e+30
          %564 = vst.msk [vmem:[#allocation2 + $0x38] sm:$0xff] %vm556, -1e+30
          %565 = vst.msk [vmem:[#allocation2 + $0x40] sm:$0xff] %vm556, -1e+30
          %566 = vst.msk [vmem:[#allocation2 + $0x48] sm:$0xff] %vm556, -1e+30
          %567 = vst.msk [vmem:[#allocation2 + $0x50] sm:$0xff] %vm556, -1e+30
          %568 = vst.msk [vmem:[#allocation2 + $0x58] sm:$0xff] %vm556, -1e+30
          %569 = vst.msk [vmem:[#allocation2 + $0x60] sm:$0xff] %vm556, -1e+30
          %570 = vst.msk [vmem:[#allocation2 + $0x68] sm:$0xff] %vm556, -1e+30
          %571 = vst.msk [vmem:[#allocation2 + $0x70] sm:$0xff] %vm556, -1e+30
          %572 = vst.msk [vmem:[#allocation2 + $0x78] sm:$0xff] %vm556, -1e+30
          %573 = vst.msk [vmem:[#allocation3] sm:$0xff] %vm556, 0.0
          %574 = vst.msk [vmem:[#allocation3 + $0x8] sm:$0xff] %vm556, 0.0
          %575 = vst.msk [vmem:[#allocation3 + $0x10] sm:$0xff] %vm556, 0.0
          %576 = vst.msk [vmem:[#allocation3 + $0x18] sm:$0xff] %vm556, 0.0
          %577 = vst.msk [vmem:[#allocation3 + $0x20] sm:$0xff] %vm556, 0.0
          %578 = vst.msk [vmem:[#allocation3 + $0x28] sm:$0xff] %vm556, 0.0
          %579 = vst.msk [vmem:[#allocation3 + $0x30] sm:$0xff] %vm556, 0.0
          %580 = vst.msk [vmem:[#allocation3 + $0x38] sm:$0xff] %vm556, 0.0
          %581 = vst.msk [vmem:[#allocation3 + $0x40] sm:$0xff] %vm556, 0.0
          %582 = vst.msk [vmem:[#allocation3 + $0x48] sm:$0xff] %vm556, 0.0
          %583 = vst.msk [vmem:[#allocation3 + $0x50] sm:$0xff] %vm556, 0.0
          %584 = vst.msk [vmem:[#allocation3 + $0x58] sm:$0xff] %vm556, 0.0
          %585 = vst.msk [vmem:[#allocation3 + $0x60] sm:$0xff] %vm556, 0.0
          %586 = vst.msk [vmem:[#allocation3 + $0x68] sm:$0xff] %vm556, 0.0
          %587 = vst.msk [vmem:[#allocation3 + $0x70] sm:$0xff] %vm556, 0.0
          %588 = vst.msk [vmem:[#allocation3 + $0x78] sm:$0xff] %vm556, 0.0
          %589 = vst [vmem:[#allocation4] sm:$0xff] 0.0
          %590 = vst [vmem:[#allocation4 + $0x8] sm:$0xff] 0.0
          %591 = vst [vmem:[#allocation4 + $0x10] sm:$0xff] 0.0
          %592 = vst [vmem:[#allocation4 + $0x18] sm:$0xff] 0.0
          %593 = vst [vmem:[#allocation4 + $0x20] sm:$0xff] 0.0
          %594 = vst [vmem:[#allocation4 + $0x28] sm:$0xff] 0.0
          %595 = vst [vmem:[#allocation4 + $0x30] sm:$0xff] 0.0
          %596 = vst [vmem:[#allocation4 + $0x38] sm:$0xff] 0.0
          %597 = vst [vmem:[#allocation4 + $0x40] sm:$0xff] 0.0
          %598 = vst [vmem:[#allocation4 + $0x48] sm:$0xff] 0.0
          %599 = vst [vmem:[#allocation4 + $0x50] sm:$0xff] 0.0
          %600 = vst [vmem:[#allocation4 + $0x58] sm:$0xff] 0.0
          %601 = vst [vmem:[#allocation4 + $0x60] sm:$0xff] 0.0
          %602 = vst [vmem:[#allocation4 + $0x68] sm:$0xff] 0.0
          %603 = vst [vmem:[#allocation4 + $0x70] sm:$0xff] 0.0
          %604 = vst [vmem:[#allocation4 + $0x78] sm:$0xff] 0.0
        $region76: #{tpu_custom_call.1} parent=51 // pred_fallthru
          _
        %v605 = vld [vmem:[%s462] sm:$0xf]
        %v606 = vld [vmem:[%s462 + $0x4] sm:$0xf]
        %v607 = vld [vmem:[%s462 + $0x8] sm:$0xf]
        %v608 = vld [vmem:[%s462 + $0xc] sm:$0xf]
        %v609 = vld [vmem:[%s462 + $0x10] sm:$0xf]
        %v610 = vld [vmem:[%s462 + $0x14] sm:$0xf]
        %v611 = vld [vmem:[%s462 + $0x18] sm:$0xf]
        %v612 = vld [vmem:[%s462 + $0x1c] sm:$0xf]
        %v613 = vld [vmem:[%s462 + $0x20] sm:$0xf]
        %v614 = vld [vmem:[%s462 + $0x24] sm:$0xf]
        %v615 = vld [vmem:[%s462 + $0x28] sm:$0xf]
        %v616 = vld [vmem:[%s462 + $0x2c] sm:$0xf]
        %v617 = vld [vmem:[%s462 + $0x30] sm:$0xf]
        %v618 = vld [vmem:[%s462 + $0x34] sm:$0xf]
        %v619 = vld [vmem:[%s462 + $0x38] sm:$0xf]
        %v620 = vld [vmem:[%s462 + $0x3c] sm:$0xf]
        %v621 = vld [vmem:[%s471] sm:$0xf]
        %v622 = vld [vmem:[%s471 + $0x4] sm:$0xf]
        %v623 = vld [vmem:[%s471 + $0x8] sm:$0xf]
        %v624 = vld [vmem:[%s471 + $0xc] sm:$0xf]
        %v625 = vld [vmem:[%s471 + $0x10] sm:$0xf]
        %v626 = vld [vmem:[%s471 + $0x14] sm:$0xf]
        %v627 = vld [vmem:[%s471 + $0x18] sm:$0xf]
        %v628 = vld [vmem:[%s471 + $0x1c] sm:$0xf]
        %v629 = vld [vmem:[%s471 + $0x20] sm:$0xf]
        %v630 = vld [vmem:[%s471 + $0x24] sm:$0xf]
        %v631 = vld [vmem:[%s471 + $0x28] sm:$0xf]
        %v632 = vld [vmem:[%s471 + $0x2c] sm:$0xf]
        %v633 = vld [vmem:[%s471 + $0x30] sm:$0xf]
        %v634 = vld [vmem:[%s471 + $0x34] sm:$0xf]
        %v635 = vld [vmem:[%s471 + $0x38] sm:$0xf]
        %v636 = vld [vmem:[%s471 + $0x3c] sm:$0xf]
        %v637 = vld [vmem:[%s480] sm:$0xff]
        %v638 = vld [vmem:[%s480 + $0x8] sm:$0xff]
        %v639 = vld [vmem:[%s480 + $0x10] sm:$0xff]
        %v640 = vld [vmem:[%s480 + $0x18] sm:$0xff]
        %v641 = vunpack.c.0.s8 %v637
        %v642 = vunpack.c.1.s8 %v637
        %v643 = vunpack.c.2.s8 %v637
        %v644 = vunpack.c.3.s8 %v637
        %v645 = vunpack.c.0.s8 %v638
        %v646 = vunpack.c.1.s8 %v638
        %v647 = vunpack.c.2.s8 %v638
        %v648 = vunpack.c.3.s8 %v638
        %v649 = vunpack.c.0.s8 %v639
        %v650 = vunpack.c.1.s8 %v639
        %v651 = vunpack.c.2.s8 %v639
        %v652 = vunpack.c.3.s8 %v639
        %v653 = vunpack.c.0.s8 %v640
        %v654 = vunpack.c.1.s8 %v640
        %v655 = vunpack.c.2.s8 %v640
        %v656 = vunpack.c.3.s8 %v640
        %v657 = vcvt.s32.f32 %v641
        %v658 = vcvt.s32.f32 %v642
        %v659 = vcvt.s32.f32 %v643
        %v660 = vcvt.s32.f32 %v644
        %v661 = vcvt.s32.f32 %v645
        %v662 = vcvt.s32.f32 %v646
        %v663 = vcvt.s32.f32 %v647
        %v664 = vcvt.s32.f32 %v648
        %v665 = vcvt.s32.f32 %v649
        %v666 = vcvt.s32.f32 %v650
        %v667 = vcvt.s32.f32 %v651
        %v668 = vcvt.s32.f32 %v652
        %v669 = vcvt.s32.f32 %v653
        %v670 = vcvt.s32.f32 %v654
        %v671 = vcvt.s32.f32 %v655
        %v672 = vcvt.s32.f32 %v656
        %v689 = vunpack.c.l.b16 %v605
        %v690 = vunpack.c.l.b16 %v606
        %v691 = vunpack.c.l.b16 %v607
        %v692 = vunpack.c.l.b16 %v608
        %v693 = vunpack.c.l.b16 %v609
        %v694 = vunpack.c.l.b16 %v610
        %v695 = vunpack.c.l.b16 %v611
        %v696 = vunpack.c.l.b16 %v612
        %v697 = vunpack.c.l.b16 %v613
        %v698 = vunpack.c.l.b16 %v614
        %v699 = vunpack.c.l.b16 %v615
        %v700 = vunpack.c.l.b16 %v616
        %v701 = vunpack.c.l.b16 %v617
        %v702 = vunpack.c.l.b16 %v618
        %v703 = vunpack.c.l.b16 %v619
        %v704 = vunpack.c.l.b16 %v620
        %v705 = vpack.c.b16 %v690, %v689
        %v706 = vpack.c.b16 %v692, %v691
        %v707 = vpack.c.b16 %v694, %v693
        %v708 = vpack.c.b16 %v696, %v695
        %v709 = vpack.c.b16 %v698, %v697
        %v710 = vpack.c.b16 %v700, %v699
        %v711 = vpack.c.b16 %v702, %v701
        %v712 = vpack.c.b16 %v704, %v703
        %v737 = vunpack.c.l.b16 %v621
        %v738 = vunpack.c.l.b16 %v622
        %v739 = vunpack.c.l.b16 %v623
        %v740 = vunpack.c.l.b16 %v624
        %v741 = vunpack.c.l.b16 %v625
        %v742 = vunpack.c.l.b16 %v626
        %v743 = vunpack.c.l.b16 %v627
        %v744 = vunpack.c.l.b16 %v628
        %v745 = vunpack.c.l.b16 %v629
        %v746 = vunpack.c.l.b16 %v630
        %v747 = vunpack.c.l.b16 %v631
        %v748 = vunpack.c.l.b16 %v632
        %v749 = vunpack.c.l.b16 %v633
        %v750 = vunpack.c.l.b16 %v634
        %v751 = vunpack.c.l.b16 %v635
        %v752 = vunpack.c.l.b16 %v636
        %v753 = vpack.c.b16 %v738, %v737
        %v754 = vpack.c.b16 %v740, %v739
        %v755 = vpack.c.b16 %v742, %v741
        %v756 = vpack.c.b16 %v744, %v743
        %v757 = vpack.c.b16 %v746, %v745
        %v758 = vpack.c.b16 %v748, %v747
        %v759 = vpack.c.b16 %v750, %v749
        %v760 = vpack.c.b16 %v752, %v751
        %769 = vmatprep.subr.bf16.mxu0 0
        %770 = vmatpush1.bf16.xpose.msra.mxu0 %v760
        %771 = vmatprep.subr.bf16.mxu0 0
        %772 = vmatpush1.bf16.xpose.msra.mxu0 %v759
        %773 = vmatprep.subr.bf16.mxu0 0
        %774 = vmatpush1.bf16.xpose.msra.mxu0 %v758
        %775 = vmatprep.subr.bf16.mxu0 0
        %776 = vmatpush1.bf16.xpose.msra.mxu0 %v757
        %777 = vmatprep.subr.bf16.mxu0 0
        %778 = vmatpush1.bf16.xpose.msra.mxu0 %v756
        %779 = vmatprep.subr.bf16.mxu0 0
        %780 = vmatpush1.bf16.xpose.msra.mxu0 %v755
        %781 = vmatprep.subr.bf16.mxu0 0
        %782 = vmatpush1.bf16.xpose.msra.mxu0 %v754
        %783 = vmatprep.subr.bf16.mxu0 0
        %784 = vmatpush1.bf16.xpose.msra.mxu0 %v753
        %785 = vmatprep.subr.bf16.mxu0 0
        %786 = vmatpush2.bf16.xpose.msra.mxu0 0
        %787 = vmatprep.subr.bf16.mxu0 0
        %788 = vmatpush2.bf16.xpose.msra.mxu0 0
        %789 = vmatprep.subr.bf16.mxu0 0
        %790 = vmatpush2.bf16.xpose.msra.mxu0 0
        %791 = vmatprep.subr.bf16.mxu0 0
        %792 = vmatpush2.bf16.xpose.msra.mxu0 0
        %793 = vmatprep.subr.bf16.mxu0 0
        %794 = vmatpush2.bf16.xpose.msra.mxu0 0
        %795 = vmatprep.subr.bf16.mxu0 0
        %796 = vmatpush2.bf16.xpose.msra.mxu0 0
        %797 = vmatprep.subr.bf16.mxu0 0
        %798 = vmatpush2.bf16.xpose.msra.mxu0 0
        %799 = vmatprep.subr.bf16.mxu0 0
        %800 = vmatpush2.bf16.xpose.msra.mxu0 0
        %801 = vmatprep.mubr.bf16.mxu0 0
        %802 = vmatmul.mubr.bf16.gmra.mxu0 %v705
        %v803 = vpop.f32.mrf.mxu0
        %v804 = vadd.f32 0.0, %v803
        %v805 = vpop.f32.mrf.mxu0
        %v806 = vpop.f32.mrf.mxu0
        %v807 = vadd.f32 0.0, %v806
        %v808 = vpop.f32.mrf.mxu0
        %809 = vmatprep.mubr.bf16.mxu0 0
        %810 = vmatmul.mubr.bf16.gmra.mxu0 %v706
        %v811 = vpop.f32.mrf.mxu0
        %v812 = vadd.f32 0.0, %v811
        %v813 = vpop.f32.mrf.mxu0
        %v814 = vpop.f32.mrf.mxu0
        %v815 = vadd.f32 0.0, %v814
        %v816 = vpop.f32.mrf.mxu0
        %817 = vmatprep.mubr.bf16.mxu0 0
        %818 = vmatmul.mubr.bf16.gmra.mxu0 %v707
        %v819 = vpop.f32.mrf.mxu0
        %v820 = vadd.f32 0.0, %v819
        %v821 = vpop.f32.mrf.mxu0
        %v822 = vpop.f32.mrf.mxu0
        %v823 = vadd.f32 0.0, %v822
        %v824 = vpop.f32.mrf.mxu0
        %825 = vmatprep.mubr.bf16.mxu0 0
        %826 = vmatmul.mubr.bf16.gmra.mxu0 %v708
        %v827 = vpop.f32.mrf.mxu0
        %v828 = vadd.f32 0.0, %v827
        %v829 = vpop.f32.mrf.mxu0
        %v830 = vpop.f32.mrf.mxu0
        %v831 = vadd.f32 0.0, %v830
        %v832 = vpop.f32.mrf.mxu0
        %833 = vmatprep.mubr.bf16.mxu0 0
        %834 = vmatmul.mubr.bf16.gmra.mxu0 %v709
        %v835 = vpop.f32.mrf.mxu0
        %v836 = vadd.f32 0.0, %v835
        %v837 = vpop.f32.mrf.mxu0
        %v838 = vpop.f32.mrf.mxu0
        %v839 = vadd.f32 0.0, %v838
        %v840 = vpop.f32.mrf.mxu0
        %841 = vmatprep.mubr.bf16.mxu0 0
        %842 = vmatmul.mubr.bf16.gmra.mxu0 %v710
        %v843 = vpop.f32.mrf.mxu0
        %v844 = vadd.f32 0.0, %v843
        %v845 = vpop.f32.mrf.mxu0
        %v846 = vpop.f32.mrf.mxu0
        %v847 = vadd.f32 0.0, %v846
        %v848 = vpop.f32.mrf.mxu0
        %849 = vmatprep.mubr.bf16.mxu0 0
        %850 = vmatmul.mubr.bf16.gmra.mxu0 %v711
        %v851 = vpop.f32.mrf.mxu0
        %v852 = vadd.f32 0.0, %v851
        %v853 = vpop.f32.mrf.mxu0
        %v854 = vpop.f32.mrf.mxu0
        %v855 = vadd.f32 0.0, %v854
        %v856 = vpop.f32.mrf.mxu0
        %857 = vmatprep.mubr.bf16.mxu0 0
        %858 = vmatmul.mubr.bf16.gmra.mxu0 %v712
        %v859 = vpop.f32.mrf.mxu0
        %v860 = vadd.f32 0.0, %v859
        %v861 = vpop.f32.mrf.mxu0
        %v862 = vpop.f32.mrf.mxu0
        %v863 = vadd.f32 0.0, %v862
        %v864 = vpop.f32.mrf.mxu0
        %865 = vdwg.mxu0
        %vm866 = vcmp.ne.f32.partialorder %v657, 0.0
        %vm867 = vcmp.ne.f32.partialorder %v658, 0.0
        %vm868 = vcmp.ne.f32.partialorder %v659, 0.0
        %vm869 = vcmp.ne.f32.partialorder %v660, 0.0
        %vm870 = vcmp.ne.f32.partialorder %v661, 0.0
        %vm871 = vcmp.ne.f32.partialorder %v662, 0.0
        %vm872 = vcmp.ne.f32.partialorder %v663, 0.0
        %vm873 = vcmp.ne.f32.partialorder %v664, 0.0
        %vm874 = vcmp.ne.f32.partialorder %v665, 0.0
        %vm875 = vcmp.ne.f32.partialorder %v666, 0.0
        %vm876 = vcmp.ne.f32.partialorder %v667, 0.0
        %vm877 = vcmp.ne.f32.partialorder %v668, 0.0
        %vm878 = vcmp.ne.f32.partialorder %v669, 0.0
        %vm879 = vcmp.ne.f32.partialorder %v670, 0.0
        %vm880 = vcmp.ne.f32.partialorder %v671, 0.0
        %vm881 = vcmp.ne.f32.partialorder %v672, 0.0
        %v882 = vsel %vm866, %v804, -1e+30
        %v883 = vsel %vm867, %v807, -1e+30
        %v884 = vsel %vm868, %v812, -1e+30
        %v885 = vsel %vm869, %v815, -1e+30
        %v886 = vsel %vm870, %v820, -1e+30
        %v887 = vsel %vm871, %v823, -1e+30
        %v888 = vsel %vm872, %v828, -1e+30
        %v889 = vsel %vm873, %v831, -1e+30
        %v890 = vsel %vm874, %v836, -1e+30
        %v891 = vsel %vm875, %v839, -1e+30
        %v892 = vsel %vm876, %v844, -1e+30
        %v893 = vsel %vm877, %v847, -1e+30
        %v894 = vsel %vm878, %v852, -1e+30
        %v895 = vsel %vm879, %v855, -1e+30
        %v896 = vsel %vm880, %v860, -1e+30
        %v897 = vsel %vm881, %v863, -1e+30
        %v898 = vld [vmem:[#allocation2] sm:$0xff]
        %v899 = vld [vmem:[#allocation2 + $0x8] sm:$0xff]
        %v900 = vld [vmem:[#allocation2 + $0x10] sm:$0xff]
        %v901 = vld [vmem:[#allocation2 + $0x18] sm:$0xff]
        %v902 = vld [vmem:[#allocation2 + $0x20] sm:$0xff]
        %v903 = vld [vmem:[#allocation2 + $0x28] sm:$0xff]
        %v904 = vld [vmem:[#allocation2 + $0x30] sm:$0xff]
        %v905 = vld [vmem:[#allocation2 + $0x38] sm:$0xff]
        %v906 = vld [vmem:[#allocation2 + $0x40] sm:$0xff]
        %v907 = vld [vmem:[#allocation2 + $0x48] sm:$0xff]
        %v908 = vld [vmem:[#allocation2 + $0x50] sm:$0xff]
        %v909 = vld [vmem:[#allocation2 + $0x58] sm:$0xff]
        %v910 = vld [vmem:[#allocation2 + $0x60] sm:$0xff]
        %v911 = vld [vmem:[#allocation2 + $0x68] sm:$0xff]
        %v912 = vld [vmem:[#allocation2 + $0x70] sm:$0xff]
        %v913 = vld [vmem:[#allocation2 + $0x78] sm:$0xff]
        %914 = vmax.xlane.f32.xlu0 %v882
        %v915 = vpop.xlane.xlu0 %914
        %916 = vmax.xlane.f32.xlu0 %v883
        %v917 = vpop.xlane.xlu0 %916
        %918 = vmax.xlane.f32.xlu0 %v884
        %v919 = vpop.xlane.xlu0 %918
        %920 = vmax.xlane.f32.xlu0 %v885
        %v921 = vpop.xlane.xlu0 %920
        %922 = vmax.xlane.f32.xlu0 %v886
        %v923 = vpop.xlane.xlu0 %922
        %924 = vmax.xlane.f32.xlu0 %v887
        %v925 = vpop.xlane.xlu0 %924
        %926 = vmax.xlane.f32.xlu0 %v888
        %v927 = vpop.xlane.xlu0 %926
        %928 = vmax.xlane.f32.xlu0 %v889
        %v929 = vpop.xlane.xlu0 %928
        %930 = vmax.xlane.f32.xlu0 %v890
        %v931 = vpop.xlane.xlu0 %930
        %932 = vmax.xlane.f32.xlu0 %v891
        %v933 = vpop.xlane.xlu0 %932
        %934 = vmax.xlane.f32.xlu0 %v892
        %v935 = vpop.xlane.xlu0 %934
        %936 = vmax.xlane.f32.xlu0 %v893
        %v937 = vpop.xlane.xlu0 %936
        %938 = vmax.xlane.f32.xlu0 %v894
        %v939 = vpop.xlane.xlu0 %938
        %940 = vmax.xlane.f32.xlu0 %v895
        %v941 = vpop.xlane.xlu0 %940
        %942 = vmax.xlane.f32.xlu0 %v896
        %v943 = vpop.xlane.xlu0 %942
        %944 = vmax.xlane.f32.xlu0 %v897
        %v945 = vpop.xlane.xlu0 %944
        %v946 = vmax.f32 %v898, %v915
        %v947 = vmax.f32 %v899, %v917
        %v948 = vmax.f32 %v900, %v919
        %v949 = vmax.f32 %v901, %v921
        %v950 = vmax.f32 %v902, %v923
        %v951 = vmax.f32 %v903, %v925
        %v952 = vmax.f32 %v904, %v927
        %v953 = vmax.f32 %v905, %v929
        %v954 = vmax.f32 %v906, %v931
        %v955 = vmax.f32 %v907, %v933
        %v956 = vmax.f32 %v908, %v935
        %v957 = vmax.f32 %v909, %v937
        %v958 = vmax.f32 %v910, %v939
        %v959 = vmax.f32 %v911, %v941
        %v960 = vmax.f32 %v912, %v943
        %v961 = vmax.f32 %v913, %v945
        %v962 = vsub.f32 %v898, %v946
        %v963 = vsub.f32 %v899, %v947
        %v964 = vsub.f32 %v900, %v948
        %v965 = vsub.f32 %v901, %v949
        %v966 = vsub.f32 %v902, %v950
        %v967 = vsub.f32 %v903, %v951
        %v968 = vsub.f32 %v904, %v952
        %v969 = vsub.f32 %v905, %v953
        %v970 = vsub.f32 %v906, %v954
        %v971 = vsub.f32 %v907, %v955
        %v972 = vsub.f32 %v908, %v956
        %v973 = vsub.f32 %v909, %v957
        %v974 = vsub.f32 %v910, %v958
        %v975 = vsub.f32 %v911, %v959
        %v976 = vsub.f32 %v912, %v960
        %v977 = vsub.f32 %v913, %v961
        %v978 = vmul.f32 %v962, 1.442695
        %v979 = vpow.pop %v978
        %v980 = vmul.f32 %v963, 1.442695
        %v981 = vpow.pop %v980
        %v982 = vmul.f32 %v964, 1.442695
        %v983 = vpow.pop %v982
        %v984 = vmul.f32 %v965, 1.442695
        %v985 = vpow.pop %v984
        %v986 = vmul.f32 %v966, 1.442695
        %v987 = vpow.pop %v986
        %v988 = vmul.f32 %v967, 1.442695
        %v989 = vpow.pop %v988
        %v990 = vmul.f32 %v968, 1.442695
        %v991 = vpow.pop %v990
        %v992 = vmul.f32 %v969, 1.442695
        %v993 = vpow.pop %v992
        %v994 = vmul.f32 %v970, 1.442695
        %v995 = vpow.pop %v994
        %v996 = vmul.f32 %v971, 1.442695
        %v997 = vpow.pop %v996
        %v998 = vmul.f32 %v972, 1.442695
        %v999 = vpow.pop %v998
        %v1000 = vmul.f32 %v973, 1.442695
        %v1001 = vpow.pop %v1000
        %v1002 = vmul.f32 %v974, 1.442695
        %v1003 = vpow.pop %v1002
        %v1004 = vmul.f32 %v975, 1.442695
        %v1005 = vpow.pop %v1004
        %v1006 = vmul.f32 %v976, 1.442695
        %v1007 = vpow.pop %v1006
        %v1008 = vmul.f32 %v977, 1.442695
        %v1009 = vpow.pop %v1008
        %1011 = vset.pattern.permute.xlu0 0
        %1012 = vperm.xlu0 %1011, %v946
        %v1013 = vpop.permute.xlu0 %1012
        %1016 = vset.pattern.permute.xlu0 0
        %1017 = vperm.xlu0 %1016, %v947
        %v1018 = vpop.permute.xlu0 %1017
        %1021 = vset.pattern.permute.xlu0 0
        %1022 = vperm.xlu0 %1021, %v948
        %v1023 = vpop.permute.xlu0 %1022
        %1026 = vset.pattern.permute.xlu0 0
        %1027 = vperm.xlu0 %1026, %v949
        %v1028 = vpop.permute.xlu0 %1027
        %1031 = vset.pattern.permute.xlu0 0
        %1032 = vperm.xlu0 %1031, %v950
        %v1033 = vpop.permute.xlu0 %1032
        %1036 = vset.pattern.permute.xlu0 0
        %1037 = vperm.xlu0 %1036, %v951
        %v1038 = vpop.permute.xlu0 %1037
        %1041 = vset.pattern.permute.xlu0 0
        %1042 = vperm.xlu0 %1041, %v952
        %v1043 = vpop.permute.xlu0 %1042
        %1046 = vset.pattern.permute.xlu0 0
        %1047 = vperm.xlu0 %1046, %v953
        %v1048 = vpop.permute.xlu0 %1047
        %1051 = vset.pattern.permute.xlu0 0
        %1052 = vperm.xlu0 %1051, %v954
        %v1053 = vpop.permute.xlu0 %1052
        %1056 = vset.pattern.permute.xlu0 0
        %1057 = vperm.xlu0 %1056, %v955
        %v1058 = vpop.permute.xlu0 %1057
        %1061 = vset.pattern.permute.xlu0 0
        %1062 = vperm.xlu0 %1061, %v956
        %v1063 = vpop.permute.xlu0 %1062
        %1066 = vset.pattern.permute.xlu0 0
        %1067 = vperm.xlu0 %1066, %v957
        %v1068 = vpop.permute.xlu0 %1067
        %1071 = vset.pattern.permute.xlu0 0
        %1072 = vperm.xlu0 %1071, %v958
        %v1073 = vpop.permute.xlu0 %1072
        %1076 = vset.pattern.permute.xlu0 0
        %1077 = vperm.xlu0 %1076, %v959
        %v1078 = vpop.permute.xlu0 %1077
        %1081 = vset.pattern.permute.xlu0 0
        %1082 = vperm.xlu0 %1081, %v960
        %v1083 = vpop.permute.xlu0 %1082
        %1086 = vset.pattern.permute.xlu0 0
        %1087 = vperm.xlu0 %1086, %v961
        %v1088 = vpop.permute.xlu0 %1087
        %v1090 = vsub.f32 %v882, %v1013
        %v1091 = vsub.f32 %v883, %v1018
        %v1092 = vsub.f32 %v884, %v1023
        %v1093 = vsub.f32 %v885, %v1028
        %v1094 = vsub.f32 %v886, %v1033
        %v1095 = vsub.f32 %v887, %v1038
        %v1096 = vsub.f32 %v888, %v1043
        %v1097 = vsub.f32 %v889, %v1048
        %v1098 = vsub.f32 %v890, %v1053
        %v1099 = vsub.f32 %v891, %v1058
        %v1100 = vsub.f32 %v892, %v1063
        %v1101 = vsub.f32 %v893, %v1068
        %v1102 = vsub.f32 %v894, %v1073
        %v1103 = vsub.f32 %v895, %v1078
        %v1104 = vsub.f32 %v896, %v1083
        %v1105 = vsub.f32 %v897, %v1088
        %v1106 = vmul.f32 %v1090, 1.442695
        %v1107 = vpow.pop %v1106
        %v1108 = vmul.f32 %v1091, 1.442695
        %v1109 = vpow.pop %v1108
        %v1110 = vmul.f32 %v1092, 1.442695
        %v1111 = vpow.pop %v1110
        %v1112 = vmul.f32 %v1093, 1.442695
        %v1113 = vpow.pop %v1112
        %v1114 = vmul.f32 %v1094, 1.442695
        %v1115 = vpow.pop %v1114
        %v1116 = vmul.f32 %v1095, 1.442695
        %v1117 = vpow.pop %v1116
        %v1118 = vmul.f32 %v1096, 1.442695
        %v1119 = vpow.pop %v1118
        %v1120 = vmul.f32 %v1097, 1.442695
        %v1121 = vpow.pop %v1120
        %v1122 = vmul.f32 %v1098, 1.442695
        %v1123 = vpow.pop %v1122
        %v1124 = vmul.f32 %v1099, 1.442695
        %v1125 = vpow.pop %v1124
        %v1126 = vmul.f32 %v1100, 1.442695
        %v1127 = vpow.pop %v1126
        %v1128 = vmul.f32 %v1101, 1.442695
        %v1129 = vpow.pop %v1128
        %v1130 = vmul.f32 %v1102, 1.442695
        %v1131 = vpow.pop %v1130
        %v1132 = vmul.f32 %v1103, 1.442695
        %v1133 = vpow.pop %v1132
        %v1134 = vmul.f32 %v1104, 1.442695
        %v1135 = vpow.pop %v1134
        %v1136 = vmul.f32 %v1105, 1.442695
        %v1137 = vpow.pop %v1136
        %v1138 = vld [vmem:[#allocation3] sm:$0xff]
        %v1139 = vld [vmem:[#allocation3 + $0x8] sm:$0xff]
        %v1140 = vld [vmem:[#allocation3 + $0x10] sm:$0xff]
        %v1141 = vld [vmem:[#allocation3 + $0x18] sm:$0xff]
        %v1142 = vld [vmem:[#allocation3 + $0x20] sm:$0xff]
        %v1143 = vld [vmem:[#allocation3 + $0x28] sm:$0xff]
        %v1144 = vld [vmem:[#allocation3 + $0x30] sm:$0xff]
        %v1145 = vld [vmem:[#allocation3 + $0x38] sm:$0xff]
        %v1146 = vld [vmem:[#allocation3 + $0x40] sm:$0xff]
        %v1147 = vld [vmem:[#allocation3 + $0x48] sm:$0xff]
        %v1148 = vld [vmem:[#allocation3 + $0x50] sm:$0xff]
        %v1149 = vld [vmem:[#allocation3 + $0x58] sm:$0xff]
        %v1150 = vld [vmem:[#allocation3 + $0x60] sm:$0xff]
        %v1151 = vld [vmem:[#allocation3 + $0x68] sm:$0xff]
        %v1152 = vld [vmem:[#allocation3 + $0x70] sm:$0xff]
        %v1153 = vld [vmem:[#allocation3 + $0x78] sm:$0xff]
        %v1154 = vmul.f32 %v979, %v1138
        %v1155 = vmul.f32 %v981, %v1139
        %v1156 = vmul.f32 %v983, %v1140
        %v1157 = vmul.f32 %v985, %v1141
        %v1158 = vmul.f32 %v987, %v1142
        %v1159 = vmul.f32 %v989, %v1143
        %v1160 = vmul.f32 %v991, %v1144
        %v1161 = vmul.f32 %v993, %v1145
        %v1162 = vmul.f32 %v995, %v1146
        %v1163 = vmul.f32 %v997, %v1147
        %v1164 = vmul.f32 %v999, %v1148
        %v1165 = vmul.f32 %v1001, %v1149
        %v1166 = vmul.f32 %v1003, %v1150
        %v1167 = vmul.f32 %v1005, %v1151
        %v1168 = vmul.f32 %v1007, %v1152
        %v1169 = vmul.f32 %v1009, %v1153
        %1170 = vadd.xlane.f32.xlu0 %v1107
        %v1171 = vpop.xlane.xlu0 %1170
        %1172 = vadd.xlane.f32.xlu0 %v1109
        %v1173 = vpop.xlane.xlu0 %1172
        %1174 = vadd.xlane.f32.xlu0 %v1111
        %v1175 = vpop.xlane.xlu0 %1174
        %1176 = vadd.xlane.f32.xlu0 %v1113
        %v1177 = vpop.xlane.xlu0 %1176
        %1178 = vadd.xlane.f32.xlu0 %v1115
        %v1179 = vpop.xlane.xlu0 %1178
        %1180 = vadd.xlane.f32.xlu0 %v1117
        %v1181 = vpop.xlane.xlu0 %1180
        %1182 = vadd.xlane.f32.xlu0 %v1119
        %v1183 = vpop.xlane.xlu0 %1182
        %1184 = vadd.xlane.f32.xlu0 %v1121
        %v1185 = vpop.xlane.xlu0 %1184
        %1186 = vadd.xlane.f32.xlu0 %v1123
        %v1187 = vpop.xlane.xlu0 %1186
        %1188 = vadd.xlane.f32.xlu0 %v1125
        %v1189 = vpop.xlane.xlu0 %1188
        %1190 = vadd.xlane.f32.xlu0 %v1127
        %v1191 = vpop.xlane.xlu0 %1190
        %1192 = vadd.xlane.f32.xlu0 %v1129
        %v1193 = vpop.xlane.xlu0 %1192
        %1194 = vadd.xlane.f32.xlu0 %v1131
        %v1195 = vpop.xlane.xlu0 %1194
        %1196 = vadd.xlane.f32.xlu0 %v1133
        %v1197 = vpop.xlane.xlu0 %1196
        %1198 = vadd.xlane.f32.xlu0 %v1135
        %v1199 = vpop.xlane.xlu0 %1198
        %1200 = vadd.xlane.f32.xlu0 %v1137
        %v1201 = vpop.xlane.xlu0 %1200
        %v1202 = vadd.f32 %v1154, %v1171
        %v1203 = vadd.f32 %v1155, %v1173
        %v1204 = vadd.f32 %v1156, %v1175
        %v1205 = vadd.f32 %v1157, %v1177
        %v1206 = vadd.f32 %v1158, %v1179
        %v1207 = vadd.f32 %v1159, %v1181
        %v1208 = vadd.f32 %v1160, %v1183
        %v1209 = vadd.f32 %v1161, %v1185
        %v1210 = vadd.f32 %v1162, %v1187
        %v1211 = vadd.f32 %v1163, %v1189
        %v1212 = vadd.f32 %v1164, %v1191
        %v1213 = vadd.f32 %v1165, %v1193
        %v1214 = vadd.f32 %v1166, %v1195
        %v1215 = vadd.f32 %v1167, %v1197
        %v1216 = vadd.f32 %v1168, %v1199
        %v1217 = vadd.f32 %v1169, %v1201
        %vm1218 = vcmask 7168
        %1219 = vst.msk [vmem:[#allocation3] sm:$0xff] %vm1218, %v1202
        %1220 = vst.msk [vmem:[#allocation3 + $0x8] sm:$0xff] %vm1218, %v1203
        %1221 = vst.msk [vmem:[#allocation3 + $0x10] sm:$0xff] %vm1218, %v1204
        %1222 = vst.msk [vmem:[#allocation3 + $0x18] sm:$0xff] %vm1218, %v1205
        %1223 = vst.msk [vmem:[#allocation3 + $0x20] sm:$0xff] %vm1218, %v1206
        %1224 = vst.msk [vmem:[#allocation3 + $0x28] sm:$0xff] %vm1218, %v1207
        %1225 = vst.msk [vmem:[#allocation3 + $0x30] sm:$0xff] %vm1218, %v1208
        %1226 = vst.msk [vmem:[#allocation3 + $0x38] sm:$0xff] %vm1218, %v1209
        %1227 = vst.msk [vmem:[#allocation3 + $0x40] sm:$0xff] %vm1218, %v1210
        %1228 = vst.msk [vmem:[#allocation3 + $0x48] sm:$0xff] %vm1218, %v1211
        %1229 = vst.msk [vmem:[#allocation3 + $0x50] sm:$0xff] %vm1218, %v1212
        %1230 = vst.msk [vmem:[#allocation3 + $0x58] sm:$0xff] %vm1218, %v1213
        %1231 = vst.msk [vmem:[#allocation3 + $0x60] sm:$0xff] %vm1218, %v1214
        %1232 = vst.msk [vmem:[#allocation3 + $0x68] sm:$0xff] %vm1218, %v1215
        %1233 = vst.msk [vmem:[#allocation3 + $0x70] sm:$0xff] %vm1218, %v1216
        %1234 = vst.msk [vmem:[#allocation3 + $0x78] sm:$0xff] %vm1218, %v1217
        %v1235 = vld [vmem:[#allocation4] sm:$0xff]
        %v1236 = vld [vmem:[#allocation4 + $0x8] sm:$0xff]
        %v1237 = vld [vmem:[#allocation4 + $0x10] sm:$0xff]
        %v1238 = vld [vmem:[#allocation4 + $0x18] sm:$0xff]
        %v1239 = vld [vmem:[#allocation4 + $0x20] sm:$0xff]
        %v1240 = vld [vmem:[#allocation4 + $0x28] sm:$0xff]
        %v1241 = vld [vmem:[#allocation4 + $0x30] sm:$0xff]
        %v1242 = vld [vmem:[#allocation4 + $0x38] sm:$0xff]
        %v1243 = vld [vmem:[#allocation4 + $0x40] sm:$0xff]
        %v1244 = vld [vmem:[#allocation4 + $0x48] sm:$0xff]
        %v1245 = vld [vmem:[#allocation4 + $0x50] sm:$0xff]
        %v1246 = vld [vmem:[#allocation4 + $0x58] sm:$0xff]
        %v1247 = vld [vmem:[#allocation4 + $0x60] sm:$0xff]
        %v1248 = vld [vmem:[#allocation4 + $0x68] sm:$0xff]
        %v1249 = vld [vmem:[#allocation4 + $0x70] sm:$0xff]
        %v1250 = vld [vmem:[#allocation4 + $0x78] sm:$0xff]
        %1252 = vset.pattern.permute.xlu0 0
        %1253 = vperm.xlu0 %1252, %v979
        %v1254 = vpop.permute.xlu0 %1253
        %1257 = vset.pattern.permute.xlu0 0
        %1258 = vperm.xlu0 %1257, %v981
        %v1259 = vpop.permute.xlu0 %1258
        %1262 = vset.pattern.permute.xlu0 0
        %1263 = vperm.xlu0 %1262, %v983
        %v1264 = vpop.permute.xlu0 %1263
        %1267 = vset.pattern.permute.xlu0 0
        %1268 = vperm.xlu0 %1267, %v985
        %v1269 = vpop.permute.xlu0 %1268
        %1272 = vset.pattern.permute.xlu0 0
        %1273 = vperm.xlu0 %1272, %v987
        %v1274 = vpop.permute.xlu0 %1273
        %1277 = vset.pattern.permute.xlu0 0
        %1278 = vperm.xlu0 %1277, %v989
        %v1279 = vpop.permute.xlu0 %1278
        %1282 = vset.pattern.permute.xlu0 0
        %1283 = vperm.xlu0 %1282, %v991
        %v1284 = vpop.permute.xlu0 %1283
        %1287 = vset.pattern.permute.xlu0 0
        %1288 = vperm.xlu0 %1287, %v993
        %v1289 = vpop.permute.xlu0 %1288
        %1292 = vset.pattern.permute.xlu0 0
        %1293 = vperm.xlu0 %1292, %v995
        %v1294 = vpop.permute.xlu0 %1293
        %1297 = vset.pattern.permute.xlu0 0
        %1298 = vperm.xlu0 %1297, %v997
        %v1299 = vpop.permute.xlu0 %1298
        %1302 = vset.pattern.permute.xlu0 0
        %1303 = vperm.xlu0 %1302, %v999
        %v1304 = vpop.permute.xlu0 %1303
        %1307 = vset.pattern.permute.xlu0 0
        %1308 = vperm.xlu0 %1307, %v1001
        %v1309 = vpop.permute.xlu0 %1308
        %1312 = vset.pattern.permute.xlu0 0
        %1313 = vperm.xlu0 %1312, %v1003
        %v1314 = vpop.permute.xlu0 %1313
        %1317 = vset.pattern.permute.xlu0 0
        %1318 = vperm.xlu0 %1317, %v1005
        %v1319 = vpop.permute.xlu0 %1318
        %1322 = vset.pattern.permute.xlu0 0
        %1323 = vperm.xlu0 %1322, %v1007
        %v1324 = vpop.permute.xlu0 %1323
        %1327 = vset.pattern.permute.xlu0 0
        %1328 = vperm.xlu0 %1327, %v1009
        %v1329 = vpop.permute.xlu0 %1328
        %v1331 = vmul.f32 %v1254, %v1235
        %v1332 = vmul.f32 %v1259, %v1236
        %v1333 = vmul.f32 %v1264, %v1237
        %v1334 = vmul.f32 %v1269, %v1238
        %v1335 = vmul.f32 %v1274, %v1239
        %v1336 = vmul.f32 %v1279, %v1240
        %v1337 = vmul.f32 %v1284, %v1241
        %v1338 = vmul.f32 %v1289, %v1242
        %v1339 = vmul.f32 %v1294, %v1243
        %v1340 = vmul.f32 %v1299, %v1244
        %v1341 = vmul.f32 %v1304, %v1245
        %v1342 = vmul.f32 %v1309, %v1246
        %v1343 = vmul.f32 %v1314, %v1247
        %v1344 = vmul.f32 %v1319, %v1248
        %v1345 = vmul.f32 %v1324, %v1249
        %v1346 = vmul.f32 %v1329, %v1250
        %v1347 = vpack.c.bf16 %v1109, %v1107
        %v1348 = vpack.c.bf16 %v1113, %v1111
        %v1349 = vpack.c.bf16 %v1117, %v1115
        %v1350 = vpack.c.bf16 %v1121, %v1119
        %v1351 = vpack.c.bf16 %v1125, %v1123
        %v1352 = vpack.c.bf16 %v1129, %v1127
        %v1353 = vpack.c.bf16 %v1133, %v1131
        %v1354 = vpack.c.bf16 %v1137, %v1135
        %1355 = vmatprep.subr.bf16.mxu0 0
        %1356 = vmatpush1.bf16.msra.mxu0 %v760
        %1357 = vmatprep.subr.bf16.mxu0 0
        %1358 = vmatpush1.bf16.msra.mxu0 %v759
        %1359 = vmatprep.subr.bf16.mxu0 0
        %1360 = vmatpush1.bf16.msra.mxu0 %v758
        %1361 = vmatprep.subr.bf16.mxu0 0
        %1362 = vmatpush1.bf16.msra.mxu0 %v757
        %1363 = vmatprep.subr.bf16.mxu0 0
        %1364 = vmatpush1.bf16.msra.mxu0 %v756
        %1365 = vmatprep.subr.bf16.mxu0 0
        %1366 = vmatpush1.bf16.msra.mxu0 %v755
        %1367 = vmatprep.subr.bf16.mxu0 0
        %1368 = vmatpush1.bf16.msra.mxu0 %v754
        %1369 = vmatprep.subr.bf16.mxu0 0
        %1370 = vmatpush1.bf16.msra.mxu0 %v753
        %1371 = vmatprep.subr.bf16.mxu0 0
        %1372 = vmatpush2.bf16.msra.mxu0 0
        %1373 = vmatprep.subr.bf16.mxu0 0
        %1374 = vmatpush2.bf16.msra.mxu0 0
        %1375 = vmatprep.subr.bf16.mxu0 0
        %1376 = vmatpush2.bf16.msra.mxu0 0
        %1377 = vmatprep.subr.bf16.mxu0 0
        %1378 = vmatpush2.bf16.msra.mxu0 0
        %1379 = vmatprep.subr.bf16.mxu0 0
        %1380 = vmatpush2.bf16.msra.mxu0 0
        %1381 = vmatprep.subr.bf16.mxu0 0
        %1382 = vmatpush2.bf16.msra.mxu0 0
        %1383 = vmatprep.subr.bf16.mxu0 0
        %1384 = vmatpush2.bf16.msra.mxu0 0
        %1385 = vmatprep.subr.bf16.mxu0 0
        %1386 = vmatpush2.bf16.msra.mxu0 0
        %1387 = vmatprep.mubr.bf16.mxu0 0
        %1388 = vmatmul.mubr.bf16.gmra.mxu0 %v1347
        %v1389 = vpop.f32.mrf.mxu0
        %v1390 = vadd.f32 0.0, %v1389
        %v1391 = vpop.f32.mrf.mxu0
        %v1392 = vpop.f32.mrf.mxu0
        %v1393 = vadd.f32 0.0, %v1392
        %v1394 = vpop.f32.mrf.mxu0
        %1395 = vmatprep.mubr.bf16.mxu0 0
        %1396 = vmatmul.mubr.bf16.gmra.mxu0 %v1348
        %v1397 = vpop.f32.mrf.mxu0
        %v1398 = vadd.f32 0.0, %v1397
        %v1399 = vpop.f32.mrf.mxu0
        %v1400 = vpop.f32.mrf.mxu0
        %v1401 = vadd.f32 0.0, %v1400
        %v1402 = vpop.f32.mrf.mxu0
        %1403 = vmatprep.mubr.bf16.mxu0 0
        %1404 = vmatmul.mubr.bf16.gmra.mxu0 %v1349
        %v1405 = vpop.f32.mrf.mxu0
        %v1406 = vadd.f32 0.0, %v1405
        %v1407 = vpop.f32.mrf.mxu0
        %v1408 = vpop.f32.mrf.mxu0
        %v1409 = vadd.f32 0.0, %v1408
        %v1410 = vpop.f32.mrf.mxu0
        %1411 = vmatprep.mubr.bf16.mxu0 0
        %1412 = vmatmul.mubr.bf16.gmra.mxu0 %v1350
        %v1413 = vpop.f32.mrf.mxu0
        %v1414 = vadd.f32 0.0, %v1413
        %v1415 = vpop.f32.mrf.mxu0
        %v1416 = vpop.f32.mrf.mxu0
        %v1417 = vadd.f32 0.0, %v1416
        %v1418 = vpop.f32.mrf.mxu0
        %1419 = vmatprep.mubr.bf16.mxu0 0
        %1420 = vmatmul.mubr.bf16.gmra.mxu0 %v1351
        %v1421 = vpop.f32.mrf.mxu0
        %v1422 = vadd.f32 0.0, %v1421
        %v1423 = vpop.f32.mrf.mxu0
        %v1424 = vpop.f32.mrf.mxu0
        %v1425 = vadd.f32 0.0, %v1424
        %v1426 = vpop.f32.mrf.mxu0
        %1427 = vmatprep.mubr.bf16.mxu0 0
        %1428 = vmatmul.mubr.bf16.gmra.mxu0 %v1352
        %v1429 = vpop.f32.mrf.mxu0
        %v1430 = vadd.f32 0.0, %v1429
        %v1431 = vpop.f32.mrf.mxu0
        %v1432 = vpop.f32.mrf.mxu0
        %v1433 = vadd.f32 0.0, %v1432
        %v1434 = vpop.f32.mrf.mxu0
        %1435 = vmatprep.mubr.bf16.mxu0 0
        %1436 = vmatmul.mubr.bf16.gmra.mxu0 %v1353
        %v1437 = vpop.f32.mrf.mxu0
        %v1438 = vadd.f32 0.0, %v1437
        %v1439 = vpop.f32.mrf.mxu0
        %v1440 = vpop.f32.mrf.mxu0
        %v1441 = vadd.f32 0.0, %v1440
        %v1442 = vpop.f32.mrf.mxu0
        %1443 = vmatprep.mubr.bf16.mxu0 0
        %1444 = vmatmul.mubr.bf16.gmra.mxu0 %v1354
        %v1445 = vpop.f32.mrf.mxu0
        %v1446 = vadd.f32 0.0, %v1445
        %v1447 = vpop.f32.mrf.mxu0
        %v1448 = vpop.f32.mrf.mxu0
        %v1449 = vadd.f32 0.0, %v1448
        %v1450 = vpop.f32.mrf.mxu0
        %1451 = vdwg.mxu0
        %v1452 = vadd.f32 %v1331, %v1390
        %v1453 = vadd.f32 %v1332, %v1393
        %v1454 = vadd.f32 %v1333, %v1398
        %v1455 = vadd.f32 %v1334, %v1401
        %v1456 = vadd.f32 %v1335, %v1406
        %v1457 = vadd.f32 %v1336, %v1409
        %v1458 = vadd.f32 %v1337, %v1414
        %v1459 = vadd.f32 %v1338, %v1417
        %v1460 = vadd.f32 %v1339, %v1422
        %v1461 = vadd.f32 %v1340, %v1425
        %v1462 = vadd.f32 %v1341, %v1430
        %v1463 = vadd.f32 %v1342, %v1433
        %v1464 = vadd.f32 %v1343, %v1438
        %v1465 = vadd.f32 %v1344, %v1441
        %v1466 = vadd.f32 %v1345, %v1446
        %v1467 = vadd.f32 %v1346, %v1449
        %1468 = vst [vmem:[#allocation4] sm:$0xff] %v1452
        %1469 = vst [vmem:[#allocation4 + $0x8] sm:$0xff] %v1453
        %1470 = vst [vmem:[#allocation4 + $0x10] sm:$0xff] %v1454
        %1471 = vst [vmem:[#allocation4 + $0x18] sm:$0xff] %v1455
        %1472 = vst [vmem:[#allocation4 + $0x20] sm:$0xff] %v1456
        %1473 = vst [vmem:[#allocation4 + $0x28] sm:$0xff] %v1457
        %1474 = vst [vmem:[#allocation4 + $0x30] sm:$0xff] %v1458
        %1475 = vst [vmem:[#allocation4 + $0x38] sm:$0xff] %v1459
        %1476 = vst [vmem:[#allocation4 + $0x40] sm:$0xff] %v1460
        %1477 = vst [vmem:[#allocation4 + $0x48] sm:$0xff] %v1461
        %1478 = vst [vmem:[#allocation4 + $0x50] sm:$0xff] %v1462
        %1479 = vst [vmem:[#allocation4 + $0x58] sm:$0xff] %v1463
        %1480 = vst [vmem:[#allocation4 + $0x60] sm:$0xff] %v1464
        %1481 = vst [vmem:[#allocation4 + $0x68] sm:$0xff] %v1465
        %1482 = vst [vmem:[#allocation4 + $0x70] sm:$0xff] %v1466
        %1483 = vst [vmem:[#allocation4 + $0x78] sm:$0xff] %v1467
        %1484 = vst.msk [vmem:[#allocation2] sm:$0xff] %vm1218, %v946
        %1485 = vst.msk [vmem:[#allocation2 + $0x8] sm:$0xff] %vm1218, %v947
        %1486 = vst.msk [vmem:[#allocation2 + $0x10] sm:$0xff] %vm1218, %v948
        %1487 = vst.msk [vmem:[#allocation2 + $0x18] sm:$0xff] %vm1218, %v949
        %1488 = vst.msk [vmem:[#allocation2 + $0x20] sm:$0xff] %vm1218, %v950
        %1489 = vst.msk [vmem:[#allocation2 + $0x28] sm:$0xff] %vm1218, %v951
        %1490 = vst.msk [vmem:[#allocation2 + $0x30] sm:$0xff] %vm1218, %v952
        %1491 = vst.msk [vmem:[#allocation2 + $0x38] sm:$0xff] %vm1218, %v953
        %1492 = vst.msk [vmem:[#allocation2 + $0x40] sm:$0xff] %vm1218, %v954
        %1493 = vst.msk [vmem:[#allocation2 + $0x48] sm:$0xff] %vm1218, %v955
        %1494 = vst.msk [vmem:[#allocation2 + $0x50] sm:$0xff] %vm1218, %v956
        %1495 = vst.msk [vmem:[#allocation2 + $0x58] sm:$0xff] %vm1218, %v957
        %1496 = vst.msk [vmem:[#allocation2 + $0x60] sm:$0xff] %vm1218, %v958
        %1497 = vst.msk [vmem:[#allocation2 + $0x68] sm:$0xff] %vm1218, %v959
        %1498 = vst.msk [vmem:[#allocation2 + $0x70] sm:$0xff] %vm1218, %v960
        %1499 = vst.msk [vmem:[#allocation2 + $0x78] sm:$0xff] %vm1218, %v961
        %s1500 = smul.u32 %s44, 128
        %s1501 = scalar_lea.vmem [#allocation5], %s1500
        %1502 = vst.msk [vmem:[%s1501] sm:$0xff] %vm1218, %v946
        %1503 = vst.msk [vmem:[%s1501 + $0x8] sm:$0xff] %vm1218, %v947
        %1504 = vst.msk [vmem:[%s1501 + $0x10] sm:$0xff] %vm1218, %v948
        %1505 = vst.msk [vmem:[%s1501 + $0x18] sm:$0xff] %vm1218, %v949
        %1506 = vst.msk [vmem:[%s1501 + $0x20] sm:$0xff] %vm1218, %v950
        %1507 = vst.msk [vmem:[%s1501 + $0x28] sm:$0xff] %vm1218, %v951
        %1508 = vst.msk [vmem:[%s1501 + $0x30] sm:$0xff] %vm1218, %v952
        %1509 = vst.msk [vmem:[%s1501 + $0x38] sm:$0xff] %vm1218, %v953
        %1510 = vst.msk [vmem:[%s1501 + $0x40] sm:$0xff] %vm1218, %v954
        %1511 = vst.msk [vmem:[%s1501 + $0x48] sm:$0xff] %vm1218, %v955
        %1512 = vst.msk [vmem:[%s1501 + $0x50] sm:$0xff] %vm1218, %v956
        %1513 = vst.msk [vmem:[%s1501 + $0x58] sm:$0xff] %vm1218, %v957
        %1514 = vst.msk [vmem:[%s1501 + $0x60] sm:$0xff] %vm1218, %v958
        %1515 = vst.msk [vmem:[%s1501 + $0x68] sm:$0xff] %vm1218, %v959
        %1516 = vst.msk [vmem:[%s1501 + $0x70] sm:$0xff] %vm1218, %v960
        %1517 = vst.msk [vmem:[%s1501 + $0x78] sm:$0xff] %vm1218, %v961
        %s1518 = sshra.s32 %s1500, 7
        %s1519 = sand.u32 %s1500, 127
        %s1520 = smul.addr %s1518, 8
        %s1521 = scalar_lea.vmem %s537, %s1520 [#allocation17]
        %1522 = vst [vmem:[%s1521] sm:$0xff] %v1107
        %1523 = vst [vmem:[%s1521 + $0x18] sm:$0xff] %v1109
        %1524 = vst [vmem:[%s1521 + $0x30] sm:$0xff] %v1111
        %1525 = vst [vmem:[%s1521 + $0x48] sm:$0xff] %v1113
        %1526 = vst [vmem:[%s1521 + $0x60] sm:$0xff] %v1115
        %1527 = vst [vmem:[%s1521 + $0x78] sm:$0xff] %v1117
        %1528 = vst [vmem:[%s1521 + $0x90] sm:$0xff] %v1119
        %1529 = vst [vmem:[%s1521 + $0xa8] sm:$0xff] %v1121
        %1530 = vst [vmem:[%s1521 + $0xc0] sm:$0xff] %v1123
        %1531 = vst [vmem:[%s1521 + $0xd8] sm:$0xff] %v1125
        %1532 = vst [vmem:[%s1521 + $0xf0] sm:$0xff] %v1127
        %1533 = vst [vmem:[%s1521 + $0x108] sm:$0xff] %v1129
        %1534 = vst [vmem:[%s1521 + $0x120] sm:$0xff] %v1131
        %1535 = vst [vmem:[%s1521 + $0x138] sm:$0xff] %v1133
        %1536 = vst [vmem:[%s1521 + $0x150] sm:$0xff] %v1135
        %1537 = vst [vmem:[%s1521 + $0x168] sm:$0xff] %v1137
        %p1538 = scmp.eq.s32.totalorder %s44, 2
        // Predicated region
        $region77: #{tpu_custom_call.1} parent=51 // pred_check
          %p1539 = pneg %p1538
        $region78: #{tpu_custom_call.1} parent=51 // pred_check_branch
          %1541 = sbr.rel (%p1539) target = $region80
        $region79: #{tpu_custom_call.1} parent=51 // pred_region
          %v1542 = vld [vmem:[#allocation2] sm:$0xff]
          %v1543 = vld [vmem:[#allocation2 + $0x8] sm:$0xff]
          %v1544 = vld [vmem:[#allocation2 + $0x10] sm:$0xff]
          %v1545 = vld [vmem:[#allocation2 + $0x18] sm:$0xff]
          %v1546 = vld [vmem:[#allocation2 + $0x20] sm:$0xff]
          %v1547 = vld [vmem:[#allocation2 + $0x28] sm:$0xff]
          %v1548 = vld [vmem:[#allocation2 + $0x30] sm:$0xff]
          %v1549 = vld [vmem:[#allocation2 + $0x38] sm:$0xff]
          %v1550 = vld [vmem:[#allocation2 + $0x40] sm:$0xff]
          %v1551 = vld [vmem:[#allocation2 + $0x48] sm:$0xff]
          %v1552 = vld [vmem:[#allocation2 + $0x50] sm:$0xff]
          %v1553 = vld [vmem:[#allocation2 + $0x58] sm:$0xff]
          %v1554 = vld [vmem:[#allocation2 + $0x60] sm:$0xff]
          %v1555 = vld [vmem:[#allocation2 + $0x68] sm:$0xff]
          %v1556 = vld [vmem:[#allocation2 + $0x70] sm:$0xff]
          %v1557 = vld [vmem:[#allocation2 + $0x78] sm:$0xff]
          %v1558 = vld [vmem:[#allocation3] sm:$0xff]
          %v1559 = vld [vmem:[#allocation3 + $0x8] sm:$0xff]
          %v1560 = vld [vmem:[#allocation3 + $0x10] sm:$0xff]
          %v1561 = vld [vmem:[#allocation3 + $0x18] sm:$0xff]
          %v1562 = vld [vmem:[#allocation3 + $0x20] sm:$0xff]
          %v1563 = vld [vmem:[#allocation3 + $0x28] sm:$0xff]
          %v1564 = vld [vmem:[#allocation3 + $0x30] sm:$0xff]
          %v1565 = vld [vmem:[#allocation3 + $0x38] sm:$0xff]
          %v1566 = vld [vmem:[#allocation3 + $0x40] sm:$0xff]
          %v1567 = vld [vmem:[#allocation3 + $0x48] sm:$0xff]
          %v1568 = vld [vmem:[#allocation3 + $0x50] sm:$0xff]
          %v1569 = vld [vmem:[#allocation3 + $0x58] sm:$0xff]
          %v1570 = vld [vmem:[#allocation3 + $0x60] sm:$0xff]
          %v1571 = vld [vmem:[#allocation3 + $0x68] sm:$0xff]
          %v1572 = vld [vmem:[#allocation3 + $0x70] sm:$0xff]
          %v1573 = vld [vmem:[#allocation3 + $0x78] sm:$0xff]
          %v1574 = vrcp.pop %v1558
          %v1575 = vrcp.pop %v1559
          %v1576 = vrcp.pop %v1560
          %v1577 = vrcp.pop %v1561
          %v1578 = vrcp.pop %v1562
          %v1579 = vrcp.pop %v1563
          %v1580 = vrcp.pop %v1564
          %v1581 = vrcp.pop %v1565
          %v1582 = vrcp.pop %v1566
          %v1583 = vrcp.pop %v1567
          %v1584 = vrcp.pop %v1568
          %v1585 = vrcp.pop %v1569
          %v1586 = vrcp.pop %v1570
          %v1587 = vrcp.pop %v1571
          %v1588 = vrcp.pop %v1572
          %v1589 = vrcp.pop %v1573
          %v1590 = vld [vmem:[#allocation5] sm:$0xff]
          %v1591 = vld [vmem:[#allocation5 + $0x8] sm:$0xff]
          %v1592 = vld [vmem:[#allocation5 + $0x10] sm:$0xff]
          %v1593 = vld [vmem:[#allocation5 + $0x18] sm:$0xff]
          %v1594 = vld [vmem:[#allocation5 + $0x20] sm:$0xff]
          %v1595 = vld [vmem:[#allocation5 + $0x28] sm:$0xff]
          %v1596 = vld [vmem:[#allocation5 + $0x30] sm:$0xff]
          %v1597 = vld [vmem:[#allocation5 + $0x38] sm:$0xff]
          %v1598 = vld [vmem:[#allocation5 + $0x40] sm:$0xff]
          %v1599 = vld [vmem:[#allocation5 + $0x48] sm:$0xff]
          %v1600 = vld [vmem:[#allocation5 + $0x50] sm:$0xff]
          %v1601 = vld [vmem:[#allocation5 + $0x58] sm:$0xff]
          %v1602 = vld [vmem:[#allocation5 + $0x60] sm:$0xff]
          %v1603 = vld [vmem:[#allocation5 + $0x68] sm:$0xff]
          %v1604 = vld [vmem:[#allocation5 + $0x70] sm:$0xff]
          %v1605 = vld [vmem:[#allocation5 + $0x78] sm:$0xff]
          %v1606 = vsub.f32 %v1590, %v1542
          %v1607 = vsub.f32 %v1591, %v1543
          %v1608 = vsub.f32 %v1592, %v1544
          %v1609 = vsub.f32 %v1593, %v1545
          %v1610 = vsub.f32 %v1594, %v1546
          %v1611 = vsub.f32 %v1595, %v1547
          %v1612 = vsub.f32 %v1596, %v1548
          %v1613 = vsub.f32 %v1597, %v1549
          %v1614 = vsub.f32 %v1598, %v1550
          %v1615 = vsub.f32 %v1599, %v1551
          %v1616 = vsub.f32 %v1600, %v1552
          %v1617 = vsub.f32 %v1601, %v1553
          %v1618 = vsub.f32 %v1602, %v1554
          %v1619 = vsub.f32 %v1603, %v1555
          %v1620 = vsub.f32 %v1604, %v1556
          %v1621 = vsub.f32 %v1605, %v1557
          %v1622 = vmul.f32 %v1606, 1.442695
          %v1623 = vpow.pop %v1622
          %v1624 = vmul.f32 %v1607, 1.442695
          %v1625 = vpow.pop %v1624
          %v1626 = vmul.f32 %v1608, 1.442695
          %v1627 = vpow.pop %v1626
          %v1628 = vmul.f32 %v1609, 1.442695
          %v1629 = vpow.pop %v1628
          %v1630 = vmul.f32 %v1610, 1.442695
          %v1631 = vpow.pop %v1630
          %v1632 = vmul.f32 %v1611, 1.442695
          %v1633 = vpow.pop %v1632
          %v1634 = vmul.f32 %v1612, 1.442695
          %v1635 = vpow.pop %v1634
          %v1636 = vmul.f32 %v1613, 1.442695
          %v1637 = vpow.pop %v1636
          %v1638 = vmul.f32 %v1614, 1.442695
          %v1639 = vpow.pop %v1638
          %v1640 = vmul.f32 %v1615, 1.442695
          %v1641 = vpow.pop %v1640
          %v1642 = vmul.f32 %v1616, 1.442695
          %v1643 = vpow.pop %v1642
          %v1644 = vmul.f32 %v1617, 1.442695
          %v1645 = vpow.pop %v1644
          %v1646 = vmul.f32 %v1618, 1.442695
          %v1647 = vpow.pop %v1646
          %v1648 = vmul.f32 %v1619, 1.442695
          %v1649 = vpow.pop %v1648
          %v1650 = vmul.f32 %v1620, 1.442695
          %v1651 = vpow.pop %v1650
          %v1652 = vmul.f32 %v1621, 1.442695
          %v1653 = vpow.pop %v1652
          %v1654 = vmul.f32 %v1623, %v1574
          %v1655 = vmul.f32 %v1625, %v1575
          %v1656 = vmul.f32 %v1627, %v1576
          %v1657 = vmul.f32 %v1629, %v1577
          %v1658 = vmul.f32 %v1631, %v1578
          %v1659 = vmul.f32 %v1633, %v1579
          %v1660 = vmul.f32 %v1635, %v1580
          %v1661 = vmul.f32 %v1637, %v1581
          %v1662 = vmul.f32 %v1639, %v1582
          %v1663 = vmul.f32 %v1641, %v1583
          %v1664 = vmul.f32 %v1643, %v1584
          %v1665 = vmul.f32 %v1645, %v1585
          %v1666 = vmul.f32 %v1647, %v1586
          %v1667 = vmul.f32 %v1649, %v1587
          %v1668 = vmul.f32 %v1651, %v1588
          %v1669 = vmul.f32 %v1653, %v1589
          %v1670 = vld [vmem:[%s537] sm:$0xff]
          %v1671 = vld [vmem:[%s537 + $0x18] sm:$0xff]
          %v1672 = vld [vmem:[%s537 + $0x30] sm:$0xff]
          %v1673 = vld [vmem:[%s537 + $0x48] sm:$0xff]
          %v1674 = vld [vmem:[%s537 + $0x60] sm:$0xff]
          %v1675 = vld [vmem:[%s537 + $0x78] sm:$0xff]
          %v1676 = vld [vmem:[%s537 + $0x90] sm:$0xff]
          %v1677 = vld [vmem:[%s537 + $0xa8] sm:$0xff]
          %v1678 = vld [vmem:[%s537 + $0xc0] sm:$0xff]
          %v1679 = vld [vmem:[%s537 + $0xd8] sm:$0xff]
          %v1680 = vld [vmem:[%s537 + $0xf0] sm:$0xff]
          %v1681 = vld [vmem:[%s537 + $0x108] sm:$0xff]
          %v1682 = vld [vmem:[%s537 + $0x120] sm:$0xff]
          %v1683 = vld [vmem:[%s537 + $0x138] sm:$0xff]
          %v1684 = vld [vmem:[%s537 + $0x150] sm:$0xff]
          %v1685 = vld [vmem:[%s537 + $0x168] sm:$0xff]
          %1687 = vset.pattern.permute.xlu0 0
          %1688 = vperm.xlu0 %1687, %v1654
          %v1689 = vpop.permute.xlu0 %1688
          %1692 = vset.pattern.permute.xlu0 0
          %1693 = vperm.xlu0 %1692, %v1655
          %v1694 = vpop.permute.xlu0 %1693
          %1697 = vset.pattern.permute.xlu0 0
          %1698 = vperm.xlu0 %1697, %v1656
          %v1699 = vpop.permute.xlu0 %1698
          %1702 = vset.pattern.permute.xlu0 0
          %1703 = vperm.xlu0 %1702, %v1657
          %v1704 = vpop.permute.xlu0 %1703
          %1707 = vset.pattern.permute.xlu0 0
          %1708 = vperm.xlu0 %1707, %v1658
          %v1709 = vpop.permute.xlu0 %1708
          %1712 = vset.pattern.permute.xlu0 0
          %1713 = vperm.xlu0 %1712, %v1659
          %v1714 = vpop.permute.xlu0 %1713
          %1717 = vset.pattern.permute.xlu0 0
          %1718 = vperm.xlu0 %1717, %v1660
          %v1719 = vpop.permute.xlu0 %1718
          %1722 = vset.pattern.permute.xlu0 0
          %1723 = vperm.xlu0 %1722, %v1661
          %v1724 = vpop.permute.xlu0 %1723
          %1727 = vset.pattern.permute.xlu0 0
          %1728 = vperm.xlu0 %1727, %v1662
          %v1729 = vpop.permute.xlu0 %1728
          %1732 = vset.pattern.permute.xlu0 0
          %1733 = vperm.xlu0 %1732, %v1663
          %v1734 = vpop.permute.xlu0 %1733
          %1737 = vset.pattern.permute.xlu0 0
          %1738 = vperm.xlu0 %1737, %v1664
          %v1739 = vpop.permute.xlu0 %1738
          %1742 = vset.pattern.permute.xlu0 0
          %1743 = vperm.xlu0 %1742, %v1665
          %v1744 = vpop.permute.xlu0 %1743
          %1747 = vset.pattern.permute.xlu0 0
          %1748 = vperm.xlu0 %1747, %v1666
          %v1749 = vpop.permute.xlu0 %1748
          %1752 = vset.pattern.permute.xlu0 0
          %1753 = vperm.xlu0 %1752, %v1667
          %v1754 = vpop.permute.xlu0 %1753
          %1757 = vset.pattern.permute.xlu0 0
          %1758 = vperm.xlu0 %1757, %v1668
          %v1759 = vpop.permute.xlu0 %1758
          %1762 = vset.pattern.permute.xlu0 0
          %1763 = vperm.xlu0 %1762, %v1669
          %v1764 = vpop.permute.xlu0 %1763
          %v1766 = vmul.f32 %v1670, %v1689
          %v1767 = vmul.f32 %v1671, %v1694
          %v1768 = vmul.f32 %v1672, %v1699
          %v1769 = vmul.f32 %v1673, %v1704
          %v1770 = vmul.f32 %v1674, %v1709
          %v1771 = vmul.f32 %v1675, %v1714
          %v1772 = vmul.f32 %v1676, %v1719
          %v1773 = vmul.f32 %v1677, %v1724
          %v1774 = vmul.f32 %v1678, %v1729
          %v1775 = vmul.f32 %v1679, %v1734
          %v1776 = vmul.f32 %v1680, %v1739
          %v1777 = vmul.f32 %v1681, %v1744
          %v1778 = vmul.f32 %v1682, %v1749
          %v1779 = vmul.f32 %v1683, %v1754
          %v1780 = vmul.f32 %v1684, %v1759
          %v1781 = vmul.f32 %v1685, %v1764
          %1782 = vst [vmem:[%s537] sm:$0xff] %v1766
          %1783 = vst [vmem:[%s537 + $0x18] sm:$0xff] %v1767
          %1784 = vst [vmem:[%s537 + $0x30] sm:$0xff] %v1768
          %1785 = vst [vmem:[%s537 + $0x48] sm:$0xff] %v1769
          %1786 = vst [vmem:[%s537 + $0x60] sm:$0xff] %v1770
          %1787 = vst [vmem:[%s537 + $0x78] sm:$0xff] %v1771
          %1788 = vst [vmem:[%s537 + $0x90] sm:$0xff] %v1772
          %1789 = vst [vmem:[%s537 + $0xa8] sm:$0xff] %v1773
          %1790 = vst [vmem:[%s537 + $0xc0] sm:$0xff] %v1774
          %1791 = vst [vmem:[%s537 + $0xd8] sm:$0xff] %v1775
          %1792 = vst [vmem:[%s537 + $0xf0] sm:$0xff] %v1776
          %1793 = vst [vmem:[%s537 + $0x108] sm:$0xff] %v1777
          %1794 = vst [vmem:[%s537 + $0x120] sm:$0xff] %v1778
          %1795 = vst [vmem:[%s537 + $0x138] sm:$0xff] %v1779
          %1796 = vst [vmem:[%s537 + $0x150] sm:$0xff] %v1780
          %1797 = vst [vmem:[%s537 + $0x168] sm:$0xff] %v1781
          %s1798 = scalar_lea.vmem [#allocation5], 128
          %v1799 = vld [vmem:[%s1798] sm:$0xff]
          %v1800 = vld [vmem:[%s1798 + $0x8] sm:$0xff]
          %v1801 = vld [vmem:[%s1798 + $0x10] sm:$0xff]
          %v1802 = vld [vmem:[%s1798 + $0x18] sm:$0xff]
          %v1803 = vld [vmem:[%s1798 + $0x20] sm:$0xff]
          %v1804 = vld [vmem:[%s1798 + $0x28] sm:$0xff]
          %v1805 = vld [vmem:[%s1798 + $0x30] sm:$0xff]
          %v1806 = vld [vmem:[%s1798 + $0x38] sm:$0xff]
          %v1807 = vld [vmem:[%s1798 + $0x40] sm:$0xff]
          %v1808 = vld [vmem:[%s1798 + $0x48] sm:$0xff]
          %v1809 = vld [vmem:[%s1798 + $0x50] sm:$0xff]
          %v1810 = vld [vmem:[%s1798 + $0x58] sm:$0xff]
          %v1811 = vld [vmem:[%s1798 + $0x60] sm:$0xff]
          %v1812 = vld [vmem:[%s1798 + $0x68] sm:$0xff]
          %v1813 = vld [vmem:[%s1798 + $0x70] sm:$0xff]
          %v1814 = vld [vmem:[%s1798 + $0x78] sm:$0xff]
          %v1815 = vsub.f32 %v1799, %v1542
          %v1816 = vsub.f32 %v1800, %v1543
          %v1817 = vsub.f32 %v1801, %v1544
          %v1818 = vsub.f32 %v1802, %v1545
          %v1819 = vsub.f32 %v1803, %v1546
          %v1820 = vsub.f32 %v1804, %v1547
          %v1821 = vsub.f32 %v1805, %v1548
          %v1822 = vsub.f32 %v1806, %v1549
          %v1823 = vsub.f32 %v1807, %v1550
          %v1824 = vsub.f32 %v1808, %v1551
          %v1825 = vsub.f32 %v1809, %v1552
          %v1826 = vsub.f32 %v1810, %v1553
          %v1827 = vsub.f32 %v1811, %v1554
          %v1828 = vsub.f32 %v1812, %v1555
          %v1829 = vsub.f32 %v1813, %v1556
          %v1830 = vsub.f32 %v1814, %v1557
          %v1831 = vmul.f32 %v1815, 1.442695
          %v1832 = vpow.pop %v1831
          %v1833 = vmul.f32 %v1816, 1.442695
          %v1834 = vpow.pop %v1833
          %v1835 = vmul.f32 %v1817, 1.442695
          %v1836 = vpow.pop %v1835
          %v1837 = vmul.f32 %v1818, 1.442695
          %v1838 = vpow.pop %v1837
          %v1839 = vmul.f32 %v1819, 1.442695
          %v1840 = vpow.pop %v1839
          %v1841 = vmul.f32 %v1820, 1.442695
          %v1842 = vpow.pop %v1841
          %v1843 = vmul.f32 %v1821, 1.442695
          %v1844 = vpow.pop %v1843
          %v1845 = vmul.f32 %v1822, 1.442695
          %v1846 = vpow.pop %v1845
          %v1847 = vmul.f32 %v1823, 1.442695
          %v1848 = vpow.pop %v1847
          %v1849 = vmul.f32 %v1824, 1.442695
          %v1850 = vpow.pop %v1849
          %v1851 = vmul.f32 %v1825, 1.442695
          %v1852 = vpow.pop %v1851
          %v1853 = vmul.f32 %v1826, 1.442695
          %v1854 = vpow.pop %v1853
          %v1855 = vmul.f32 %v1827, 1.442695
          %v1856 = vpow.pop %v1855
          %v1857 = vmul.f32 %v1828, 1.442695
          %v1858 = vpow.pop %v1857
          %v1859 = vmul.f32 %v1829, 1.442695
          %v1860 = vpow.pop %v1859
          %v1861 = vmul.f32 %v1830, 1.442695
          %v1862 = vpow.pop %v1861
          %v1863 = vmul.f32 %v1832, %v1574
          %v1864 = vmul.f32 %v1834, %v1575
          %v1865 = vmul.f32 %v1836, %v1576
          %v1866 = vmul.f32 %v1838, %v1577
          %v1867 = vmul.f32 %v1840, %v1578
          %v1868 = vmul.f32 %v1842, %v1579
          %v1869 = vmul.f32 %v1844, %v1580
          %v1870 = vmul.f32 %v1846, %v1581
          %v1871 = vmul.f32 %v1848, %v1582
          %v1872 = vmul.f32 %v1850, %v1583
          %v1873 = vmul.f32 %v1852, %v1584
          %v1874 = vmul.f32 %v1854, %v1585
          %v1875 = vmul.f32 %v1856, %v1586
          %v1876 = vmul.f32 %v1858, %v1587
          %v1877 = vmul.f32 %v1860, %v1588
          %v1878 = vmul.f32 %v1862, %v1589
          %v1879 = vld [vmem:[%s537 + $0x8] sm:$0xff]
          %v1880 = vld [vmem:[%s537 + $0x20] sm:$0xff]
          %v1881 = vld [vmem:[%s537 + $0x38] sm:$0xff]
          %v1882 = vld [vmem:[%s537 + $0x50] sm:$0xff]
          %v1883 = vld [vmem:[%s537 + $0x68] sm:$0xff]
          %v1884 = vld [vmem:[%s537 + $0x80] sm:$0xff]
          %v1885 = vld [vmem:[%s537 + $0x98] sm:$0xff]
          %v1886 = vld [vmem:[%s537 + $0xb0] sm:$0xff]
          %v1887 = vld [vmem:[%s537 + $0xc8] sm:$0xff]
          %v1888 = vld [vmem:[%s537 + $0xe0] sm:$0xff]
          %v1889 = vld [vmem:[%s537 + $0xf8] sm:$0xff]
          %v1890 = vld [vmem:[%s537 + $0x110] sm:$0xff]
          %v1891 = vld [vmem:[%s537 + $0x128] sm:$0xff]
          %v1892 = vld [vmem:[%s537 + $0x140] sm:$0xff]
          %v1893 = vld [vmem:[%s537 + $0x158] sm:$0xff]
          %v1894 = vld [vmem:[%s537 + $0x170] sm:$0xff]
          %1896 = vset.pattern.permute.xlu0 0
          %1897 = vperm.xlu0 %1896, %v1863
          %v1898 = vpop.permute.xlu0 %1897
          %1901 = vset.pattern.permute.xlu0 0
          %1902 = vperm.xlu0 %1901, %v1864
          %v1903 = vpop.permute.xlu0 %1902
          %1906 = vset.pattern.permute.xlu0 0
          %1907 = vperm.xlu0 %1906, %v1865
          %v1908 = vpop.permute.xlu0 %1907
          %1911 = vset.pattern.permute.xlu0 0
          %1912 = vperm.xlu0 %1911, %v1866
          %v1913 = vpop.permute.xlu0 %1912
          %1916 = vset.pattern.permute.xlu0 0
          %1917 = vperm.xlu0 %1916, %v1867
          %v1918 = vpop.permute.xlu0 %1917
          %1921 = vset.pattern.permute.xlu0 0
          %1922 = vperm.xlu0 %1921, %v1868
          %v1923 = vpop.permute.xlu0 %1922
          %1926 = vset.pattern.permute.xlu0 0
          %1927 = vperm.xlu0 %1926, %v1869
          %v1928 = vpop.permute.xlu0 %1927
          %1931 = vset.pattern.permute.xlu0 0
          %1932 = vperm.xlu0 %1931, %v1870
          %v1933 = vpop.permute.xlu0 %1932
          %1936 = vset.pattern.permute.xlu0 0
          %1937 = vperm.xlu0 %1936, %v1871
          %v1938 = vpop.permute.xlu0 %1937
          %1941 = vset.pattern.permute.xlu0 0
          %1942 = vperm.xlu0 %1941, %v1872
          %v1943 = vpop.permute.xlu0 %1942
          %1946 = vset.pattern.permute.xlu0 0
          %1947 = vperm.xlu0 %1946, %v1873
          %v1948 = vpop.permute.xlu0 %1947
          %1951 = vset.pattern.permute.xlu0 0
          %1952 = vperm.xlu0 %1951, %v1874
          %v1953 = vpop.permute.xlu0 %1952
          %1956 = vset.pattern.permute.xlu0 0
          %1957 = vperm.xlu0 %1956, %v1875
          %v1958 = vpop.permute.xlu0 %1957
          %1961 = vset.pattern.permute.xlu0 0
          %1962 = vperm.xlu0 %1961, %v1876
          %v1963 = vpop.permute.xlu0 %1962
          %1966 = vset.pattern.permute.xlu0 0
          %1967 = vperm.xlu0 %1966, %v1877
          %v1968 = vpop.permute.xlu0 %1967
          %1971 = vset.pattern.permute.xlu0 0
          %1972 = vperm.xlu0 %1971, %v1878
          %v1973 = vpop.permute.xlu0 %1972
          %v1975 = vmul.f32 %v1879, %v1898
          %v1976 = vmul.f32 %v1880, %v1903
          %v1977 = vmul.f32 %v1881, %v1908
          %v1978 = vmul.f32 %v1882, %v1913
          %v1979 = vmul.f32 %v1883, %v1918
          %v1980 = vmul.f32 %v1884, %v1923
          %v1981 = vmul.f32 %v1885, %v1928
          %v1982 = vmul.f32 %v1886, %v1933
          %v1983 = vmul.f32 %v1887, %v1938
          %v1984 = vmul.f32 %v1888, %v1943
          %v1985 = vmul.f32 %v1889, %v1948
          %v1986 = vmul.f32 %v1890, %v1953
          %v1987 = vmul.f32 %v1891, %v1958
          %v1988 = vmul.f32 %v1892, %v1963
          %v1989 = vmul.f32 %v1893, %v1968
          %v1990 = vmul.f32 %v1894, %v1973
          %1991 = vst [vmem:[%s537 + $0x8] sm:$0xff] %v1975
          %1992 = vst [vmem:[%s537 + $0x20] sm:$0xff] %v1976
          %1993 = vst [vmem:[%s537 + $0x38] sm:$0xff] %v1977
          %1994 = vst [vmem:[%s537 + $0x50] sm:$0xff] %v1978
          %1995 = vst [vmem:[%s537 + $0x68] sm:$0xff] %v1979
          %1996 = vst [vmem:[%s537 + $0x80] sm:$0xff] %v1980
          %1997 = vst [vmem:[%s537 + $0x98] sm:$0xff] %v1981
          %1998 = vst [vmem:[%s537 + $0xb0] sm:$0xff] %v1982
          %1999 = vst [vmem:[%s537 + $0xc8] sm:$0xff] %v1983
          %2000 = vst [vmem:[%s537 + $0xe0] sm:$0xff] %v1984
          %2001 = vst [vmem:[%s537 + $0xf8] sm:$0xff] %v1985
          %2002 = vst [vmem:[%s537 + $0x110] sm:$0xff] %v1986
          %2003 = vst [vmem:[%s537 + $0x128] sm:$0xff] %v1987
          %2004 = vst [vmem:[%s537 + $0x140] sm:$0xff] %v1988
          %2005 = vst [vmem:[%s537 + $0x158] sm:$0xff] %v1989
          %2006 = vst [vmem:[%s537 + $0x170] sm:$0xff] %v1990
          %s2007 = scalar_lea.vmem [#allocation5], 256
          %v2008 = vld [vmem:[%s2007] sm:$0xff]
          %v2009 = vld [vmem:[%s2007 + $0x8] sm:$0xff]
          %v2010 = vld [vmem:[%s2007 + $0x10] sm:$0xff]
          %v2011 = vld [vmem:[%s2007 + $0x18] sm:$0xff]
          %v2012 = vld [vmem:[%s2007 + $0x20] sm:$0xff]
          %v2013 = vld [vmem:[%s2007 + $0x28] sm:$0xff]
          %v2014 = vld [vmem:[%s2007 + $0x30] sm:$0xff]
          %v2015 = vld [vmem:[%s2007 + $0x38] sm:$0xff]
          %v2016 = vld [vmem:[%s2007 + $0x40] sm:$0xff]
          %v2017 = vld [vmem:[%s2007 + $0x48] sm:$0xff]
          %v2018 = vld [vmem:[%s2007 + $0x50] sm:$0xff]
          %v2019 = vld [vmem:[%s2007 + $0x58] sm:$0xff]
          %v2020 = vld [vmem:[%s2007 + $0x60] sm:$0xff]
          %v2021 = vld [vmem:[%s2007 + $0x68] sm:$0xff]
          %v2022 = vld [vmem:[%s2007 + $0x70] sm:$0xff]
          %v2023 = vld [vmem:[%s2007 + $0x78] sm:$0xff]
          %v2024 = vsub.f32 %v2008, %v1542
          %v2025 = vsub.f32 %v2009, %v1543
          %v2026 = vsub.f32 %v2010, %v1544
          %v2027 = vsub.f32 %v2011, %v1545
          %v2028 = vsub.f32 %v2012, %v1546
          %v2029 = vsub.f32 %v2013, %v1547
          %v2030 = vsub.f32 %v2014, %v1548
          %v2031 = vsub.f32 %v2015, %v1549
          %v2032 = vsub.f32 %v2016, %v1550
          %v2033 = vsub.f32 %v2017, %v1551
          %v2034 = vsub.f32 %v2018, %v1552
          %v2035 = vsub.f32 %v2019, %v1553
          %v2036 = vsub.f32 %v2020, %v1554
          %v2037 = vsub.f32 %v2021, %v1555
          %v2038 = vsub.f32 %v2022, %v1556
          %v2039 = vsub.f32 %v2023, %v1557
          %v2040 = vmul.f32 %v2024, 1.442695
          %v2041 = vpow.pop %v2040
          %v2042 = vmul.f32 %v2025, 1.442695
          %v2043 = vpow.pop %v2042
          %v2044 = vmul.f32 %v2026, 1.442695
          %v2045 = vpow.pop %v2044
          %v2046 = vmul.f32 %v2027, 1.442695
          %v2047 = vpow.pop %v2046
          %v2048 = vmul.f32 %v2028, 1.442695
          %v2049 = vpow.pop %v2048
          %v2050 = vmul.f32 %v2029, 1.442695
          %v2051 = vpow.pop %v2050
          %v2052 = vmul.f32 %v2030, 1.442695
          %v2053 = vpow.pop %v2052
          %v2054 = vmul.f32 %v2031, 1.442695
          %v2055 = vpow.pop %v2054
          %v2056 = vmul.f32 %v2032, 1.442695
          %v2057 = vpow.pop %v2056
          %v2058 = vmul.f32 %v2033, 1.442695
          %v2059 = vpow.pop %v2058
          %v2060 = vmul.f32 %v2034, 1.442695
          %v2061 = vpow.pop %v2060
          %v2062 = vmul.f32 %v2035, 1.442695
          %v2063 = vpow.pop %v2062
          %v2064 = vmul.f32 %v2036, 1.442695
          %v2065 = vpow.pop %v2064
          %v2066 = vmul.f32 %v2037, 1.442695
          %v2067 = vpow.pop %v2066
          %v2068 = vmul.f32 %v2038, 1.442695
          %v2069 = vpow.pop %v2068
          %v2070 = vmul.f32 %v2039, 1.442695
          %v2071 = vpow.pop %v2070
          %v2072 = vmul.f32 %v2041, %v1574
          %v2073 = vmul.f32 %v2043, %v1575
          %v2074 = vmul.f32 %v2045, %v1576
          %v2075 = vmul.f32 %v2047, %v1577
          %v2076 = vmul.f32 %v2049, %v1578
          %v2077 = vmul.f32 %v2051, %v1579
          %v2078 = vmul.f32 %v2053, %v1580
          %v2079 = vmul.f32 %v2055, %v1581
          %v2080 = vmul.f32 %v2057, %v1582
          %v2081 = vmul.f32 %v2059, %v1583
          %v2082 = vmul.f32 %v2061, %v1584
          %v2083 = vmul.f32 %v2063, %v1585
          %v2084 = vmul.f32 %v2065, %v1586
          %v2085 = vmul.f32 %v2067, %v1587
          %v2086 = vmul.f32 %v2069, %v1588
          %v2087 = vmul.f32 %v2071, %v1589
          %v2088 = vld [vmem:[%s537 + $0x10] sm:$0xff]
          %v2089 = vld [vmem:[%s537 + $0x28] sm:$0xff]
          %v2090 = vld [vmem:[%s537 + $0x40] sm:$0xff]
          %v2091 = vld [vmem:[%s537 + $0x58] sm:$0xff]
          %v2092 = vld [vmem:[%s537 + $0x70] sm:$0xff]
          %v2093 = vld [vmem:[%s537 + $0x88] sm:$0xff]
          %v2094 = vld [vmem:[%s537 + $0xa0] sm:$0xff]
          %v2095 = vld [vmem:[%s537 + $0xb8] sm:$0xff]
          %v2096 = vld [vmem:[%s537 + $0xd0] sm:$0xff]
          %v2097 = vld [vmem:[%s537 + $0xe8] sm:$0xff]
          %v2098 = vld [vmem:[%s537 + $0x100] sm:$0xff]
          %v2099 = vld [vmem:[%s537 + $0x118] sm:$0xff]
          %v2100 = vld [vmem:[%s537 + $0x130] sm:$0xff]
          %v2101 = vld [vmem:[%s537 + $0x148] sm:$0xff]
          %v2102 = vld [vmem:[%s537 + $0x160] sm:$0xff]
          %v2103 = vld [vmem:[%s537 + $0x178] sm:$0xff]
          %2105 = vset.pattern.permute.xlu0 0
          %2106 = vperm.xlu0 %2105, %v2072
          %v2107 = vpop.permute.xlu0 %2106
          %2110 = vset.pattern.permute.xlu0 0
          %2111 = vperm.xlu0 %2110, %v2073
          %v2112 = vpop.permute.xlu0 %2111
          %2115 = vset.pattern.permute.xlu0 0
          %2116 = vperm.xlu0 %2115, %v2074
          %v2117 = vpop.permute.xlu0 %2116
          %2120 = vset.pattern.permute.xlu0 0
          %2121 = vperm.xlu0 %2120, %v2075
          %v2122 = vpop.permute.xlu0 %2121
          %2125 = vset.pattern.permute.xlu0 0
          %2126 = vperm.xlu0 %2125, %v2076
          %v2127 = vpop.permute.xlu0 %2126
          %2130 = vset.pattern.permute.xlu0 0
          %2131 = vperm.xlu0 %2130, %v2077
          %v2132 = vpop.permute.xlu0 %2131
          %2135 = vset.pattern.permute.xlu0 0
          %2136 = vperm.xlu0 %2135, %v2078
          %v2137 = vpop.permute.xlu0 %2136
          %2140 = vset.pattern.permute.xlu0 0
          %2141 = vperm.xlu0 %2140, %v2079
          %v2142 = vpop.permute.xlu0 %2141
          %2145 = vset.pattern.permute.xlu0 0
          %2146 = vperm.xlu0 %2145, %v2080
          %v2147 = vpop.permute.xlu0 %2146
          %2150 = vset.pattern.permute.xlu0 0
          %2151 = vperm.xlu0 %2150, %v2081
          %v2152 = vpop.permute.xlu0 %2151
          %2155 = vset.pattern.permute.xlu0 0
          %2156 = vperm.xlu0 %2155, %v2082
          %v2157 = vpop.permute.xlu0 %2156
          %2160 = vset.pattern.permute.xlu0 0
          %2161 = vperm.xlu0 %2160, %v2083
          %v2162 = vpop.permute.xlu0 %2161
          %2165 = vset.pattern.permute.xlu0 0
          %2166 = vperm.xlu0 %2165, %v2084
          %v2167 = vpop.permute.xlu0 %2166
          %2170 = vset.pattern.permute.xlu0 0
          %2171 = vperm.xlu0 %2170, %v2085
          %v2172 = vpop.permute.xlu0 %2171
          %2175 = vset.pattern.permute.xlu0 0
          %2176 = vperm.xlu0 %2175, %v2086
          %v2177 = vpop.permute.xlu0 %2176
          %2180 = vset.pattern.permute.xlu0 0
          %2181 = vperm.xlu0 %2180, %v2087
          %v2182 = vpop.permute.xlu0 %2181
          %v2184 = vmul.f32 %v2088, %v2107
          %v2185 = vmul.f32 %v2089, %v2112
          %v2186 = vmul.f32 %v2090, %v2117
          %v2187 = vmul.f32 %v2091, %v2122
          %v2188 = vmul.f32 %v2092, %v2127
          %v2189 = vmul.f32 %v2093, %v2132
          %v2190 = vmul.f32 %v2094, %v2137
          %v2191 = vmul.f32 %v2095, %v2142
          %v2192 = vmul.f32 %v2096, %v2147
          %v2193 = vmul.f32 %v2097, %v2152
          %v2194 = vmul.f32 %v2098, %v2157
          %v2195 = vmul.f32 %v2099, %v2162
          %v2196 = vmul.f32 %v2100, %v2167
          %v2197 = vmul.f32 %v2101, %v2172
          %v2198 = vmul.f32 %v2102, %v2177
          %v2199 = vmul.f32 %v2103, %v2182
          %2200 = vst [vmem:[%s537 + $0x10] sm:$0xff] %v2184
          %2201 = vst [vmem:[%s537 + $0x28] sm:$0xff] %v2185
          %2202 = vst [vmem:[%s537 + $0x40] sm:$0xff] %v2186
          %2203 = vst [vmem:[%s537 + $0x58] sm:$0xff] %v2187
          %2204 = vst [vmem:[%s537 + $0x70] sm:$0xff] %v2188
          %2205 = vst [vmem:[%s537 + $0x88] sm:$0xff] %v2189
          %2206 = vst [vmem:[%s537 + $0xa0] sm:$0xff] %v2190
          %2207 = vst [vmem:[%s537 + $0xb8] sm:$0xff] %v2191
          %2208 = vst [vmem:[%s537 + $0xd0] sm:$0xff] %v2192
          %2209 = vst [vmem:[%s537 + $0xe8] sm:$0xff] %v2193
          %2210 = vst [vmem:[%s537 + $0x100] sm:$0xff] %v2194
          %2211 = vst [vmem:[%s537 + $0x118] sm:$0xff] %v2195
          %2212 = vst [vmem:[%s537 + $0x130] sm:$0xff] %v2196
          %2213 = vst [vmem:[%s537 + $0x148] sm:$0xff] %v2197
          %2214 = vst [vmem:[%s537 + $0x160] sm:$0xff] %v2198
          %2215 = vst [vmem:[%s537 + $0x178] sm:$0xff] %v2199
          %v2216 = vld [vmem:[#allocation4] sm:$0xff]
          %v2217 = vld [vmem:[#allocation4 + $0x8] sm:$0xff]
          %v2218 = vld [vmem:[#allocation4 + $0x10] sm:$0xff]
          %v2219 = vld [vmem:[#allocation4 + $0x18] sm:$0xff]
          %v2220 = vld [vmem:[#allocation4 + $0x20] sm:$0xff]
          %v2221 = vld [vmem:[#allocation4 + $0x28] sm:$0xff]
          %v2222 = vld [vmem:[#allocation4 + $0x30] sm:$0xff]
          %v2223 = vld [vmem:[#allocation4 + $0x38] sm:$0xff]
          %v2224 = vld [vmem:[#allocation4 + $0x40] sm:$0xff]
          %v2225 = vld [vmem:[#allocation4 + $0x48] sm:$0xff]
          %v2226 = vld [vmem:[#allocation4 + $0x50] sm:$0xff]
          %v2227 = vld [vmem:[#allocation4 + $0x58] sm:$0xff]
          %v2228 = vld [vmem:[#allocation4 + $0x60] sm:$0xff]
          %v2229 = vld [vmem:[#allocation4 + $0x68] sm:$0xff]
          %v2230 = vld [vmem:[#allocation4 + $0x70] sm:$0xff]
          %v2231 = vld [vmem:[#allocation4 + $0x78] sm:$0xff]
          %2233 = vset.pattern.permute.xlu0 0
          %2234 = vperm.xlu0 %2233, %v1574
          %v2235 = vpop.permute.xlu0 %2234
          %2238 = vset.pattern.permute.xlu0 0
          %2239 = vperm.xlu0 %2238, %v1575
          %v2240 = vpop.permute.xlu0 %2239
          %2243 = vset.pattern.permute.xlu0 0
          %2244 = vperm.xlu0 %2243, %v1576
          %v2245 = vpop.permute.xlu0 %2244
          %2248 = vset.pattern.permute.xlu0 0
          %2249 = vperm.xlu0 %2248, %v1577
          %v2250 = vpop.permute.xlu0 %2249
          %2253 = vset.pattern.permute.xlu0 0
          %2254 = vperm.xlu0 %2253, %v1578
          %v2255 = vpop.permute.xlu0 %2254
          %2258 = vset.pattern.permute.xlu0 0
          %2259 = vperm.xlu0 %2258, %v1579
          %v2260 = vpop.permute.xlu0 %2259
          %2263 = vset.pattern.permute.xlu0 0
          %2264 = vperm.xlu0 %2263, %v1580
          %v2265 = vpop.permute.xlu0 %2264
          %2268 = vset.pattern.permute.xlu0 0
          %2269 = vperm.xlu0 %2268, %v1581
          %v2270 = vpop.permute.xlu0 %2269
          %2273 = vset.pattern.permute.xlu0 0
          %2274 = vperm.xlu0 %2273, %v1582
          %v2275 = vpop.permute.xlu0 %2274
          %2278 = vset.pattern.permute.xlu0 0
          %2279 = vperm.xlu0 %2278, %v1583
          %v2280 = vpop.permute.xlu0 %2279
          %2283 = vset.pattern.permute.xlu0 0
          %2284 = vperm.xlu0 %2283, %v1584
          %v2285 = vpop.permute.xlu0 %2284
          %2288 = vset.pattern.permute.xlu0 0
          %2289 = vperm.xlu0 %2288, %v1585
          %v2290 = vpop.permute.xlu0 %2289
          %2293 = vset.pattern.permute.xlu0 0
          %2294 = vperm.xlu0 %2293, %v1586
          %v2295 = vpop.permute.xlu0 %2294
          %2298 = vset.pattern.permute.xlu0 0
          %2299 = vperm.xlu0 %2298, %v1587
          %v2300 = vpop.permute.xlu0 %2299
          %2303 = vset.pattern.permute.xlu0 0
          %2304 = vperm.xlu0 %2303, %v1588
          %v2305 = vpop.permute.xlu0 %2304
          %2308 = vset.pattern.permute.xlu0 0
          %2309 = vperm.xlu0 %2308, %v1589
          %v2310 = vpop.permute.xlu0 %2309
          %v2312 = vmul.f32 %v2216, %v2235
          %v2313 = vmul.f32 %v2217, %v2240
          %v2314 = vmul.f32 %v2218, %v2245
          %v2315 = vmul.f32 %v2219, %v2250
          %v2316 = vmul.f32 %v2220, %v2255
          %v2317 = vmul.f32 %v2221, %v2260
          %v2318 = vmul.f32 %v2222, %v2265
          %v2319 = vmul.f32 %v2223, %v2270
          %v2320 = vmul.f32 %v2224, %v2275
          %v2321 = vmul.f32 %v2225, %v2280
          %v2322 = vmul.f32 %v2226, %v2285
          %v2323 = vmul.f32 %v2227, %v2290
          %v2324 = vmul.f32 %v2228, %v2295
          %v2325 = vmul.f32 %v2229, %v2300
          %v2326 = vmul.f32 %v2230, %v2305
          %v2327 = vmul.f32 %v2231, %v2310
          %v2328 = vld [vmem:[#allocation13] sm:$0xf]
          %v2329 = vld [vmem:[#allocation13 + $0x4] sm:$0xf]
          %v2330 = vld [vmem:[#allocation13 + $0x8] sm:$0xf]
          %v2331 = vld [vmem:[#allocation13 + $0xc] sm:$0xf]
          %v2332 = vld [vmem:[#allocation13 + $0x10] sm:$0xf]
          %v2333 = vld [vmem:[#allocation13 + $0x14] sm:$0xf]
          %v2334 = vld [vmem:[#allocation13 + $0x18] sm:$0xf]
          %v2335 = vld [vmem:[#allocation13 + $0x1c] sm:$0xf]
          %v2336 = vld [vmem:[#allocation13 + $0x20] sm:$0xf]
          %v2337 = vld [vmem:[#allocation13 + $0x24] sm:$0xf]
          %v2338 = vld [vmem:[#allocation13 + $0x28] sm:$0xf]
          %v2339 = vld [vmem:[#allocation13 + $0x2c] sm:$0xf]
          %v2340 = vld [vmem:[#allocation13 + $0x30] sm:$0xf]
          %v2341 = vld [vmem:[#allocation13 + $0x34] sm:$0xf]
          %v2342 = vld [vmem:[#allocation13 + $0x38] sm:$0xf]
          %v2343 = vld [vmem:[#allocation13 + $0x3c] sm:$0xf]
          %v2344 = vpack.c.bf16 %v2313, %v2312
          %v2345 = vpack.c.bf16 %v2315, %v2314
          %v2346 = vpack.c.bf16 %v2317, %v2316
          %v2347 = vpack.c.bf16 %v2319, %v2318
          %v2348 = vpack.c.bf16 %v2321, %v2320
          %v2349 = vpack.c.bf16 %v2323, %v2322
          %v2350 = vpack.c.bf16 %v2325, %v2324
          %v2351 = vpack.c.bf16 %v2327, %v2326
          %v2352 = vld [vmem:[#allocation15] sm:$0xf]
          %v2353 = vld [vmem:[#allocation15 + $0x4] sm:$0xf]
          %v2354 = vld [vmem:[#allocation15 + $0x8] sm:$0xf]
          %v2355 = vld [vmem:[#allocation15 + $0xc] sm:$0xf]
          %v2356 = vld [vmem:[#allocation15 + $0x10] sm:$0xf]
          %v2357 = vld [vmem:[#allocation15 + $0x14] sm:$0xf]
          %v2358 = vld [vmem:[#allocation15 + $0x18] sm:$0xf]
          %v2359 = vld [vmem:[#allocation15 + $0x1c] sm:$0xf]
          %v2360 = vld [vmem:[#allocation15 + $0x20] sm:$0xf]
          %v2361 = vld [vmem:[#allocation15 + $0x24] sm:$0xf]
          %v2362 = vld [vmem:[#allocation15 + $0x28] sm:$0xf]
          %v2363 = vld [vmem:[#allocation15 + $0x2c] sm:$0xf]
          %v2364 = vld [vmem:[#allocation15 + $0x30] sm:$0xf]
          %v2365 = vld [vmem:[#allocation15 + $0x34] sm:$0xf]
          %v2366 = vld [vmem:[#allocation15 + $0x38] sm:$0xf]
          %v2367 = vld [vmem:[#allocation15 + $0x3c] sm:$0xf]
          %v2384 = vunpack.c.l.b16 %v2352
          %v2385 = vunpack.c.l.b16 %v2353
          %v2386 = vunpack.c.l.b16 %v2354
          %v2387 = vunpack.c.l.b16 %v2355
          %v2388 = vunpack.c.l.b16 %v2356
          %v2389 = vunpack.c.l.b16 %v2357
          %v2390 = vunpack.c.l.b16 %v2358
          %v2391 = vunpack.c.l.b16 %v2359
          %v2392 = vunpack.c.l.b16 %v2360
          %v2393 = vunpack.c.l.b16 %v2361
          %v2394 = vunpack.c.l.b16 %v2362
          %v2395 = vunpack.c.l.b16 %v2363
          %v2396 = vunpack.c.l.b16 %v2364
          %v2397 = vunpack.c.l.b16 %v2365
          %v2398 = vunpack.c.l.b16 %v2366
          %v2399 = vunpack.c.l.b16 %v2367
          %v2400 = vpack.c.b16 %v2385, %v2384
          %v2401 = vpack.c.b16 %v2387, %v2386
          %v2402 = vpack.c.b16 %v2389, %v2388
          %v2403 = vpack.c.b16 %v2391, %v2390
          %v2404 = vpack.c.b16 %v2393, %v2392
          %v2405 = vpack.c.b16 %v2395, %v2394
          %v2406 = vpack.c.b16 %v2397, %v2396
          %v2407 = vpack.c.b16 %v2399, %v2398
          %2416 = vmatprep.subr.bf16.mxu0 0
          %2417 = vmatpush1.bf16.msra.mxu0 %v2407
          %2418 = vmatprep.subr.bf16.mxu0 0
          %2419 = vmatpush1.bf16.msra.mxu0 %v2406
          %2420 = vmatprep.subr.bf16.mxu0 0
          %2421 = vmatpush1.bf16.msra.mxu0 %v2405
          %2422 = vmatprep.subr.bf16.mxu0 0
          %2423 = vmatpush1.bf16.msra.mxu0 %v2404
          %2424 = vmatprep.subr.bf16.mxu0 0
          %2425 = vmatpush1.bf16.msra.mxu0 %v2403
          %2426 = vmatprep.subr.bf16.mxu0 0
          %2427 = vmatpush1.bf16.msra.mxu0 %v2402
          %2428 = vmatprep.subr.bf16.mxu0 0
          %2429 = vmatpush1.bf16.msra.mxu0 %v2401
          %2430 = vmatprep.subr.bf16.mxu0 0
          %2431 = vmatpush1.bf16.msra.mxu0 %v2400
          %2432 = vmatprep.subr.bf16.mxu0 0
          %2433 = vmatpush2.bf16.msra.mxu0 0
          %2434 = vmatprep.subr.bf16.mxu0 0
          %2435 = vmatpush2.bf16.msra.mxu0 0
          %2436 = vmatprep.subr.bf16.mxu0 0
          %2437 = vmatpush2.bf16.msra.mxu0 0
          %2438 = vmatprep.subr.bf16.mxu0 0
          %2439 = vmatpush2.bf16.msra.mxu0 0
          %2440 = vmatprep.subr.bf16.mxu0 0
          %2441 = vmatpush2.bf16.msra.mxu0 0
          %2442 = vmatprep.subr.bf16.mxu0 0
          %2443 = vmatpush2.bf16.msra.mxu0 0
          %2444 = vmatprep.subr.bf16.mxu0 0
          %2445 = vmatpush2.bf16.msra.mxu0 0
          %2446 = vmatprep.subr.bf16.mxu0 0
          %2447 = vmatpush2.bf16.msra.mxu0 0
          %2448 = vmatprep.mubr.bf16.mxu0 0
          %2449 = vmatmul.mubr.bf16.gmra.mxu0 %v2344
          %v2450 = vpop.f32.mrf.mxu0
          %v2451 = vadd.f32 0.0, %v2450
          %v2452 = vpop.f32.mrf.mxu0
          %v2453 = vpop.f32.mrf.mxu0
          %v2454 = vadd.f32 0.0, %v2453
          %v2455 = vpop.f32.mrf.mxu0
          %2456 = vmatprep.mubr.bf16.mxu0 0
          %2457 = vmatmul.mubr.bf16.gmra.mxu0 %v2345
          %v2458 = vpop.f32.mrf.mxu0
          %v2459 = vadd.f32 0.0, %v2458
          %v2460 = vpop.f32.mrf.mxu0
          %v2461 = vpop.f32.mrf.mxu0
          %v2462 = vadd.f32 0.0, %v2461
          %v2463 = vpop.f32.mrf.mxu0
          %2464 = vmatprep.mubr.bf16.mxu0 0
          %2465 = vmatmul.mubr.bf16.gmra.mxu0 %v2346
          %v2466 = vpop.f32.mrf.mxu0
          %v2467 = vadd.f32 0.0, %v2466
          %v2468 = vpop.f32.mrf.mxu0
          %v2469 = vpop.f32.mrf.mxu0
          %v2470 = vadd.f32 0.0, %v2469
          %v2471 = vpop.f32.mrf.mxu0
          %2472 = vmatprep.mubr.bf16.mxu0 0
          %2473 = vmatmul.mubr.bf16.gmra.mxu0 %v2347
          %v2474 = vpop.f32.mrf.mxu0
          %v2475 = vadd.f32 0.0, %v2474
          %v2476 = vpop.f32.mrf.mxu0
          %v2477 = vpop.f32.mrf.mxu0
          %v2478 = vadd.f32 0.0, %v2477
          %v2479 = vpop.f32.mrf.mxu0
          %2480 = vmatprep.mubr.bf16.mxu0 0
          %2481 = vmatmul.mubr.bf16.gmra.mxu0 %v2348
          %v2482 = vpop.f32.mrf.mxu0
          %v2483 = vadd.f32 0.0, %v2482
          %v2484 = vpop.f32.mrf.mxu0
          %v2485 = vpop.f32.mrf.mxu0
          %v2486 = vadd.f32 0.0, %v2485
          %v2487 = vpop.f32.mrf.mxu0
          %2488 = vmatprep.mubr.bf16.mxu0 0
          %2489 = vmatmul.mubr.bf16.gmra.mxu0 %v2349
          %v2490 = vpop.f32.mrf.mxu0
          %v2491 = vadd.f32 0.0, %v2490
          %v2492 = vpop.f32.mrf.mxu0
          %v2493 = vpop.f32.mrf.mxu0
          %v2494 = vadd.f32 0.0, %v2493
          %v2495 = vpop.f32.mrf.mxu0
          %2496 = vmatprep.mubr.bf16.mxu0 0
          %2497 = vmatmul.mubr.bf16.gmra.mxu0 %v2350
          %v2498 = vpop.f32.mrf.mxu0
          %v2499 = vadd.f32 0.0, %v2498
          %v2500 = vpop.f32.mrf.mxu0
          %v2501 = vpop.f32.mrf.mxu0
          %v2502 = vadd.f32 0.0, %v2501
          %v2503 = vpop.f32.mrf.mxu0
          %2504 = vmatprep.mubr.bf16.mxu0 0
          %2505 = vmatmul.mubr.bf16.gmra.mxu0 %v2351
          %v2506 = vpop.f32.mrf.mxu0
          %v2507 = vadd.f32 0.0, %v2506
          %v2508 = vpop.f32.mrf.mxu0
          %v2509 = vpop.f32.mrf.mxu0
          %v2510 = vadd.f32 0.0, %v2509
          %v2511 = vpop.f32.mrf.mxu0
          %2512 = vdwg.mxu0
          %v2529 = vunpack.c.l.b16 %v2328
          %v2530 = vunpack.c.l.b16 %v2329
          %v2531 = vunpack.c.l.b16 %v2330
          %v2532 = vunpack.c.l.b16 %v2331
          %v2533 = vunpack.c.l.b16 %v2332
          %v2534 = vunpack.c.l.b16 %v2333
          %v2535 = vunpack.c.l.b16 %v2334
          %v2536 = vunpack.c.l.b16 %v2335
          %v2537 = vunpack.c.l.b16 %v2336
          %v2538 = vunpack.c.l.b16 %v2337
          %v2539 = vunpack.c.l.b16 %v2338
          %v2540 = vunpack.c.l.b16 %v2339
          %v2541 = vunpack.c.l.b16 %v2340
          %v2542 = vunpack.c.l.b16 %v2341
          %v2543 = vunpack.c.l.b16 %v2342
          %v2544 = vunpack.c.l.b16 %v2343
          %v2545 = vpack.c.b16 %v2530, %v2529
          %v2546 = vpack.c.b16 %v2532, %v2531
          %v2547 = vpack.c.b16 %v2534, %v2533
          %v2548 = vpack.c.b16 %v2536, %v2535
          %v2549 = vpack.c.b16 %v2538, %v2537
          %v2550 = vpack.c.b16 %v2540, %v2539
          %v2551 = vpack.c.b16 %v2542, %v2541
          %v2552 = vpack.c.b16 %v2544, %v2543
          %2561 = vmatprep.subr.bf16.mxu0 0
          %2562 = vmatpush1.bf16.msra.mxu0 %v2552
          %2563 = vmatprep.subr.bf16.mxu0 0
          %2564 = vmatpush1.bf16.msra.mxu0 %v2551
          %2565 = vmatprep.subr.bf16.mxu0 0
          %2566 = vmatpush1.bf16.msra.mxu0 %v2550
          %2567 = vmatprep.subr.bf16.mxu0 0
          %2568 = vmatpush1.bf16.msra.mxu0 %v2549
          %2569 = vmatprep.subr.bf16.mxu0 0
          %2570 = vmatpush1.bf16.msra.mxu0 %v2548
          %2571 = vmatprep.subr.bf16.mxu0 0
          %2572 = vmatpush1.bf16.msra.mxu0 %v2547
          %2573 = vmatprep.subr.bf16.mxu0 0
          %2574 = vmatpush1.bf16.msra.mxu0 %v2546
          %2575 = vmatprep.subr.bf16.mxu0 0
          %2576 = vmatpush1.bf16.msra.mxu0 %v2545
          %2577 = vmatprep.subr.bf16.mxu0 0
          %2578 = vmatpush2.bf16.msra.mxu0 0
          %2579 = vmatprep.subr.bf16.mxu0 0
          %2580 = vmatpush2.bf16.msra.mxu0 0
          %2581 = vmatprep.subr.bf16.mxu0 0
          %2582 = vmatpush2.bf16.msra.mxu0 0
          %2583 = vmatprep.subr.bf16.mxu0 0
          %2584 = vmatpush2.bf16.msra.mxu0 0
          %2585 = vmatprep.subr.bf16.mxu0 0
          %2586 = vmatpush2.bf16.msra.mxu0 0
          %2587 = vmatprep.subr.bf16.mxu0 0
          %2588 = vmatpush2.bf16.msra.mxu0 0
          %2589 = vmatprep.subr.bf16.mxu0 0
          %2590 = vmatpush2.bf16.msra.mxu0 0
          %2591 = vmatprep.subr.bf16.mxu0 0
          %2592 = vmatpush2.bf16.msra.mxu0 0
          %2593 = vmatprep.mubr.bf16.mxu0 0
          %2594 = vmatmul.mubr.bf16.gmra.mxu0 %v705
          %v2595 = vpop.f32.mrf.mxu0
          %v2596 = vadd.f32 %v2451, %v2595
          %v2597 = vpop.f32.mrf.mxu0
          %v2598 = vpop.f32.mrf.mxu0
          %v2599 = vadd.f32 %v2454, %v2598
          %v2600 = vpop.f32.mrf.mxu0
          %2601 = vmatprep.mubr.bf16.mxu0 0
          %2602 = vmatmul.mubr.bf16.gmra.mxu0 %v706
          %v2603 = vpop.f32.mrf.mxu0
          %v2604 = vadd.f32 %v2459, %v2603
          %v2605 = vpop.f32.mrf.mxu0
          %v2606 = vpop.f32.mrf.mxu0
          %v2607 = vadd.f32 %v2462, %v2606
          %v2608 = vpop.f32.mrf.mxu0
          %2609 = vmatprep.mubr.bf16.mxu0 0
          %2610 = vmatmul.mubr.bf16.gmra.mxu0 %v707
          %v2611 = vpop.f32.mrf.mxu0
          %v2612 = vadd.f32 %v2467, %v2611
          %v2613 = vpop.f32.mrf.mxu0
          %v2614 = vpop.f32.mrf.mxu0
          %v2615 = vadd.f32 %v2470, %v2614
          %v2616 = vpop.f32.mrf.mxu0
          %2617 = vmatprep.mubr.bf16.mxu0 0
          %2618 = vmatmul.mubr.bf16.gmra.mxu0 %v708
          %v2619 = vpop.f32.mrf.mxu0
          %v2620 = vadd.f32 %v2475, %v2619
          %v2621 = vpop.f32.mrf.mxu0
          %v2622 = vpop.f32.mrf.mxu0
          %v2623 = vadd.f32 %v2478, %v2622
          %v2624 = vpop.f32.mrf.mxu0
          %2625 = vmatprep.mubr.bf16.mxu0 0
          %2626 = vmatmul.mubr.bf16.gmra.mxu0 %v709
          %v2627 = vpop.f32.mrf.mxu0
          %v2628 = vadd.f32 %v2483, %v2627
          %v2629 = vpop.f32.mrf.mxu0
          %v2630 = vpop.f32.mrf.mxu0
          %v2631 = vadd.f32 %v2486, %v2630
          %v2632 = vpop.f32.mrf.mxu0
          %2633 = vmatprep.mubr.bf16.mxu0 0
          %2634 = vmatmul.mubr.bf16.gmra.mxu0 %v710
          %v2635 = vpop.f32.mrf.mxu0
          %v2636 = vadd.f32 %v2491, %v2635
          %v2637 = vpop.f32.mrf.mxu0
          %v2638 = vpop.f32.mrf.mxu0
          %v2639 = vadd.f32 %v2494, %v2638
          %v2640 = vpop.f32.mrf.mxu0
          %2641 = vmatprep.mubr.bf16.mxu0 0
          %2642 = vmatmul.mubr.bf16.gmra.mxu0 %v711
          %v2643 = vpop.f32.mrf.mxu0
          %v2644 = vadd.f32 %v2499, %v2643
          %v2645 = vpop.f32.mrf.mxu0
          %v2646 = vpop.f32.mrf.mxu0
          %v2647 = vadd.f32 %v2502, %v2646
          %v2648 = vpop.f32.mrf.mxu0
          %2649 = vmatprep.mubr.bf16.mxu0 0
          %2650 = vmatmul.mubr.bf16.gmra.mxu0 %v712
          %v2651 = vpop.f32.mrf.mxu0
          %v2652 = vadd.f32 %v2507, %v2651
          %v2653 = vpop.f32.mrf.mxu0
          %v2654 = vpop.f32.mrf.mxu0
          %v2655 = vadd.f32 %v2510, %v2654
          %v2656 = vpop.f32.mrf.mxu0
          %2657 = vdwg.mxu0
          %v2658 = vtanh.pop %v2596
          %v2659 = vtanh.pop %v2599
          %v2660 = vtanh.pop %v2604
          %v2661 = vtanh.pop %v2607
          %v2662 = vtanh.pop %v2612
          %v2663 = vtanh.pop %v2615
          %v2664 = vtanh.pop %v2620
          %v2665 = vtanh.pop %v2623
          %v2666 = vtanh.pop %v2628
          %v2667 = vtanh.pop %v2631
          %v2668 = vtanh.pop %v2636
          %v2669 = vtanh.pop %v2639
          %v2670 = vtanh.pop %v2644
          %v2671 = vtanh.pop %v2647
          %v2672 = vtanh.pop %v2652
          %v2673 = vtanh.pop %v2655
          %2674 = vst [vmem:[%s530] sm:$0xff] %v2658
          %2675 = vst [vmem:[%s530 + $0x8] sm:$0xff] %v2659
          %2676 = vst [vmem:[%s530 + $0x10] sm:$0xff] %v2660
          %2677 = vst [vmem:[%s530 + $0x18] sm:$0xff] %v2661
          %2678 = vst [vmem:[%s530 + $0x20] sm:$0xff] %v2662
          %2679 = vst [vmem:[%s530 + $0x28] sm:$0xff] %v2663
          %2680 = vst [vmem:[%s530 + $0x30] sm:$0xff] %v2664
          %2681 = vst [vmem:[%s530 + $0x38] sm:$0xff] %v2665
          %2682 = vst [vmem:[%s530 + $0x40] sm:$0xff] %v2666
          %2683 = vst [vmem:[%s530 + $0x48] sm:$0xff] %v2667
          %2684 = vst [vmem:[%s530 + $0x50] sm:$0xff] %v2668
          %2685 = vst [vmem:[%s530 + $0x58] sm:$0xff] %v2669
          %2686 = vst [vmem:[%s530 + $0x60] sm:$0xff] %v2670
          %2687 = vst [vmem:[%s530 + $0x68] sm:$0xff] %v2671
          %2688 = vst [vmem:[%s530 + $0x70] sm:$0xff] %v2672
          %2689 = vst [vmem:[%s530 + $0x78] sm:$0xff] %v2673
          %v2690 = vunpack.c.l.bf16 %v605
          %v2691 = vunpack.c.l.bf16 %v606
          %v2692 = vunpack.c.l.bf16 %v607
          %v2693 = vunpack.c.l.bf16 %v608
          %v2694 = vunpack.c.l.bf16 %v609
          %v2695 = vunpack.c.l.bf16 %v610
          %v2696 = vunpack.c.l.bf16 %v611
          %v2697 = vunpack.c.l.bf16 %v612
          %v2698 = vunpack.c.l.bf16 %v613
          %v2699 = vunpack.c.l.bf16 %v614
          %v2700 = vunpack.c.l.bf16 %v615
          %v2701 = vunpack.c.l.bf16 %v616
          %v2702 = vunpack.c.l.bf16 %v617
          %v2703 = vunpack.c.l.bf16 %v618
          %v2704 = vunpack.c.l.bf16 %v619
          %v2705 = vunpack.c.l.bf16 %v620
          %v2706 = vld [vmem:[%s5] sm:$0x1]
          %v2708 = vlaneseq
          %v2709 = vshrl.u32 %v2708, 7
          %v2710 = vsub.s32 0, %v2709
          %v2711 = vrot.slane %v2706, %v2710
          %v2713 = vmul.f32 %v2690, %v2711
          %v2714 = vmul.f32 %v2691, %v2711
          %v2715 = vmul.f32 %v2692, %v2711
          %v2716 = vmul.f32 %v2693, %v2711
          %v2717 = vmul.f32 %v2694, %v2711
          %v2718 = vmul.f32 %v2695, %v2711
          %v2719 = vmul.f32 %v2696, %v2711
          %v2720 = vmul.f32 %v2697, %v2711
          %v2721 = vmul.f32 %v2698, %v2711
          %v2722 = vmul.f32 %v2699, %v2711
          %v2723 = vmul.f32 %v2700, %v2711
          %v2724 = vmul.f32 %v2701, %v2711
          %v2725 = vmul.f32 %v2702, %v2711
          %v2726 = vmul.f32 %v2703, %v2711
          %v2727 = vmul.f32 %v2704, %v2711
          %v2728 = vmul.f32 %v2705, %v2711
          %2729 = vadd.xlane.f32.xlu0 %v2713
          %v2730 = vpop.xlane.xlu0 %2729
          %2731 = vadd.xlane.f32.xlu0 %v2714
          %v2732 = vpop.xlane.xlu0 %2731
          %2733 = vadd.xlane.f32.xlu0 %v2715
          %v2734 = vpop.xlane.xlu0 %2733
          %2735 = vadd.xlane.f32.xlu0 %v2716
          %v2736 = vpop.xlane.xlu0 %2735
          %2737 = vadd.xlane.f32.xlu0 %v2717
          %v2738 = vpop.xlane.xlu0 %2737
          %2739 = vadd.xlane.f32.xlu0 %v2718
          %v2740 = vpop.xlane.xlu0 %2739
          %2741 = vadd.xlane.f32.xlu0 %v2719
          %v2742 = vpop.xlane.xlu0 %2741
          %2743 = vadd.xlane.f32.xlu0 %v2720
          %v2744 = vpop.xlane.xlu0 %2743
          %2745 = vadd.xlane.f32.xlu0 %v2721
          %v2746 = vpop.xlane.xlu0 %2745
          %2747 = vadd.xlane.f32.xlu0 %v2722
          %v2748 = vpop.xlane.xlu0 %2747
          %2749 = vadd.xlane.f32.xlu0 %v2723
          %v2750 = vpop.xlane.xlu0 %2749
          %2751 = vadd.xlane.f32.xlu0 %v2724
          %v2752 = vpop.xlane.xlu0 %2751
          %2753 = vadd.xlane.f32.xlu0 %v2725
          %v2754 = vpop.xlane.xlu0 %2753
          %2755 = vadd.xlane.f32.xlu0 %v2726
          %v2756 = vpop.xlane.xlu0 %2755
          %2757 = vadd.xlane.f32.xlu0 %v2727
          %v2758 = vpop.xlane.xlu0 %2757
          %2759 = vadd.xlane.f32.xlu0 %v2728
          %v2760 = vpop.xlane.xlu0 %2759
          %v2761 = vld [vmem:[%s6] sm:$0x1]
          %v2763 = vlaneseq
          %v2764 = vshrl.u32 %v2763, 7
          %v2765 = vsub.s32 0, %v2764
          %v2766 = vrot.slane %v2761, %v2765
          %v2768 = vmul.f32 %v2658, %v2766
          %v2769 = vmul.f32 %v2659, %v2766
          %v2770 = vmul.f32 %v2660, %v2766
          %v2771 = vmul.f32 %v2661, %v2766
          %v2772 = vmul.f32 %v2662, %v2766
          %v2773 = vmul.f32 %v2663, %v2766
          %v2774 = vmul.f32 %v2664, %v2766
          %v2775 = vmul.f32 %v2665, %v2766
          %v2776 = vmul.f32 %v2666, %v2766
          %v2777 = vmul.f32 %v2667, %v2766
          %v2778 = vmul.f32 %v2668, %v2766
          %v2779 = vmul.f32 %v2669, %v2766
          %v2780 = vmul.f32 %v2670, %v2766
          %v2781 = vmul.f32 %v2671, %v2766
          %v2782 = vmul.f32 %v2672, %v2766
          %v2783 = vmul.f32 %v2673, %v2766
          %2784 = vadd.xlane.f32.xlu0 %v2768
          %v2785 = vpop.xlane.xlu0 %2784
          %2786 = vadd.xlane.f32.xlu0 %v2769
          %v2787 = vpop.xlane.xlu0 %2786
          %2788 = vadd.xlane.f32.xlu0 %v2770
          %v2789 = vpop.xlane.xlu0 %2788
          %2790 = vadd.xlane.f32.xlu0 %v2771
          %v2791 = vpop.xlane.xlu0 %2790
          %2792 = vadd.xlane.f32.xlu0 %v2772
          %v2793 = vpop.xlane.xlu0 %2792
          %2794 = vadd.xlane.f32.xlu0 %v2773
          %v2795 = vpop.xlane.xlu0 %2794
          %2796 = vadd.xlane.f32.xlu0 %v2774
          %v2797 = vpop.xlane.xlu0 %2796
          %2798 = vadd.xlane.f32.xlu0 %v2775
          %v2799 = vpop.xlane.xlu0 %2798
          %2800 = vadd.xlane.f32.xlu0 %v2776
          %v2801 = vpop.xlane.xlu0 %2800
          %2802 = vadd.xlane.f32.xlu0 %v2777
          %v2803 = vpop.xlane.xlu0 %2802
          %2804 = vadd.xlane.f32.xlu0 %v2778
          %v2805 = vpop.xlane.xlu0 %2804
          %2806 = vadd.xlane.f32.xlu0 %v2779
          %v2807 = vpop.xlane.xlu0 %2806
          %2808 = vadd.xlane.f32.xlu0 %v2780
          %v2809 = vpop.xlane.xlu0 %2808
          %2810 = vadd.xlane.f32.xlu0 %v2781
          %v2811 = vpop.xlane.xlu0 %2810
          %2812 = vadd.xlane.f32.xlu0 %v2782
          %v2813 = vpop.xlane.xlu0 %2812
          %2814 = vadd.xlane.f32.xlu0 %v2783
          %v2815 = vpop.xlane.xlu0 %2814
          %v2816 = vadd.f32 %v2730, %v2785
          %v2817 = vadd.f32 %v2732, %v2787
          %v2818 = vadd.f32 %v2734, %v2789
          %v2819 = vadd.f32 %v2736, %v2791
          %v2820 = vadd.f32 %v2738, %v2793
          %v2821 = vadd.f32 %v2740, %v2795
          %v2822 = vadd.f32 %v2742, %v2797
          %v2823 = vadd.f32 %v2744, %v2799
          %v2824 = vadd.f32 %v2746, %v2801
          %v2825 = vadd.f32 %v2748, %v2803
          %v2826 = vadd.f32 %v2750, %v2805
          %v2827 = vadd.f32 %v2752, %v2807
          %v2828 = vadd.f32 %v2754, %v2809
          %v2829 = vadd.f32 %v2756, %v2811
          %v2830 = vadd.f32 %v2758, %v2813
          %v2831 = vadd.f32 %v2760, %v2815
          %v2832 = vld [vmem:[#allocation6] sm:$0x1]
          %v2834 = vlaneseq
          %v2835 = vshrl.u32 %v2834, 7
          %v2836 = vsub.s32 0, %v2835
          %v2837 = vrot.slane %v2832, %v2836
          %v2839 = vadd.f32 %v2816, %v2837
          %v2840 = vadd.f32 %v2817, %v2837
          %v2841 = vadd.f32 %v2818, %v2837
          %v2842 = vadd.f32 %v2819, %v2837
          %v2843 = vadd.f32 %v2820, %v2837
          %v2844 = vadd.f32 %v2821, %v2837
          %v2845 = vadd.f32 %v2822, %v2837
          %v2846 = vadd.f32 %v2823, %v2837
          %v2847 = vadd.f32 %v2824, %v2837
          %v2848 = vadd.f32 %v2825, %v2837
          %v2849 = vadd.f32 %v2826, %v2837
          %v2850 = vadd.f32 %v2827, %v2837
          %v2851 = vadd.f32 %v2828, %v2837
          %v2852 = vadd.f32 %v2829, %v2837
          %v2853 = vadd.f32 %v2830, %v2837
          %v2854 = vadd.f32 %v2831, %v2837
          %v2855 = vxor.u32 %v2839, 2147483648
          %v2856 = vxor.u32 %v2840, 2147483648
          %v2857 = vxor.u32 %v2841, 2147483648
          %v2858 = vxor.u32 %v2842, 2147483648
          %v2859 = vxor.u32 %v2843, 2147483648
          %v2860 = vxor.u32 %v2844, 2147483648
          %v2861 = vxor.u32 %v2845, 2147483648
          %v2862 = vxor.u32 %v2846, 2147483648
          %v2863 = vxor.u32 %v2847, 2147483648
          %v2864 = vxor.u32 %v2848, 2147483648
          %v2865 = vxor.u32 %v2849, 2147483648
          %v2866 = vxor.u32 %v2850, 2147483648
          %v2867 = vxor.u32 %v2851, 2147483648
          %v2868 = vxor.u32 %v2852, 2147483648
          %v2869 = vxor.u32 %v2853, 2147483648
          %v2870 = vxor.u32 %v2854, 2147483648
          %v2871 = vmul.f32 %v2855, 1.442695
          %v2872 = vpow.pop %v2871
          %v2873 = vmul.f32 %v2856, 1.442695
          %v2874 = vpow.pop %v2873
          %v2875 = vmul.f32 %v2857, 1.442695
          %v2876 = vpow.pop %v2875
          %v2877 = vmul.f32 %v2858, 1.442695
          %v2878 = vpow.pop %v2877
          %v2879 = vmul.f32 %v2859, 1.442695
          %v2880 = vpow.pop %v2879
          %v2881 = vmul.f32 %v2860, 1.442695
          %v2882 = vpow.pop %v2881
          %v2883 = vmul.f32 %v2861, 1.442695
          %v2884 = vpow.pop %v2883
          %v2885 = vmul.f32 %v2862, 1.442695
          %v2886 = vpow.pop %v2885
          %v2887 = vmul.f32 %v2863, 1.442695
          %v2888 = vpow.pop %v2887
          %v2889 = vmul.f32 %v2864, 1.442695
          %v2890 = vpow.pop %v2889
          %v2891 = vmul.f32 %v2865, 1.442695
          %v2892 = vpow.pop %v2891
          %v2893 = vmul.f32 %v2866, 1.442695
          %v2894 = vpow.pop %v2893
          %v2895 = vmul.f32 %v2867, 1.442695
          %v2896 = vpow.pop %v2895
          %v2897 = vmul.f32 %v2868, 1.442695
          %v2898 = vpow.pop %v2897
          %v2899 = vmul.f32 %v2869, 1.442695
          %v2900 = vpow.pop %v2899
          %v2901 = vmul.f32 %v2870, 1.442695
          %v2902 = vpow.pop %v2901
          %v2903 = vadd.f32 %v2872, 1.0
          %v2904 = vadd.f32 %v2874, 1.0
          %v2905 = vadd.f32 %v2876, 1.0
          %v2906 = vadd.f32 %v2878, 1.0
          %v2907 = vadd.f32 %v2880, 1.0
          %v2908 = vadd.f32 %v2882, 1.0
          %v2909 = vadd.f32 %v2884, 1.0
          %v2910 = vadd.f32 %v2886, 1.0
          %v2911 = vadd.f32 %v2888, 1.0
          %v2912 = vadd.f32 %v2890, 1.0
          %v2913 = vadd.f32 %v2892, 1.0
          %v2914 = vadd.f32 %v2894, 1.0
          %v2915 = vadd.f32 %v2896, 1.0
          %v2916 = vadd.f32 %v2898, 1.0
          %v2917 = vadd.f32 %v2900, 1.0
          %v2918 = vadd.f32 %v2902, 1.0
          %v2919 = vrcp.pop %v2903
          %v2920 = vmul.f32 1.0, %v2919
          %v2921 = vrcp.pop %v2904
          %v2922 = vmul.f32 1.0, %v2921
          %v2923 = vrcp.pop %v2905
          %v2924 = vmul.f32 1.0, %v2923
          %v2925 = vrcp.pop %v2906
          %v2926 = vmul.f32 1.0, %v2925
          %v2927 = vrcp.pop %v2907
          %v2928 = vmul.f32 1.0, %v2927
          %v2929 = vrcp.pop %v2908
          %v2930 = vmul.f32 1.0, %v2929
          %v2931 = vrcp.pop %v2909
          %v2932 = vmul.f32 1.0, %v2931
          %v2933 = vrcp.pop %v2910
          %v2934 = vmul.f32 1.0, %v2933
          %v2935 = vrcp.pop %v2911
          %v2936 = vmul.f32 1.0, %v2935
          %v2937 = vrcp.pop %v2912
          %v2938 = vmul.f32 1.0, %v2937
          %v2939 = vrcp.pop %v2913
          %v2940 = vmul.f32 1.0, %v2939
          %v2941 = vrcp.pop %v2914
          %v2942 = vmul.f32 1.0, %v2941
          %v2943 = vrcp.pop %v2915
          %v2944 = vmul.f32 1.0, %v2943
          %v2945 = vrcp.pop %v2916
          %v2946 = vmul.f32 1.0, %v2945
          %v2947 = vrcp.pop %v2917
          %v2948 = vmul.f32 1.0, %v2947
          %v2949 = vrcp.pop %v2918
          %v2950 = vmul.f32 1.0, %v2949
          %2952 = vset.pattern.permute.xlu0 0
          %2953 = vperm.xlu0 %2952, %v2920
          %v2954 = vpop.permute.xlu0 %2953
          %2957 = vset.pattern.permute.xlu0 0
          %2958 = vperm.xlu0 %2957, %v2922
          %v2959 = vpop.permute.xlu0 %2958
          %2962 = vset.pattern.permute.xlu0 0
          %2963 = vperm.xlu0 %2962, %v2924
          %v2964 = vpop.permute.xlu0 %2963
          %2967 = vset.pattern.permute.xlu0 0
          %2968 = vperm.xlu0 %2967, %v2926
          %v2969 = vpop.permute.xlu0 %2968
          %2972 = vset.pattern.permute.xlu0 0
          %2973 = vperm.xlu0 %2972, %v2928
          %v2974 = vpop.permute.xlu0 %2973
          %2977 = vset.pattern.permute.xlu0 0
          %2978 = vperm.xlu0 %2977, %v2930
          %v2979 = vpop.permute.xlu0 %2978
          %2982 = vset.pattern.permute.xlu0 0
          %2983 = vperm.xlu0 %2982, %v2932
          %v2984 = vpop.permute.xlu0 %2983
          %2987 = vset.pattern.permute.xlu0 0
          %2988 = vperm.xlu0 %2987, %v2934
          %v2989 = vpop.permute.xlu0 %2988
          %2992 = vset.pattern.permute.xlu0 0
          %2993 = vperm.xlu0 %2992, %v2936
          %v2994 = vpop.permute.xlu0 %2993
          %2997 = vset.pattern.permute.xlu0 0
          %2998 = vperm.xlu0 %2997, %v2938
          %v2999 = vpop.permute.xlu0 %2998
          %3002 = vset.pattern.permute.xlu0 0
          %3003 = vperm.xlu0 %3002, %v2940
          %v3004 = vpop.permute.xlu0 %3003
          %3007 = vset.pattern.permute.xlu0 0
          %3008 = vperm.xlu0 %3007, %v2942
          %v3009 = vpop.permute.xlu0 %3008
          %3012 = vset.pattern.permute.xlu0 0
          %3013 = vperm.xlu0 %3012, %v2944
          %v3014 = vpop.permute.xlu0 %3013
          %3017 = vset.pattern.permute.xlu0 0
          %3018 = vperm.xlu0 %3017, %v2946
          %v3019 = vpop.permute.xlu0 %3018
          %3022 = vset.pattern.permute.xlu0 0
          %3023 = vperm.xlu0 %3022, %v2948
          %v3024 = vpop.permute.xlu0 %3023
          %3027 = vset.pattern.permute.xlu0 0
          %3028 = vperm.xlu0 %3027, %v2950
          %v3029 = vpop.permute.xlu0 %3028
          %3031 = vst [vmem:[%s544] sm:$0xff] %v2954
          %3032 = vst [vmem:[%s544 + $0x8] sm:$0xff] %v2959
          %3033 = vst [vmem:[%s544 + $0x10] sm:$0xff] %v2964
          %3034 = vst [vmem:[%s544 + $0x18] sm:$0xff] %v2969
          %3035 = vst [vmem:[%s544 + $0x20] sm:$0xff] %v2974
          %3036 = vst [vmem:[%s544 + $0x28] sm:$0xff] %v2979
          %3037 = vst [vmem:[%s544 + $0x30] sm:$0xff] %v2984
          %3038 = vst [vmem:[%s544 + $0x38] sm:$0xff] %v2989
          %3039 = vst [vmem:[%s544 + $0x40] sm:$0xff] %v2994
          %3040 = vst [vmem:[%s544 + $0x48] sm:$0xff] %v2999
          %3041 = vst [vmem:[%s544 + $0x50] sm:$0xff] %v3004
          %3042 = vst [vmem:[%s544 + $0x58] sm:$0xff] %v3009
          %3043 = vst [vmem:[%s544 + $0x60] sm:$0xff] %v3014
          %3044 = vst [vmem:[%s544 + $0x68] sm:$0xff] %v3019
          %3045 = vst [vmem:[%s544 + $0x70] sm:$0xff] %v3024
          %3046 = vst [vmem:[%s544 + $0x78] sm:$0xff] %v3029
        $region80: #{tpu_custom_call.1} parent=51 // pred_fallthru
          _
        %s3047 = sand.u32 %s257, 1
        %s3048 = scalar_lea.sflag [#allocation9], %s3047
        %s3049 = sand.u32 %s257, 1
        %s3050 = smul.addr %s3049, 128
        %s3051 = scalar_lea.vmem [#allocation16], %s3050
        %s3052 = sand.u32 %s37, 1
        %s3053 = scalar_lea.sflag [#allocation18], %s3052
        %s3054 = sand.u32 %s285, 1
        %s3055 = smul.addr %s3054, 384
        %s3056 = scalar_lea.vmem [#allocation17], %s3055
        %s3057 = sand.u32 %s37, 1
        %s3058 = scalar_lea.sflag [#allocation18], %s3057
        %s3059 = sand.u32 %s313, 1
        %s3060 = smul.addr %s3059, 128
        %s3061 = scalar_lea.vmem [#allocation19], %s3060
        // Predicated region
        $region81: #{tpu_custom_call.1} parent=51 // pred_check
          %p3062 = pneg %p267
        $region82: #{tpu_custom_call.1} parent=51 // pred_check_branch
          %3064 = sbr.rel (%p3062) target = $region84
        $region83: #{tpu_custom_call.1} parent=51 // pred_region
          %s3065 = smul.u32 16, %s43
          %s3067 = ssub.s32 2048, 2048
          %3068 = vsyncadd %s3048, %s3067
          %s3069 = smul.addr %s42, 16
          %s3070 = sadd.s32 %s3065, %s3069
          %s3071 = smul.addr %s3070, 128
          %s3072 = scalar_lea.hbm %s8, %s3071
          %s3073 = sshll.u32 %s3051, 4
          %s3074 = int_to_ptr.vmem [resolvable:$true] %s3073
          %3079 = dma.vmem_to_hbm [thread:$0]  %s3074, 2048, %s3072, %s3048, 128, 128, 8
        $region84: #{tpu_custom_call.1} parent=51 // pred_fallthru
          _
        // Predicated region
        $region85: #{tpu_custom_call.1} parent=51 // pred_check
          %p3080 = pneg %p295
        $region86: #{tpu_custom_call.1} parent=51 // pred_check_branch
          %3082 = sbr.rel (%p3080) target = $region88
        $region87: #{tpu_custom_call.1} parent=51 // pred_region
          %s3083 = smul.u32 16, %s43
          %s3085 = ssub.s32 6144, 6144
          %3086 = vsyncadd %s3053, %s3085
          %s3087 = smul.addr %s3083, 3
          %s3088 = smul.addr %s42, 48
          %s3089 = sadd.s32 %s3087, %s3088
          %s3090 = smul.addr %s3089, 128
          %s3091 = scalar_lea.hbm %s9, %s3090
          %s3092 = sshll.u32 %s3056, 4
          %s3093 = int_to_ptr.vmem [resolvable:$true] %s3092
          %3098 = dma.vmem_to_hbm [thread:$0]  %s3093, 6144, %s3091, %s3053, 384, 384, 24
        $region88: #{tpu_custom_call.1} parent=51 // pred_fallthru
          _
        // Predicated region
        $region89: #{tpu_custom_call.1} parent=51 // pred_check
          %p3099 = pneg %p323
        $region90: #{tpu_custom_call.1} parent=51 // pred_check_branch
          %3101 = sbr.rel (%p3099) target = $region92
        $region91: #{tpu_custom_call.1} parent=51 // pred_region
          %s3102 = smul.u32 16, %s43
          %s3104 = ssub.s32 2048, 2048
          %3105 = vsyncadd %s3058, %s3104
          %s3106 = smul.addr %s42, 16
          %s3107 = sadd.s32 %s3102, %s3106
          %s3108 = smul.addr %s3107, 128
          %s3109 = scalar_lea.hbm %s10, %s3108
          %s3110 = sshll.u32 %s3061, 4
          %s3111 = int_to_ptr.vmem [resolvable:$true] %s3110
          %3116 = dma.vmem_to_hbm [thread:$0]  %s3111, 2048, %s3109, %s3058, 128, 128, 8
        $region92: #{tpu_custom_call.1} parent=51 // pred_fallthru
          _
      $region52: #{tpu_custom_call.1} parent=5 // pred_fallthru
        _
      %p3117 = scmp.le.s32.totalorder 2, %s32
      // Predicated region
      $region93: #{tpu_custom_call.1} parent=5 // pred_check
        %p3118 = pneg %p3117
      $region94: #{tpu_custom_call.1} parent=5 // pred_check_branch
        %3120 = sbr.rel (%p3118) target = $region96
      $region95: #{tpu_custom_call.1} parent=5 // pred_region
        %s3121 = ssub.s32 %s32, 2
        // Predicated region
        $region97: #{tpu_custom_call.1} parent=95 // pred_check
          %p3122 = pneg %p273
        $region98: #{tpu_custom_call.1} parent=95 // pred_check_branch
          %3124 = sbr.rel (%p3122) target = $region100
        $region99: #{tpu_custom_call.1} parent=95 // pred_region
          %s3125 = sand.u32 %s258, 1
          %s3126 = scalar_lea.sflag [#allocation9], %s3125
          %s3127 = sand.u32 %s258, 1
          %s3128 = smul.addr %s3127, 128
          %s3129 = scalar_lea.vmem [#allocation16], %s3128
          %3130 = dma.done %s3126, 2048
        $region100: #{tpu_custom_call.1} parent=95 // pred_fallthru
          _
        // Predicated region
        $region101: #{tpu_custom_call.1} parent=95 // pred_check
          %p3131 = pneg %p301
        $region102: #{tpu_custom_call.1} parent=95 // pred_check_branch
          %3133 = sbr.rel (%p3131) target = $region104
        $region103: #{tpu_custom_call.1} parent=95 // pred_region
          %s3134 = sand.u32 %s38, 1
          %s3135 = scalar_lea.sflag [#allocation18], %s3134
          %s3136 = sand.u32 %s286, 1
          %s3137 = smul.addr %s3136, 384
          %s3138 = scalar_lea.vmem [#allocation17], %s3137
          %3139 = dma.done %s3135, 6144
        $region104: #{tpu_custom_call.1} parent=95 // pred_fallthru
          _
        // Predicated region
        $region105: #{tpu_custom_call.1} parent=95 // pred_check
          %p3140 = pneg %p329
        $region106: #{tpu_custom_call.1} parent=95 // pred_check_branch
          %3142 = sbr.rel (%p3140) target = $region108
        $region107: #{tpu_custom_call.1} parent=95 // pred_region
          %s3143 = sand.u32 %s38, 1
          %s3144 = scalar_lea.sflag [#allocation18], %s3143
          %s3145 = sand.u32 %s314, 1
          %s3146 = smul.addr %s3145, 128
          %s3147 = scalar_lea.vmem [#allocation19], %s3146
          %3148 = dma.done %s3144, 2048
        $region108: #{tpu_custom_call.1} parent=95 // pred_fallthru
          _
      $region96: #{tpu_custom_call.1} parent=5 // pred_fallthru
        _
    $region6: #{tpu_custom_call.1} parent=1 // loop_footer
      %s36 = sadd.s32 1, %s32
    $region7: #{tpu_custom_call.1} parent=1 // loop_footer_branch
      %31 = sbr.rel target = $region3
    $region8: #{tpu_custom_call.1} parent=1 // loop_exit
      _
    %3149 = vsyncpa [#allocation8], 1
    %s3150 = scalar_lea.sflag [#allocation8], 1
    %3151 = vsyncpa %s3150, 1
    %3152 = vsyncpa [#allocation11], 1
    %s3153 = scalar_lea.sflag [#allocation11], 1
    %3154 = vsyncpa %s3153, 1
    %3155 = vsyncpa [#allocation14], 1
    %3156 = vsyncpa [#allocation9], 1
    %s3157 = scalar_lea.sflag [#allocation9], 1
    %3158 = vsyncpa %s3157, 1
    %3159 = vsyncpa [#allocation18], 1
    %s3160 = scalar_lea.sflag [#allocation18], 1
    %3161 = vsyncpa %s3160, 1

</llo_original>
